<compile_context>
chip_gen: v7x
topology: tpu7x:2x2x1
jax: 0.10.0
libtpu: 0.0.40
codegen_flags: <defaults>
</compile_context>

<pallas_src>
import functools

import jax
import jax.numpy as jnp
from jax.experimental import pallas as pl
from jax.experimental.pallas import tpu as pltpu

LATENT_DIMS = 2
IN_FEATS = 784            # 1 * 28 * 28
HIDDEN = 512
TILE_B = 1024             # max batch tile (multiple of 8)


def autoencoder_kernel(x_ref,
                       w1_ref, b1_ref,      # encoder.linear1: (784, 512) bf16 / (1, 512) f32
                       w2_ref, b2_ref,      # encoder.linear2: (512, 2)  bf16 / (1, 2)   f32
                       w3_ref, b3_ref,      # decoder.linear1: (2, 512)  f32  / (1, 512) f32
                       w4_ref, b4_ref,      # decoder.linear2: (512, 784) bf16 / (1, 784) f32
                       o_ref):
    # Cast to bf16 in-kernel (avoids a separate wrapper-side HBM cast pass).
    x = x_ref[...].astype(jnp.bfloat16)                               # (TB, 784)

    # Encoder linear1 + ReLU  (bf16 operands, f32 accumulation on the MXU).
    h = jnp.dot(x, w1_ref[...], preferred_element_type=jnp.float32) + b1_ref[...]
    h = jnp.maximum(h, 0.0)                                           # (TB, 512) f32

    # Encoder linear2: rank-2 latent.  N=2 costs a single MXU N-pass.
    z = jnp.dot(h.astype(jnp.bfloat16), w2_ref[...],
                preferred_element_type=jnp.float32) + b2_ref[...]     # (TB, 2) f32

    # Decoder linear1 expanded as two broadcast FMAs on the VPU (exact: no
    # activation on z; K=2 would waste an MXU pass).  f32 throughout.
    d = (z[:, 0:1] * w3_ref[0:1, :]
         + z[:, 1:2] * w3_ref[1:2, :]
         + b3_ref[...])
    d = jnp.maximum(d, 0.0)                                           # (TB, 512) f32

    # Decoder linear2 + sigmoid.  sigmoid(y) == 0.5*(tanh(y/2)+1): EUP tanh,
    # no VALU divide.
    y = jnp.dot(d.astype(jnp.bfloat16), w4_ref[...],
                preferred_element_type=jnp.float32) + b4_ref[...]     # (TB, 784) f32
    o_ref[...] = (0.5 * (jnp.tanh(0.5 * y) + 1.0)).astype(o_ref.dtype)


def prepare_kernel_params(params):
    """Cast weights into kernel-ready form.  Call ONCE and reuse the result
    (do not re-run per forward call)."""
    w1, b1, w2, b2, w3, b3, w4, b4 = params
    return (w1.astype(jnp.bfloat16), b1,
            w2.astype(jnp.bfloat16), b2,
            w3, b3,                              # f32: consumed on the VPU
            w4.astype(jnp.bfloat16), b4)


def _round_up(x, m):
    return ((x + m - 1) // m) * m


@functools.partial(jax.jit, static_argnames=("tile_b",))
def autoencoder_forward(x_nchw, kernel_params, tile_b=TILE_B):
    """x_nchw: (B, 1, 28, 28) f32 -> (B, 1, 28, 28) f32.

    kernel_params must come from prepare_kernel_params()."""
    B = x_nchw.shape[0]
    w1, b1, w2, b2, w3, b3, w4, b4 = kernel_params

    # torch.flatten(x, start_dim=1): free reshape, no pad / cast / copy pass.
    x_flat = x_nchw.reshape(B, IN_FEATS)

    # Batch tile: cap at tile_b, but keep >= 2 grid steps whenever possible so
    # the "parallel" batch axis shards across both TensorCores on v7x.
    tb = min(tile_b, max(8, _round_up(pl.cdiv(B, 2), 8)))
    grid = (pl.cdiv(B, tb),)

    # Weights/biases: constant index_map -> DMA'd once, resident across steps.
    def resident(arr):
        return pl.BlockSpec(arr.shape, lambda i: (0, 0))

    cost = pl.CostEstimate(
        flops=2 * B * (IN_FEATS * HIDDEN            # x @ w1
                       + HIDDEN * LATENT_DIMS       # h @ w2
                       + LATENT_DIMS * HIDDEN       # VPU rank-2 expansion
                       + HIDDEN * IN_FEATS),        # d @ w4
        transcendentals=B * IN_FEATS,               # tanh epilogue
        bytes_accessed=(B * IN_FEATS * 4 * 2                                   # x in, y out (f32)
                        + (IN_FEATS * HIDDEN + HIDDEN * LATENT_DIMS
                           + HIDDEN * IN_FEATS) * 2                            # bf16 weights
                        + LATENT_DIMS * HIDDEN * 4                             # f32 w3
                        + (HIDDEN + LATENT_DIMS + HIDDEN + IN_FEATS) * 4))     # biases

    out = pl.pallas_call(
        autoencoder_kernel,
        out_shape=jax.ShapeDtypeStruct((B, IN_FEATS), jnp.float32),
        grid=grid,
        in_specs=[pl.BlockSpec((tb, IN_FEATS), lambda i: (i, 0)),
                  resident(w1), resident(b1),
                  resident(w2), resident(b2),
                  resident(w3), resident(b3),
                  resident(w4), resident(b4)],
        out_specs=pl.BlockSpec((tb, IN_FEATS), lambda i: (i, 0)),
        compiler_params=pltpu.CompilerParams(
            dimension_semantics=("parallel",),       # megacore on v7x, no-op v5e/v6e
            vmem_limit_bytes=48 * 1024 * 1024),      # fits v7x's 64 MiB physical VMEM
        cost_estimate=cost,
    )(x_flat, w1, b1, w2, b2, w3, b3, w4, b4)

    return out.reshape(B, 1, 28, 28)


def init_params(key):
    """Deterministic parameter init (PyTorch-style uniform fan-in bounds)."""
    ks = jax.random.split(key, 8)

    def linear(kw, kb, fan_in, fan_out):
        bound = 1.0 / jnp.sqrt(fan_in)
        # stored as (in_features, out_features) so kernels do x @ W + b
        w = jax.random.uniform(kw, (fan_in, fan_out), jnp.float32, -bound, bound)
        b = jax.random.uniform(kb, (1, fan_out), jnp.float32, -bound, bound)
        return w, b

    w1, b1 = linear(ks[0], ks[1], IN_FEATS, HIDDEN)       # encoder.linear1
    w2, b2 = linear(ks[2], ks[3], HIDDEN, LATENT_DIMS)    # encoder.linear2
    w3, b3 = linear(ks[4], ks[5], LATENT_DIMS, HIDDEN)    # decoder.linear1
    w4, b4 = linear(ks[6], ks[7], HIDDEN, IN_FEATS)       # decoder.linear2
    return (w1, b1, w2, b2, w3, b3, w4, b4)


def reference_forward(x_nchw, params):
    """Pure-JAX f32 reference of the unfused PyTorch forward."""
    w1, b1, w2, b2, w3, b3, w4, b4 = params
    x = x_nchw.reshape(x_nchw.shape[0], IN_FEATS)
    h = jnp.maximum(x @ w1 + b1, 0.0)
    z = h @ w2 + b2
    d = jnp.maximum(z @ w3 + b3, 0.0)
    y = jax.nn.sigmoid(d @ w4 + b4)
    return y.reshape(-1, 1, 28, 28)


if __name__ == "__main__":
    key = jax.random.PRNGKey(0)
    k_params, k_x = jax.random.split(key)

    params = init_params(k_params)
    kparams = prepare_kernel_params(params)     # hoisted: prepared once, reused every call

    x = jax.random.normal(k_x, (4, 1, 28, 28), dtype=jnp.float32)

    out = autoencoder_forward(x, kparams)
    out = jax.block_until_ready(out)

    assert out.shape == (4, 1, 28, 28), out.shape
    assert out.dtype == jnp.float32, out.dtype
    assert bool(jnp.all((out >= 0.0) & (out <= 1.0))), "sigmoid range violated"

    # bf16 matmul operands with f32 accumulation: small numeric delta vs f32 ref.
    ref = reference_forward(x, params)
    max_err = float(jnp.max(jnp.abs(out - ref)))
    assert max_err < 2e-2, f"max abs err vs f32 reference too large: {max_err}"

    print("KERNEL_OK")
</pallas_src>

<mosaic_0001>
module attributes {stable_mosaic.version = 11 : i64} {
  func.func @autoencoder_kernel(%arg0: i32, %arg1: memref<8x784xf32, #tpu.memory_space<vmem>>, %arg2: memref<784x512xbf16, #tpu.memory_space<vmem>>, %arg3: memref<1x512xf32, #tpu.memory_space<vmem>>, %arg4: memref<512x2xbf16, #tpu.memory_space<vmem>>, %arg5: memref<1x2xf32, #tpu.memory_space<vmem>>, %arg6: memref<2x512xf32, #tpu.memory_space<vmem>>, %arg7: memref<1x512xf32, #tpu.memory_space<vmem>>, %arg8: memref<512x784xbf16, #tpu.memory_space<vmem>>, %arg9: memref<1x784xf32, #tpu.memory_space<vmem>>, %arg10: memref<8x784xf32, #tpu.memory_space<vmem>>) attributes {dimension_semantics = [#tpu.dimension_semantics<parallel>], iteration_bounds = array<i64: 1>, scalar_prefetch = 0 : i64, scratch_operands = 0 : i64, tpu.core_type = #tpu.core_type<tc>, window_params = [{transform_indices = @transform_0, window_bounds = array<i64: 8, 784>}, {pipeline_mode = #tpu.pipeline_mode<synchronous>, transform_indices = @transform_1, window_bounds = array<i64: 784, 512>}, {pipeline_mode = #tpu.pipeline_mode<synchronous>, transform_indices = @transform_2, window_bounds = array<i64: 1, 512>}, {pipeline_mode = #tpu.pipeline_mode<synchronous>, transform_indices = @transform_3, window_bounds = array<i64: 512, 2>}, {pipeline_mode = #tpu.pipeline_mode<synchronous>, transform_indices = @transform_4, window_bounds = array<i64: 1, 2>}, {pipeline_mode = #tpu.pipeline_mode<synchronous>, transform_indices = @transform_5, window_bounds = array<i64: 2, 512>}, {pipeline_mode = #tpu.pipeline_mode<synchronous>, transform_indices = @transform_6, window_bounds = array<i64: 1, 512>}, {pipeline_mode = #tpu.pipeline_mode<synchronous>, transform_indices = @transform_7, window_bounds = array<i64: 512, 784>}, {pipeline_mode = #tpu.pipeline_mode<synchronous>, transform_indices = @transform_8, window_bounds = array<i64: 1, 784>}, {transform_indices = @transform_9, window_bounds = array<i64: 8, 784>}]} {
    %c0 = arith.constant 0 : index
    %c0_0 = arith.constant 0 : index
    %0 = vector.load %arg1[%c0, %c0_0] : memref<8x784xf32, #tpu.memory_space<vmem>>, vector<8x784xf32>
    %1 = arith.truncf %0 : vector<8x784xf32> to vector<8x784xbf16>
    %c0_1 = arith.constant 0 : index
    %c0_2 = arith.constant 0 : index
    %2 = vector.load %arg2[%c0_1, %c0_2] : memref<784x512xbf16, #tpu.memory_space<vmem>>, vector<784x512xbf16>
    %cst = arith.constant dense<0.000000e+00> : vector<8x512xf32>
    %3 = tpu.matmul %1, %2, %cst {dimension_numbers = #tpu.dot_dimension_numbers<[1], [0], [0], [1], [0, 0, 1, 1], [], []>} : vector<8x784xbf16>, vector<784x512xbf16>, vector<8x512xf32> -> vector<8x512xf32>
    %c0_3 = arith.constant 0 : index
    %c0_4 = arith.constant 0 : index
    %4 = vector.load %arg3[%c0_3, %c0_4] : memref<1x512xf32, #tpu.memory_space<vmem>>, vector<1x512xf32>
    %5 = vector.broadcast %4 : vector<1x512xf32> to vector<8x512xf32>
    %6 = arith.addf %3, %5 : vector<8x512xf32>
    %cst_5 = arith.constant 0.000000e+00 : f32
    %7 = vector.broadcast %cst_5 : f32 to vector<8x512xf32>
    %8 = arith.maximumf %6, %7 : vector<8x512xf32>
    %9 = arith.truncf %8 : vector<8x512xf32> to vector<8x512xbf16>
    %c0_6 = arith.constant 0 : index
    %c0_7 = arith.constant 0 : index
    %10 = vector.load %arg4[%c0_6, %c0_7] : memref<512x2xbf16, #tpu.memory_space<vmem>>, vector<512x2xbf16>
    %cst_8 = arith.constant dense<0.000000e+00> : vector<8x2xf32>
    %11 = tpu.matmul %9, %10, %cst_8 {dimension_numbers = #tpu.dot_dimension_numbers<[1], [0], [0], [1], [0, 0, 1, 1], [], []>} : vector<8x512xbf16>, vector<512x2xbf16>, vector<8x2xf32> -> vector<8x2xf32>
    %c0_9 = arith.constant 0 : index
    %c0_10 = arith.constant 0 : index
    %12 = vector.load %arg5[%c0_9, %c0_10] : memref<1x2xf32, #tpu.memory_space<vmem>>, vector<1x2xf32>
    %13 = vector.broadcast %12 : vector<1x2xf32> to vector<8x2xf32>
    %14 = arith.addf %11, %13 : vector<8x2xf32>
    %15 = vector.extract_strided_slice %14 {offsets = [0, 0], sizes = [8, 1], strides = [1, 1]} : vector<8x2xf32> to vector<8x1xf32>
    %c0_11 = arith.constant 0 : index
    %c0_12 = arith.constant 0 : index
    %16 = vector.load %arg6[%c0_11, %c0_12] : memref<2x512xf32, #tpu.memory_space<vmem>>, vector<1x512xf32>
    %17 = vector.broadcast %15 : vector<8x1xf32> to vector<8x512xf32>
    %18 = vector.broadcast %16 : vector<1x512xf32> to vector<8x512xf32>
    %19 = arith.mulf %17, %18 : vector<8x512xf32>
    %20 = vector.extract_strided_slice %14 {offsets = [0, 1], sizes = [8, 1], strides = [1, 1]} : vector<8x2xf32> to vector<8x1xf32>
    %c1 = arith.constant 1 : index
    %c0_13 = arith.constant 0 : index
    %21 = vector.load %arg6[%c1, %c0_13] : memref<2x512xf32, #tpu.memory_space<vmem>>, vector<1x512xf32>
    %22 = vector.broadcast %20 : vector<8x1xf32> to vector<8x512xf32>
    %23 = vector.broadcast %21 : vector<1x512xf32> to vector<8x512xf32>
    %24 = arith.mulf %22, %23 : vector<8x512xf32>
    %25 = arith.addf %19, %24 : vector<8x512xf32>
    %c0_14 = arith.constant 0 : index
    %c0_15 = arith.constant 0 : index
    %26 = vector.load %arg7[%c0_14, %c0_15] : memref<1x512xf32, #tpu.memory_space<vmem>>, vector<1x512xf32>
    %27 = vector.broadcast %26 : vector<1x512xf32> to vector<8x512xf32>
    %28 = arith.addf %25, %27 : vector<8x512xf32>
    %cst_16 = arith.constant 0.000000e+00 : f32
    %29 = vector.broadcast %cst_16 : f32 to vector<8x512xf32>
    %30 = arith.maximumf %28, %29 : vector<8x512xf32>
    %31 = arith.truncf %30 : vector<8x512xf32> to vector<8x512xbf16>
    %c0_17 = arith.constant 0 : index
    %c0_18 = arith.constant 0 : index
    %32 = vector.load %arg8[%c0_17, %c0_18] : memref<512x784xbf16, #tpu.memory_space<vmem>>, vector<512x784xbf16>
    %cst_19 = arith.constant dense<0.000000e+00> : vector<8x784xf32>
    %33 = tpu.matmul %31, %32, %cst_19 {dimension_numbers = #tpu.dot_dimension_numbers<[1], [0], [0], [1], [0, 0, 1, 1], [], []>} : vector<8x512xbf16>, vector<512x784xbf16>, vector<8x784xf32> -> vector<8x784xf32>
    %c0_20 = arith.constant 0 : index
    %c0_21 = arith.constant 0 : index
    %34 = vector.load %arg9[%c0_20, %c0_21] : memref<1x784xf32, #tpu.memory_space<vmem>>, vector<1x784xf32>
    %35 = vector.broadcast %34 : vector<1x784xf32> to vector<8x784xf32>
    %36 = arith.addf %33, %35 : vector<8x784xf32>
    %cst_22 = arith.constant 5.000000e-01 : f32
    %37 = vector.broadcast %cst_22 : f32 to vector<8x784xf32>
    %38 = arith.mulf %37, %36 : vector<8x784xf32>
    %39 = math.tanh %38 : vector<8x784xf32>
    %cst_23 = arith.constant 1.000000e+00 : f32
    %40 = vector.broadcast %cst_23 : f32 to vector<8x784xf32>
    %41 = arith.addf %39, %40 : vector<8x784xf32>
    %cst_24 = arith.constant 5.000000e-01 : f32
    %42 = vector.broadcast %cst_24 : f32 to vector<8x784xf32>
    %43 = arith.mulf %42, %41 : vector<8x784xf32>
    %c0_25 = arith.constant 0 : index
    %c0_26 = arith.constant 0 : index
    %44 = vector.load %arg10[%c0_25, %c0_26] : memref<8x784xf32, #tpu.memory_space<vmem>>, vector<8x784xf32>
    tpu.vector_store %arg10[%c0_25, %c0_26], %43 {strides = array<i32>} : memref<8x784xf32, #tpu.memory_space<vmem>>, vector<8x784xf32>,
    return
  }
  func.func @transform_0(%arg0: i32) -> (i32, i32) {
    %c0_i32 = arith.constant 0 : i32
    %c0_i32_0 = arith.constant 0 : i32
    return %arg0, %c0_i32 : i32, i32
  }
  func.func @transform_1(%arg0: i32) -> (i32, i32) {
    %c0_i32 = arith.constant 0 : i32
    %c0_i32_0 = arith.constant 0 : i32
    %c0_i32_1 = arith.constant 0 : i32
    return %c0_i32, %c0_i32_0 : i32, i32
  }
  func.func @transform_2(%arg0: i32) -> (i32, i32) {
    %c0_i32 = arith.constant 0 : i32
    %c0_i32_0 = arith.constant 0 : i32
    %c0_i32_1 = arith.constant 0 : i32
    return %c0_i32, %c0_i32_0 : i32, i32
  }
  func.func @transform_3(%arg0: i32) -> (i32, i32) {
    %c0_i32 = arith.constant 0 : i32
    %c0_i32_0 = arith.constant 0 : i32
    %c0_i32_1 = arith.constant 0 : i32
    return %c0_i32, %c0_i32_0 : i32, i32
  }
  func.func @transform_4(%arg0: i32) -> (i32, i32) {
    %c0_i32 = arith.constant 0 : i32
    %c0_i32_0 = arith.constant 0 : i32
    %c0_i32_1 = arith.constant 0 : i32
    return %c0_i32, %c0_i32_0 : i32, i32
  }
  func.func @transform_5(%arg0: i32) -> (i32, i32) {
    %c0_i32 = arith.constant 0 : i32
    %c0_i32_0 = arith.constant 0 : i32
    %c0_i32_1 = arith.constant 0 : i32
    return %c0_i32, %c0_i32_0 : i32, i32
  }
  func.func @transform_6(%arg0: i32) -> (i32, i32) {
    %c0_i32 = arith.constant 0 : i32
    %c0_i32_0 = arith.constant 0 : i32
    %c0_i32_1 = arith.constant 0 : i32
    return %c0_i32, %c0_i32_0 : i32, i32
  }
  func.func @transform_7(%arg0: i32) -> (i32, i32) {
    %c0_i32 = arith.constant 0 : i32
    %c0_i32_0 = arith.constant 0 : i32
    %c0_i32_1 = arith.constant 0 : i32
    return %c0_i32, %c0_i32_0 : i32, i32
  }
  func.func @transform_8(%arg0: i32) -> (i32, i32) {
    %c0_i32 = arith.constant 0 : i32
    %c0_i32_0 = arith.constant 0 : i32
    %c0_i32_1 = arith.constant 0 : i32
    return %c0_i32, %c0_i32_0 : i32, i32
  }
  func.func @transform_9(%arg0: i32) -> (i32, i32) {
    %c0_i32 = arith.constant 0 : i32
    %c0_i32_0 = arith.constant 0 : i32
    return %arg0, %c0_i32 : i32, i32
  }
}

</mosaic_0001>

<llo_original>
// kernel: autoencoder_forward.1
$region0: #{autoencoder_forward.1}
  #allocation0 [shape = 'u32[]', space=smem, size = 0x4, offset = 0x4, fixed_abs, tag = 'smem constant byte address 0x4 - core index']
  #allocation1 [shape = 'u32[144,128]{1,0:T(1,128)}', space=vmem, size = 0x12000, scoped, tag = 'internal scratch']
  %s0 = inlined_call_operand.vmem [shape: f32[4,784], index: 0, kind: input, shape index: {}]
  %s1 = inlined_call_operand.vmem [shape: bf16[784,512], index: 1, kind: input, shape index: {}]
  %s2 = inlined_call_operand.vmem [shape: f32[1,512], index: 2, kind: input, shape index: {}]
  %s3 = inlined_call_operand.vmem [shape: bf16[512,2], index: 3, kind: input, shape index: {}]
  %s4 = inlined_call_operand.vmem [shape: f32[1,2], index: 4, kind: input, shape index: {}]
  %s5 = inlined_call_operand.vmem [shape: f32[2,512], index: 5, kind: input, shape index: {}]
  %s6 = inlined_call_operand.vmem [shape: f32[1,512], index: 6, kind: input, shape index: {}]
  %s7 = inlined_call_operand.vmem [shape: bf16[512,784], index: 7, kind: input, shape index: {}]
  %s8 = inlined_call_operand.vmem [shape: f32[1,784], index: 8, kind: input, shape index: {}]
  %s9 = inlined_call_operand.vmem [shape: f32[4,784], index: 9, kind: output, shape index: {}]
  %s10 = sld [smem:[#allocation0]]
  $region68: #{autoencoder_forward.1} parent=0
    _
  %s12 = ssub.s32 1, %s10
  %s13 = scalar_select 0, %s12, %s10
  $region1: #{autoencoder_forward.1} parent=0
    #allocation2 [shape = 'u8[28672]{0}', space=vmem, size = 0x7000, scoped, tag = 'output window, operand 0, single buffered']
    // Predicated region
    $region2: #{autoencoder_forward.1} parent=1 // pred_check
      _
    $region3: #{autoencoder_forward.1} parent=1 // pred_check_branch
      %15 = sbr.rel (0) target = $region5
    $region4: #{autoencoder_forward.1} parent=1 // pred_region
      _
    $region5: #{autoencoder_forward.1} parent=1 // pred_fallthru
      _
    // Predicated region
    $region6: #{autoencoder_forward.1} parent=1 // pred_check
      _
    $region7: #{autoencoder_forward.1} parent=1 // pred_check_branch
      %17 = sbr.rel (0) target = $region9
    $region8: #{autoencoder_forward.1} parent=1 // pred_region
      _
    $region9: #{autoencoder_forward.1} parent=1 // pred_fallthru
      _
    // Predicated region
    $region10: #{autoencoder_forward.1} parent=1 // pred_check
      _
    $region11: #{autoencoder_forward.1} parent=1 // pred_check_branch
      %19 = sbr.rel (0) target = $region13
    $region12: #{autoencoder_forward.1} parent=1 // pred_region
      _
    $region13: #{autoencoder_forward.1} parent=1 // pred_fallthru
      _
    // Predicated region
    $region14: #{autoencoder_forward.1} parent=1 // pred_check
      _
    $region15: #{autoencoder_forward.1} parent=1 // pred_check_branch
      %21 = sbr.rel (0) target = $region17
    $region16: #{autoencoder_forward.1} parent=1 // pred_region
      _
    $region17: #{autoencoder_forward.1} parent=1 // pred_fallthru
      _
    // Predicated region
    $region18: #{autoencoder_forward.1} parent=1 // pred_check
      _
    $region19: #{autoencoder_forward.1} parent=1 // pred_check_branch
      %23 = sbr.rel (0) target = $region21
    $region20: #{autoencoder_forward.1} parent=1 // pred_region
      _
    $region21: #{autoencoder_forward.1} parent=1 // pred_fallthru
      _
    // Predicated region
    $region22: #{autoencoder_forward.1} parent=1 // pred_check
      _
    $region23: #{autoencoder_forward.1} parent=1 // pred_check_branch
      %25 = sbr.rel (0) target = $region25
    $region24: #{autoencoder_forward.1} parent=1 // pred_region
      _
    $region25: #{autoencoder_forward.1} parent=1 // pred_fallthru
      _
    // Predicated region
    $region26: #{autoencoder_forward.1} parent=1 // pred_check
      _
    $region27: #{autoencoder_forward.1} parent=1 // pred_check_branch
      %27 = sbr.rel (0) target = $region29
    $region28: #{autoencoder_forward.1} parent=1 // pred_region
      _
    $region29: #{autoencoder_forward.1} parent=1 // pred_fallthru
      _
    // Predicated region
    $region30: #{autoencoder_forward.1} parent=1 // pred_check
      _
    $region31: #{autoencoder_forward.1} parent=1 // pred_check_branch
      %29 = sbr.rel (0) target = $region33
    $region32: #{autoencoder_forward.1} parent=1 // pred_region
      _
    $region33: #{autoencoder_forward.1} parent=1 // pred_fallthru
      _
    // Predicated region
    $region34: #{autoencoder_forward.1} parent=1 // pred_check
      _
    $region35: #{autoencoder_forward.1} parent=1 // pred_check_branch
      %31 = sbr.rel (0) target = $region37
    $region36: #{autoencoder_forward.1} parent=1 // pred_region
      _
    $region37: #{autoencoder_forward.1} parent=1 // pred_fallthru
      _
    %v33 = vld [vmem:[%s0] sm:$0xff]
    %v34 = vld [vmem:[%s0 + $0x8] sm:$0xff]
    %v35 = vld [vmem:[%s0 + $0x10] sm:$0xff]
    %v36 = vld [vmem:[%s0 + $0x18] sm:$0xf]
    %v37 = vld [vmem:[%s0 + $0x1c] sm:$0xff]
    %v38 = vld [vmem:[%s0 + $0x24] sm:$0xff]
    %v39 = vld [vmem:[%s0 + $0x2c] sm:$0xff]
    %v40 = vld [vmem:[%s0 + $0x34] sm:$0xf]
    %v49 = vcombine.low %v33, %v37
    %v50 = vcombine.high %v33, %v37
    %v51 = vcombine.low %v34, %v38
    %v52 = vcombine.high %v34, %v38
    %v53 = vcombine.low %v35, %v39
    %v54 = vcombine.high %v35, %v39
    %v55 = vcombine.low %v36, %v40
    %v63 = vpack.c.bf16 %v49, %v49
    %v64 = vpack.c.bf16 %v50, %v50
    %v65 = vpack.c.bf16 %v51, %v51
    %v66 = vpack.c.bf16 %v52, %v52
    %v67 = vpack.c.bf16 %v53, %v53
    %v68 = vpack.c.bf16 %v54, %v54
    %v69 = vpack.c.bf16 %v55, %v55
    %v70 = vld [vmem:[%s1] sm:$0xff]
    %v71 = vld [vmem:[%s1 + $0x8] sm:$0xff]
    %v72 = vld [vmem:[%s1 + $0x10] sm:$0xff]
    %v73 = vld [vmem:[%s1 + $0x18] sm:$0xff]
    %v74 = vld [vmem:[%s1 + $0x20] sm:$0xff]
    %v75 = vld [vmem:[%s1 + $0x28] sm:$0xff]
    %v76 = vld [vmem:[%s1 + $0x30] sm:$0xff]
    %v77 = vld [vmem:[%s1 + $0x38] sm:$0xff]
    %v78 = vld [vmem:[%s1 + $0x40] sm:$0xff]
    %v79 = vld [vmem:[%s1 + $0x48] sm:$0xff]
    %v80 = vld [vmem:[%s1 + $0x50] sm:$0xff]
    %v81 = vld [vmem:[%s1 + $0x58] sm:$0xff]
    %v82 = vld [vmem:[%s1 + $0x60] sm:$0xff]
    %v83 = vld [vmem:[%s1 + $0x68] sm:$0xff]
    %v84 = vld [vmem:[%s1 + $0x70] sm:$0xff]
    %v85 = vld [vmem:[%s1 + $0x78] sm:$0xff]
    %v86 = vld [vmem:[%s1 + $0x80] sm:$0xff]
    %v87 = vld [vmem:[%s1 + $0x88] sm:$0xff]
    %v88 = vld [vmem:[%s1 + $0x90] sm:$0xff]
    %v89 = vld [vmem:[%s1 + $0x98] sm:$0xff]
    %v90 = vld [vmem:[%s1 + $0xa0] sm:$0xff]
    %v91 = vld [vmem:[%s1 + $0xa8] sm:$0xff]
    %v92 = vld [vmem:[%s1 + $0xb0] sm:$0xff]
    %v93 = vld [vmem:[%s1 + $0xb8] sm:$0xff]
    %v94 = vld [vmem:[%s1 + $0xc0] sm:$0xff]
    %v95 = vld [vmem:[%s1 + $0xc8] sm:$0xff]
    %v96 = vld [vmem:[%s1 + $0xd0] sm:$0xff]
    %v97 = vld [vmem:[%s1 + $0xd8] sm:$0xff]
    %v98 = vld [vmem:[%s1 + $0xe0] sm:$0xff]
    %v99 = vld [vmem:[%s1 + $0xe8] sm:$0xff]
    %v100 = vld [vmem:[%s1 + $0xf0] sm:$0xff]
    %v101 = vld [vmem:[%s1 + $0xf8] sm:$0xff]
    %v102 = vld [vmem:[%s1 + $0x100] sm:$0xff]
    %v103 = vld [vmem:[%s1 + $0x108] sm:$0xff]
    %v104 = vld [vmem:[%s1 + $0x110] sm:$0xff]
    %v105 = vld [vmem:[%s1 + $0x118] sm:$0xff]
    %v106 = vld [vmem:[%s1 + $0x120] sm:$0xff]
    %v107 = vld [vmem:[%s1 + $0x128] sm:$0xff]
    %v108 = vld [vmem:[%s1 + $0x130] sm:$0xff]
    %v109 = vld [vmem:[%s1 + $0x138] sm:$0xff]
    %v110 = vld [vmem:[%s1 + $0x140] sm:$0xff]
    %v111 = vld [vmem:[%s1 + $0x148] sm:$0xff]
    %v112 = vld [vmem:[%s1 + $0x150] sm:$0xff]
    %v113 = vld [vmem:[%s1 + $0x158] sm:$0xff]
    %v114 = vld [vmem:[%s1 + $0x160] sm:$0xff]
    %v115 = vld [vmem:[%s1 + $0x168] sm:$0xff]
    %v116 = vld [vmem:[%s1 + $0x170] sm:$0xff]
    %v117 = vld [vmem:[%s1 + $0x178] sm:$0xff]
    %v118 = vld [vmem:[%s1 + $0x180] sm:$0xff]
    %v119 = vld [vmem:[%s1 + $0x188] sm:$0xff]
    %v120 = vld [vmem:[%s1 + $0x190] sm:$0xff]
    %v121 = vld [vmem:[%s1 + $0x198] sm:$0xff]
    %v122 = vld [vmem:[%s1 + $0x1a0] sm:$0xff]
    %v123 = vld [vmem:[%s1 + $0x1a8] sm:$0xff]
    %v124 = vld [vmem:[%s1 + $0x1b0] sm:$0xff]
    %v125 = vld [vmem:[%s1 + $0x1b8] sm:$0xff]
    %v126 = vld [vmem:[%s1 + $0x1c0] sm:$0xff]
    %v127 = vld [vmem:[%s1 + $0x1c8] sm:$0xff]
    %v128 = vld [vmem:[%s1 + $0x1d0] sm:$0xff]
    %v129 = vld [vmem:[%s1 + $0x1d8] sm:$0xff]
    %v130 = vld [vmem:[%s1 + $0x1e0] sm:$0xff]
    %v131 = vld [vmem:[%s1 + $0x1e8] sm:$0xff]
    %v132 = vld [vmem:[%s1 + $0x1f0] sm:$0xff]
    %v133 = vld [vmem:[%s1 + $0x1f8] sm:$0xff]
    %v134 = vld [vmem:[%s1 + $0x200] sm:$0xff]
    %v135 = vld [vmem:[%s1 + $0x208] sm:$0xff]
    %v136 = vld [vmem:[%s1 + $0x210] sm:$0xff]
    %v137 = vld [vmem:[%s1 + $0x218] sm:$0xff]
    %v138 = vld [vmem:[%s1 + $0x220] sm:$0xff]
    %v139 = vld [vmem:[%s1 + $0x228] sm:$0xff]
    %v140 = vld [vmem:[%s1 + $0x230] sm:$0xff]
    %v141 = vld [vmem:[%s1 + $0x238] sm:$0xff]
    %v142 = vld [vmem:[%s1 + $0x240] sm:$0xff]
    %v143 = vld [vmem:[%s1 + $0x248] sm:$0xff]
    %v144 = vld [vmem:[%s1 + $0x250] sm:$0xff]
    %v145 = vld [vmem:[%s1 + $0x258] sm:$0xff]
    %v146 = vld [vmem:[%s1 + $0x260] sm:$0xff]
    %v147 = vld [vmem:[%s1 + $0x268] sm:$0xff]
    %v148 = vld [vmem:[%s1 + $0x270] sm:$0xff]
    %v149 = vld [vmem:[%s1 + $0x278] sm:$0xff]
    %v150 = vld [vmem:[%s1 + $0x280] sm:$0xff]
    %v151 = vld [vmem:[%s1 + $0x288] sm:$0xff]
    %v152 = vld [vmem:[%s1 + $0x290] sm:$0xff]
    %v153 = vld [vmem:[%s1 + $0x298] sm:$0xff]
    %v154 = vld [vmem:[%s1 + $0x2a0] sm:$0xff]
    %v155 = vld [vmem:[%s1 + $0x2a8] sm:$0xff]
    %v156 = vld [vmem:[%s1 + $0x2b0] sm:$0xff]
    %v157 = vld [vmem:[%s1 + $0x2b8] sm:$0xff]
    %v158 = vld [vmem:[%s1 + $0x2c0] sm:$0xff]
    %v159 = vld [vmem:[%s1 + $0x2c8] sm:$0xff]
    %v160 = vld [vmem:[%s1 + $0x2d0] sm:$0xff]
    %v161 = vld [vmem:[%s1 + $0x2d8] sm:$0xff]
    %v162 = vld [vmem:[%s1 + $0x2e0] sm:$0xff]
    %v163 = vld [vmem:[%s1 + $0x2e8] sm:$0xff]
    %v164 = vld [vmem:[%s1 + $0x2f0] sm:$0xff]
    %v165 = vld [vmem:[%s1 + $0x2f8] sm:$0xff]
    %v166 = vld [vmem:[%s1 + $0x300] sm:$0xff]
    %v167 = vld [vmem:[%s1 + $0x308] sm:$0xff]
    %v168 = vld [vmem:[%s1 + $0x310] sm:$0xff]
    %v169 = vld [vmem:[%s1 + $0x318] sm:$0xff]
    %v170 = vld [vmem:[%s1 + $0x320] sm:$0xff]
    %v171 = vld [vmem:[%s1 + $0x328] sm:$0xff]
    %v172 = vld [vmem:[%s1 + $0x330] sm:$0xff]
    %v173 = vld [vmem:[%s1 + $0x338] sm:$0xff]
    %v174 = vld [vmem:[%s1 + $0x340] sm:$0xff]
    %v175 = vld [vmem:[%s1 + $0x348] sm:$0xff]
    %v176 = vld [vmem:[%s1 + $0x350] sm:$0xff]
    %v177 = vld [vmem:[%s1 + $0x358] sm:$0xff]
    %v178 = vld [vmem:[%s1 + $0x360] sm:$0xff]
    %v179 = vld [vmem:[%s1 + $0x368] sm:$0xff]
    %v180 = vld [vmem:[%s1 + $0x370] sm:$0xff]
    %v181 = vld [vmem:[%s1 + $0x378] sm:$0xff]
    %v182 = vld [vmem:[%s1 + $0x380] sm:$0xff]
    %v183 = vld [vmem:[%s1 + $0x388] sm:$0xff]
    %v184 = vld [vmem:[%s1 + $0x390] sm:$0xff]
    %v185 = vld [vmem:[%s1 + $0x398] sm:$0xff]
    %v186 = vld [vmem:[%s1 + $0x3a0] sm:$0xff]
    %v187 = vld [vmem:[%s1 + $0x3a8] sm:$0xff]
    %v188 = vld [vmem:[%s1 + $0x3b0] sm:$0xff]
    %v189 = vld [vmem:[%s1 + $0x3b8] sm:$0xff]
    %v190 = vld [vmem:[%s1 + $0x3c0] sm:$0xff]
    %v191 = vld [vmem:[%s1 + $0x3c8] sm:$0xff]
    %v192 = vld [vmem:[%s1 + $0x3d0] sm:$0xff]
    %v193 = vld [vmem:[%s1 + $0x3d8] sm:$0xff]
    %v194 = vld [vmem:[%s1 + $0x3e0] sm:$0xff]
    %v195 = vld [vmem:[%s1 + $0x3e8] sm:$0xff]
    %v196 = vld [vmem:[%s1 + $0x3f0] sm:$0xff]
    %v197 = vld [vmem:[%s1 + $0x3f8] sm:$0xff]
    %v198 = vld [vmem:[%s1 + $0x400] sm:$0xff]
    %v199 = vld [vmem:[%s1 + $0x408] sm:$0xff]
    %v200 = vld [vmem:[%s1 + $0x410] sm:$0xff]
    %v201 = vld [vmem:[%s1 + $0x418] sm:$0xff]
    %v202 = vld [vmem:[%s1 + $0x420] sm:$0xff]
    %v203 = vld [vmem:[%s1 + $0x428] sm:$0xff]
    %v204 = vld [vmem:[%s1 + $0x430] sm:$0xff]
    %v205 = vld [vmem:[%s1 + $0x438] sm:$0xff]
    %v206 = vld [vmem:[%s1 + $0x440] sm:$0xff]
    %v207 = vld [vmem:[%s1 + $0x448] sm:$0xff]
    %v208 = vld [vmem:[%s1 + $0x450] sm:$0xff]
    %v209 = vld [vmem:[%s1 + $0x458] sm:$0xff]
    %v210 = vld [vmem:[%s1 + $0x460] sm:$0xff]
    %v211 = vld [vmem:[%s1 + $0x468] sm:$0xff]
    %v212 = vld [vmem:[%s1 + $0x470] sm:$0xff]
    %v213 = vld [vmem:[%s1 + $0x478] sm:$0xff]
    %v214 = vld [vmem:[%s1 + $0x480] sm:$0xff]
    %v215 = vld [vmem:[%s1 + $0x488] sm:$0xff]
    %v216 = vld [vmem:[%s1 + $0x490] sm:$0xff]
    %v217 = vld [vmem:[%s1 + $0x498] sm:$0xff]
    %v218 = vld [vmem:[%s1 + $0x4a0] sm:$0xff]
    %v219 = vld [vmem:[%s1 + $0x4a8] sm:$0xff]
    %v220 = vld [vmem:[%s1 + $0x4b0] sm:$0xff]
    %v221 = vld [vmem:[%s1 + $0x4b8] sm:$0xff]
    %v222 = vld [vmem:[%s1 + $0x4c0] sm:$0xff]
    %v223 = vld [vmem:[%s1 + $0x4c8] sm:$0xff]
    %v224 = vld [vmem:[%s1 + $0x4d0] sm:$0xff]
    %v225 = vld [vmem:[%s1 + $0x4d8] sm:$0xff]
    %v226 = vld [vmem:[%s1 + $0x4e0] sm:$0xff]
    %v227 = vld [vmem:[%s1 + $0x4e8] sm:$0xff]
    %v228 = vld [vmem:[%s1 + $0x4f0] sm:$0xff]
    %v229 = vld [vmem:[%s1 + $0x4f8] sm:$0xff]
    %v230 = vld [vmem:[%s1 + $0x500] sm:$0xff]
    %v231 = vld [vmem:[%s1 + $0x508] sm:$0xff]
    %v232 = vld [vmem:[%s1 + $0x510] sm:$0xff]
    %v233 = vld [vmem:[%s1 + $0x518] sm:$0xff]
    %v234 = vld [vmem:[%s1 + $0x520] sm:$0xff]
    %v235 = vld [vmem:[%s1 + $0x528] sm:$0xff]
    %v236 = vld [vmem:[%s1 + $0x530] sm:$0xff]
    %v237 = vld [vmem:[%s1 + $0x538] sm:$0xff]
    %v238 = vld [vmem:[%s1 + $0x540] sm:$0xff]
    %v239 = vld [vmem:[%s1 + $0x548] sm:$0xff]
    %v240 = vld [vmem:[%s1 + $0x550] sm:$0xff]
    %v241 = vld [vmem:[%s1 + $0x558] sm:$0xff]
    %v242 = vld [vmem:[%s1 + $0x560] sm:$0xff]
    %v243 = vld [vmem:[%s1 + $0x568] sm:$0xff]
    %v244 = vld [vmem:[%s1 + $0x570] sm:$0xff]
    %v245 = vld [vmem:[%s1 + $0x578] sm:$0xff]
    %v246 = vld [vmem:[%s1 + $0x580] sm:$0xff]
    %v247 = vld [vmem:[%s1 + $0x588] sm:$0xff]
    %v248 = vld [vmem:[%s1 + $0x590] sm:$0xff]
    %v249 = vld [vmem:[%s1 + $0x598] sm:$0xff]
    %v250 = vld [vmem:[%s1 + $0x5a0] sm:$0xff]
    %v251 = vld [vmem:[%s1 + $0x5a8] sm:$0xff]
    %v252 = vld [vmem:[%s1 + $0x5b0] sm:$0xff]
    %v253 = vld [vmem:[%s1 + $0x5b8] sm:$0xff]
    %v254 = vld [vmem:[%s1 + $0x5c0] sm:$0xff]
    %v255 = vld [vmem:[%s1 + $0x5c8] sm:$0xff]
    %v256 = vld [vmem:[%s1 + $0x5d0] sm:$0xff]
    %v257 = vld [vmem:[%s1 + $0x5d8] sm:$0xff]
    %v258 = vld [vmem:[%s1 + $0x5e0] sm:$0xff]
    %v259 = vld [vmem:[%s1 + $0x5e8] sm:$0xff]
    %v260 = vld [vmem:[%s1 + $0x5f0] sm:$0xff]
    %v261 = vld [vmem:[%s1 + $0x5f8] sm:$0xff]
    %v262 = vld [vmem:[%s1 + $0x600] sm:$0xff]
    %v263 = vld [vmem:[%s1 + $0x608] sm:$0xff]
    %v264 = vld [vmem:[%s1 + $0x610] sm:$0xff]
    %v265 = vld [vmem:[%s1 + $0x618] sm:$0xff]
    %v266 = vld [vmem:[%s2] sm:$0xf]
    %v268 = vlaneseq
    %v269 = vshrl.u32 %v268, 7
    %v270 = vsub.s32 0, %v269
    %v271 = vrot.slane %v266, %v270
    %v272 = vlaneseq
    %v273 = vshrl.u32 %v272, 7
    %v274 = vsub.s32 1, %v273
    %v275 = vrot.slane %v266, %v274
    %v276 = vlaneseq
    %v277 = vshrl.u32 %v276, 7
    %v278 = vsub.s32 2, %v277
    %v279 = vrot.slane %v266, %v278
    %v280 = vlaneseq
    %v281 = vshrl.u32 %v280, 7
    %v282 = vsub.s32 3, %v281
    %v283 = vrot.slane %v266, %v282
    %v484 = vunpack.c.l.b16 %v70
    %v485 = vunpack.c.h.b16 %v70
    %v486 = vunpack.c.l.b16 %v71
    %v487 = vunpack.c.h.b16 %v71
    %v488 = vunpack.c.l.b16 %v72
    %v489 = vunpack.c.h.b16 %v72
    %v490 = vunpack.c.l.b16 %v73
    %v491 = vunpack.c.h.b16 %v73
    %v492 = vunpack.c.l.b16 %v74
    %v493 = vunpack.c.h.b16 %v74
    %v494 = vunpack.c.l.b16 %v75
    %v495 = vunpack.c.h.b16 %v75
    %v496 = vunpack.c.l.b16 %v76
    %v497 = vunpack.c.h.b16 %v76
    %v498 = vunpack.c.l.b16 %v77
    %v499 = vunpack.c.h.b16 %v77
    %v500 = vunpack.c.l.b16 %v78
    %v501 = vunpack.c.h.b16 %v78
    %v502 = vunpack.c.l.b16 %v79
    %v503 = vunpack.c.h.b16 %v79
    %v504 = vunpack.c.l.b16 %v80
    %v505 = vunpack.c.h.b16 %v80
    %v506 = vunpack.c.l.b16 %v81
    %v507 = vunpack.c.h.b16 %v81
    %v508 = vunpack.c.l.b16 %v82
    %v509 = vunpack.c.h.b16 %v82
    %v510 = vunpack.c.l.b16 %v83
    %v511 = vunpack.c.h.b16 %v83
    %v512 = vunpack.c.l.b16 %v84
    %v513 = vunpack.c.h.b16 %v84
    %v514 = vunpack.c.l.b16 %v85
    %v515 = vunpack.c.h.b16 %v85
    %v516 = vunpack.c.l.b16 %v86
    %v517 = vunpack.c.h.b16 %v86
    %v518 = vunpack.c.l.b16 %v87
    %v519 = vunpack.c.h.b16 %v87
    %v520 = vunpack.c.l.b16 %v88
    %v521 = vunpack.c.h.b16 %v88
    %v522 = vunpack.c.l.b16 %v89
    %v523 = vunpack.c.h.b16 %v89
    %v524 = vunpack.c.l.b16 %v90
    %v525 = vunpack.c.h.b16 %v90
    %v526 = vunpack.c.l.b16 %v91
    %v527 = vunpack.c.h.b16 %v91
    %v528 = vunpack.c.l.b16 %v92
    %v529 = vunpack.c.h.b16 %v92
    %v530 = vunpack.c.l.b16 %v93
    %v531 = vunpack.c.h.b16 %v93
    %v532 = vunpack.c.l.b16 %v94
    %v533 = vunpack.c.h.b16 %v94
    %v534 = vunpack.c.l.b16 %v95
    %v535 = vunpack.c.h.b16 %v95
    %v536 = vunpack.c.l.b16 %v96
    %v537 = vunpack.c.h.b16 %v96
    %v538 = vunpack.c.l.b16 %v97
    %v539 = vunpack.c.h.b16 %v97
    %v540 = vunpack.c.l.b16 %v98
    %v541 = vunpack.c.h.b16 %v98
    %v542 = vunpack.c.l.b16 %v99
    %v543 = vunpack.c.h.b16 %v99
    %v544 = vunpack.c.l.b16 %v100
    %v545 = vunpack.c.h.b16 %v100
    %v546 = vunpack.c.l.b16 %v101
    %v547 = vunpack.c.h.b16 %v101
    %v548 = vunpack.c.l.b16 %v102
    %v549 = vunpack.c.h.b16 %v102
    %v550 = vunpack.c.l.b16 %v103
    %v551 = vunpack.c.h.b16 %v103
    %v552 = vunpack.c.l.b16 %v104
    %v553 = vunpack.c.h.b16 %v104
    %v554 = vunpack.c.l.b16 %v105
    %v555 = vunpack.c.h.b16 %v105
    %v556 = vunpack.c.l.b16 %v106
    %v557 = vunpack.c.h.b16 %v106
    %v558 = vunpack.c.l.b16 %v107
    %v559 = vunpack.c.h.b16 %v107
    %v560 = vunpack.c.l.b16 %v108
    %v561 = vunpack.c.h.b16 %v108
    %v562 = vunpack.c.l.b16 %v109
    %v563 = vunpack.c.h.b16 %v109
    %v564 = vunpack.c.l.b16 %v110
    %v565 = vunpack.c.h.b16 %v110
    %v566 = vunpack.c.l.b16 %v111
    %v567 = vunpack.c.h.b16 %v111
    %v568 = vunpack.c.l.b16 %v112
    %v569 = vunpack.c.h.b16 %v112
    %v570 = vunpack.c.l.b16 %v113
    %v571 = vunpack.c.h.b16 %v113
    %v572 = vunpack.c.l.b16 %v114
    %v573 = vunpack.c.h.b16 %v114
    %v574 = vunpack.c.l.b16 %v115
    %v575 = vunpack.c.h.b16 %v115
    %v576 = vunpack.c.l.b16 %v116
    %v577 = vunpack.c.h.b16 %v116
    %v578 = vunpack.c.l.b16 %v117
    %v579 = vunpack.c.h.b16 %v117
    %v580 = vunpack.c.l.b16 %v118
    %v581 = vunpack.c.h.b16 %v118
    %v582 = vunpack.c.l.b16 %v119
    %v583 = vunpack.c.h.b16 %v119
    %v584 = vunpack.c.l.b16 %v120
    %v585 = vunpack.c.h.b16 %v120
    %v586 = vunpack.c.l.b16 %v121
    %v587 = vunpack.c.h.b16 %v121
    %v588 = vunpack.c.l.b16 %v122
    %v589 = vunpack.c.h.b16 %v122
    %v590 = vunpack.c.l.b16 %v123
    %v591 = vunpack.c.h.b16 %v123
    %v592 = vunpack.c.l.b16 %v124
    %v593 = vunpack.c.h.b16 %v124
    %v594 = vunpack.c.l.b16 %v125
    %v595 = vunpack.c.h.b16 %v125
    %v596 = vunpack.c.l.b16 %v126
    %v597 = vunpack.c.h.b16 %v126
    %v598 = vunpack.c.l.b16 %v127
    %v599 = vunpack.c.h.b16 %v127
    %v600 = vunpack.c.l.b16 %v128
    %v601 = vunpack.c.h.b16 %v128
    %v602 = vunpack.c.l.b16 %v129
    %v603 = vunpack.c.h.b16 %v129
    %v604 = vunpack.c.l.b16 %v130
    %v605 = vunpack.c.h.b16 %v130
    %v606 = vunpack.c.l.b16 %v131
    %v607 = vunpack.c.h.b16 %v131
    %v608 = vunpack.c.l.b16 %v132
    %v609 = vunpack.c.h.b16 %v132
    %v610 = vunpack.c.l.b16 %v133
    %v611 = vunpack.c.h.b16 %v133
    %v612 = vunpack.c.l.b16 %v134
    %v613 = vunpack.c.h.b16 %v134
    %v614 = vunpack.c.l.b16 %v135
    %v615 = vunpack.c.h.b16 %v135
    %v616 = vunpack.c.l.b16 %v136
    %v617 = vunpack.c.h.b16 %v136
    %v618 = vunpack.c.l.b16 %v137
    %v619 = vunpack.c.h.b16 %v137
    %v620 = vunpack.c.l.b16 %v138
    %v621 = vunpack.c.h.b16 %v138
    %v622 = vunpack.c.l.b16 %v139
    %v623 = vunpack.c.h.b16 %v139
    %v624 = vunpack.c.l.b16 %v140
    %v625 = vunpack.c.h.b16 %v140
    %v626 = vunpack.c.l.b16 %v141
    %v627 = vunpack.c.h.b16 %v141
    %v628 = vunpack.c.l.b16 %v142
    %v629 = vunpack.c.h.b16 %v142
    %v630 = vunpack.c.l.b16 %v143
    %v631 = vunpack.c.h.b16 %v143
    %v632 = vunpack.c.l.b16 %v144
    %v633 = vunpack.c.h.b16 %v144
    %v634 = vunpack.c.l.b16 %v145
    %v635 = vunpack.c.h.b16 %v145
    %v636 = vunpack.c.l.b16 %v146
    %v637 = vunpack.c.h.b16 %v146
    %v638 = vunpack.c.l.b16 %v147
    %v639 = vunpack.c.h.b16 %v147
    %v640 = vunpack.c.l.b16 %v148
    %v641 = vunpack.c.h.b16 %v148
    %v642 = vunpack.c.l.b16 %v149
    %v643 = vunpack.c.h.b16 %v149
    %v644 = vunpack.c.l.b16 %v150
    %v645 = vunpack.c.h.b16 %v150
    %v646 = vunpack.c.l.b16 %v151
    %v647 = vunpack.c.h.b16 %v151
    %v648 = vunpack.c.l.b16 %v152
    %v649 = vunpack.c.h.b16 %v152
    %v650 = vunpack.c.l.b16 %v153
    %v651 = vunpack.c.h.b16 %v153
    %v652 = vunpack.c.l.b16 %v154
    %v653 = vunpack.c.h.b16 %v154
    %v654 = vunpack.c.l.b16 %v155
    %v655 = vunpack.c.h.b16 %v155
    %v656 = vunpack.c.l.b16 %v156
    %v657 = vunpack.c.h.b16 %v156
    %v658 = vunpack.c.l.b16 %v157
    %v659 = vunpack.c.h.b16 %v157
    %v660 = vunpack.c.l.b16 %v158
    %v661 = vunpack.c.h.b16 %v158
    %v662 = vunpack.c.l.b16 %v159
    %v663 = vunpack.c.h.b16 %v159
    %v664 = vunpack.c.l.b16 %v160
    %v665 = vunpack.c.h.b16 %v160
    %v666 = vunpack.c.l.b16 %v161
    %v667 = vunpack.c.h.b16 %v161
    %v668 = vunpack.c.l.b16 %v162
    %v669 = vunpack.c.h.b16 %v162
    %v670 = vunpack.c.l.b16 %v163
    %v671 = vunpack.c.h.b16 %v163
    %v672 = vunpack.c.l.b16 %v164
    %v673 = vunpack.c.h.b16 %v164
    %v674 = vunpack.c.l.b16 %v165
    %v675 = vunpack.c.h.b16 %v165
    %v676 = vunpack.c.l.b16 %v166
    %v677 = vunpack.c.h.b16 %v166
    %v678 = vunpack.c.l.b16 %v167
    %v679 = vunpack.c.h.b16 %v167
    %v680 = vunpack.c.l.b16 %v168
    %v681 = vunpack.c.h.b16 %v168
    %v682 = vunpack.c.l.b16 %v169
    %v683 = vunpack.c.h.b16 %v169
    %v684 = vunpack.c.l.b16 %v170
    %v685 = vunpack.c.h.b16 %v170
    %v686 = vunpack.c.l.b16 %v171
    %v687 = vunpack.c.h.b16 %v171
    %v688 = vunpack.c.l.b16 %v172
    %v689 = vunpack.c.h.b16 %v172
    %v690 = vunpack.c.l.b16 %v173
    %v691 = vunpack.c.h.b16 %v173
    %v692 = vunpack.c.l.b16 %v174
    %v693 = vunpack.c.h.b16 %v174
    %v694 = vunpack.c.l.b16 %v175
    %v695 = vunpack.c.h.b16 %v175
    %v696 = vunpack.c.l.b16 %v176
    %v697 = vunpack.c.h.b16 %v176
    %v698 = vunpack.c.l.b16 %v177
    %v699 = vunpack.c.h.b16 %v177
    %v700 = vunpack.c.l.b16 %v178
    %v701 = vunpack.c.h.b16 %v178
    %v702 = vunpack.c.l.b16 %v179
    %v703 = vunpack.c.h.b16 %v179
    %v704 = vunpack.c.l.b16 %v180
    %v705 = vunpack.c.h.b16 %v180
    %v706 = vunpack.c.l.b16 %v181
    %v707 = vunpack.c.h.b16 %v181
    %v708 = vunpack.c.l.b16 %v182
    %v709 = vunpack.c.h.b16 %v182
    %v710 = vunpack.c.l.b16 %v183
    %v711 = vunpack.c.h.b16 %v183
    %v712 = vunpack.c.l.b16 %v184
    %v713 = vunpack.c.h.b16 %v184
    %v714 = vunpack.c.l.b16 %v185
    %v715 = vunpack.c.h.b16 %v185
    %v716 = vunpack.c.l.b16 %v186
    %v717 = vunpack.c.h.b16 %v186
    %v718 = vunpack.c.l.b16 %v187
    %v719 = vunpack.c.h.b16 %v187
    %v720 = vunpack.c.l.b16 %v188
    %v721 = vunpack.c.h.b16 %v188
    %v722 = vunpack.c.l.b16 %v189
    %v723 = vunpack.c.h.b16 %v189
    %v724 = vunpack.c.l.b16 %v190
    %v725 = vunpack.c.h.b16 %v190
    %v726 = vunpack.c.l.b16 %v191
    %v727 = vunpack.c.h.b16 %v191
    %v728 = vunpack.c.l.b16 %v192
    %v729 = vunpack.c.h.b16 %v192
    %v730 = vunpack.c.l.b16 %v193
    %v731 = vunpack.c.h.b16 %v193
    %v732 = vunpack.c.l.b16 %v194
    %v733 = vunpack.c.h.b16 %v194
    %v734 = vunpack.c.l.b16 %v195
    %v735 = vunpack.c.h.b16 %v195
    %v736 = vunpack.c.l.b16 %v196
    %v737 = vunpack.c.h.b16 %v196
    %v738 = vunpack.c.l.b16 %v197
    %v739 = vunpack.c.h.b16 %v197
    %v740 = vunpack.c.l.b16 %v198
    %v741 = vunpack.c.h.b16 %v198
    %v742 = vunpack.c.l.b16 %v199
    %v743 = vunpack.c.h.b16 %v199
    %v744 = vunpack.c.l.b16 %v200
    %v745 = vunpack.c.h.b16 %v200
    %v746 = vunpack.c.l.b16 %v201
    %v747 = vunpack.c.h.b16 %v201
    %v748 = vunpack.c.l.b16 %v202
    %v749 = vunpack.c.h.b16 %v202
    %v750 = vunpack.c.l.b16 %v203
    %v751 = vunpack.c.h.b16 %v203
    %v752 = vunpack.c.l.b16 %v204
    %v753 = vunpack.c.h.b16 %v204
    %v754 = vunpack.c.l.b16 %v205
    %v755 = vunpack.c.h.b16 %v205
    %v756 = vunpack.c.l.b16 %v206
    %v757 = vunpack.c.h.b16 %v206
    %v758 = vunpack.c.l.b16 %v207
    %v759 = vunpack.c.h.b16 %v207
    %v760 = vunpack.c.l.b16 %v208
    %v761 = vunpack.c.h.b16 %v208
    %v762 = vunpack.c.l.b16 %v209
    %v763 = vunpack.c.h.b16 %v209
    %v764 = vunpack.c.l.b16 %v210
    %v765 = vunpack.c.h.b16 %v210
    %v766 = vunpack.c.l.b16 %v211
    %v767 = vunpack.c.h.b16 %v211
    %v768 = vunpack.c.l.b16 %v212
    %v769 = vunpack.c.h.b16 %v212
    %v770 = vunpack.c.l.b16 %v213
    %v771 = vunpack.c.h.b16 %v213
    %v772 = vunpack.c.l.b16 %v214
    %v773 = vunpack.c.h.b16 %v214
    %v774 = vunpack.c.l.b16 %v215
    %v775 = vunpack.c.h.b16 %v215
    %v776 = vunpack.c.l.b16 %v216
    %v777 = vunpack.c.h.b16 %v216
    %v778 = vunpack.c.l.b16 %v217
    %v779 = vunpack.c.h.b16 %v217
    %v780 = vunpack.c.l.b16 %v218
    %v781 = vunpack.c.h.b16 %v218
    %v782 = vunpack.c.l.b16 %v219
    %v783 = vunpack.c.h.b16 %v219
    %v784 = vunpack.c.l.b16 %v220
    %v785 = vunpack.c.h.b16 %v220
    %v786 = vunpack.c.l.b16 %v221
    %v787 = vunpack.c.h.b16 %v221
    %v788 = vunpack.c.l.b16 %v222
    %v789 = vunpack.c.h.b16 %v222
    %v790 = vunpack.c.l.b16 %v223
    %v791 = vunpack.c.h.b16 %v223
    %v792 = vunpack.c.l.b16 %v224
    %v793 = vunpack.c.h.b16 %v224
    %v794 = vunpack.c.l.b16 %v225
    %v795 = vunpack.c.h.b16 %v225
    %v796 = vunpack.c.l.b16 %v226
    %v797 = vunpack.c.h.b16 %v226
    %v798 = vunpack.c.l.b16 %v227
    %v799 = vunpack.c.h.b16 %v227
    %v800 = vunpack.c.l.b16 %v228
    %v801 = vunpack.c.h.b16 %v228
    %v802 = vunpack.c.l.b16 %v229
    %v803 = vunpack.c.h.b16 %v229
    %v804 = vunpack.c.l.b16 %v230
    %v805 = vunpack.c.h.b16 %v230
    %v806 = vunpack.c.l.b16 %v231
    %v807 = vunpack.c.h.b16 %v231
    %v808 = vunpack.c.l.b16 %v232
    %v809 = vunpack.c.h.b16 %v232
    %v810 = vunpack.c.l.b16 %v233
    %v811 = vunpack.c.h.b16 %v233
    %v812 = vunpack.c.l.b16 %v234
    %v813 = vunpack.c.h.b16 %v234
    %v814 = vunpack.c.l.b16 %v235
    %v815 = vunpack.c.h.b16 %v235
    %v816 = vunpack.c.l.b16 %v236
    %v817 = vunpack.c.h.b16 %v236
    %v818 = vunpack.c.l.b16 %v237
    %v819 = vunpack.c.h.b16 %v237
    %v820 = vunpack.c.l.b16 %v238
    %v821 = vunpack.c.h.b16 %v238
    %v822 = vunpack.c.l.b16 %v239
    %v823 = vunpack.c.h.b16 %v239
    %v824 = vunpack.c.l.b16 %v240
    %v825 = vunpack.c.h.b16 %v240
    %v826 = vunpack.c.l.b16 %v241
    %v827 = vunpack.c.h.b16 %v241
    %v828 = vunpack.c.l.b16 %v242
    %v829 = vunpack.c.h.b16 %v242
    %v830 = vunpack.c.l.b16 %v243
    %v831 = vunpack.c.h.b16 %v243
    %v832 = vunpack.c.l.b16 %v244
    %v833 = vunpack.c.h.b16 %v244
    %v834 = vunpack.c.l.b16 %v245
    %v835 = vunpack.c.h.b16 %v245
    %v836 = vunpack.c.l.b16 %v246
    %v837 = vunpack.c.h.b16 %v246
    %v838 = vunpack.c.l.b16 %v247
    %v839 = vunpack.c.h.b16 %v247
    %v840 = vunpack.c.l.b16 %v248
    %v841 = vunpack.c.h.b16 %v248
    %v842 = vunpack.c.l.b16 %v249
    %v843 = vunpack.c.h.b16 %v249
    %v844 = vunpack.c.l.b16 %v250
    %v845 = vunpack.c.h.b16 %v250
    %v846 = vunpack.c.l.b16 %v251
    %v847 = vunpack.c.h.b16 %v251
    %v848 = vunpack.c.l.b16 %v252
    %v849 = vunpack.c.h.b16 %v252
    %v850 = vunpack.c.l.b16 %v253
    %v851 = vunpack.c.h.b16 %v253
    %v852 = vunpack.c.l.b16 %v254
    %v853 = vunpack.c.h.b16 %v254
    %v854 = vunpack.c.l.b16 %v255
    %v855 = vunpack.c.h.b16 %v255
    %v856 = vunpack.c.l.b16 %v256
    %v857 = vunpack.c.h.b16 %v256
    %v858 = vunpack.c.l.b16 %v257
    %v859 = vunpack.c.h.b16 %v257
    %v860 = vunpack.c.l.b16 %v258
    %v861 = vunpack.c.h.b16 %v258
    %v862 = vunpack.c.l.b16 %v259
    %v863 = vunpack.c.h.b16 %v259
    %v864 = vunpack.c.l.b16 %v260
    %v865 = vunpack.c.h.b16 %v260
    %v866 = vunpack.c.l.b16 %v261
    %v867 = vunpack.c.h.b16 %v261
    %v868 = vunpack.c.l.b16 %v262
    %v869 = vunpack.c.h.b16 %v262
    %v870 = vunpack.c.l.b16 %v263
    %v871 = vunpack.c.h.b16 %v263
    %v872 = vunpack.c.l.b16 %v264
    %v873 = vunpack.c.h.b16 %v264
    %v874 = vunpack.c.l.b16 %v265
    %v875 = vunpack.c.h.b16 %v265
    %v876 = vpack.c.b16 %v488, %v484
    %v877 = vpack.c.b16 %v489, %v485
    %v878 = vpack.c.b16 %v490, %v486
    %v879 = vpack.c.b16 %v491, %v487
    %v880 = vpack.c.b16 %v496, %v492
    %v881 = vpack.c.b16 %v497, %v493
    %v882 = vpack.c.b16 %v498, %v494
    %v883 = vpack.c.b16 %v499, %v495
    %v884 = vpack.c.b16 %v504, %v500
    %v885 = vpack.c.b16 %v505, %v501
    %v886 = vpack.c.b16 %v506, %v502
    %v887 = vpack.c.b16 %v507, %v503
    %v888 = vpack.c.b16 %v512, %v508
    %v889 = vpack.c.b16 %v513, %v509
    %v890 = vpack.c.b16 %v514, %v510
    %v891 = vpack.c.b16 %v515, %v511
    %v892 = vpack.c.b16 %v520, %v516
    %v893 = vpack.c.b16 %v521, %v517
    %v894 = vpack.c.b16 %v522, %v518
    %v895 = vpack.c.b16 %v523, %v519
    %v896 = vpack.c.b16 %v528, %v524
    %v897 = vpack.c.b16 %v529, %v525
    %v898 = vpack.c.b16 %v530, %v526
    %v899 = vpack.c.b16 %v531, %v527
    %v900 = vpack.c.b16 %v536, %v532
    %v901 = vpack.c.b16 %v537, %v533
    %v902 = vpack.c.b16 %v538, %v534
    %v903 = vpack.c.b16 %v539, %v535
    %v904 = vpack.c.b16 %v544, %v540
    %v905 = vpack.c.b16 %v545, %v541
    %v906 = vpack.c.b16 %v546, %v542
    %v907 = vpack.c.b16 %v547, %v543
    %v908 = vpack.c.b16 %v552, %v548
    %v909 = vpack.c.b16 %v553, %v549
    %v910 = vpack.c.b16 %v554, %v550
    %v911 = vpack.c.b16 %v555, %v551
    %v912 = vpack.c.b16 %v560, %v556
    %v913 = vpack.c.b16 %v561, %v557
    %v914 = vpack.c.b16 %v562, %v558
    %v915 = vpack.c.b16 %v563, %v559
    %v916 = vpack.c.b16 %v568, %v564
    %v917 = vpack.c.b16 %v569, %v565
    %v918 = vpack.c.b16 %v570, %v566
    %v919 = vpack.c.b16 %v571, %v567
    %v920 = vpack.c.b16 %v576, %v572
    %v921 = vpack.c.b16 %v577, %v573
    %v922 = vpack.c.b16 %v578, %v574
    %v923 = vpack.c.b16 %v579, %v575
    %v924 = vpack.c.b16 %v584, %v580
    %v925 = vpack.c.b16 %v585, %v581
    %v926 = vpack.c.b16 %v586, %v582
    %v927 = vpack.c.b16 %v587, %v583
    %v928 = vpack.c.b16 %v592, %v588
    %v929 = vpack.c.b16 %v593, %v589
    %v930 = vpack.c.b16 %v594, %v590
    %v931 = vpack.c.b16 %v595, %v591
    %v932 = vpack.c.b16 %v600, %v596
    %v933 = vpack.c.b16 %v601, %v597
    %v934 = vpack.c.b16 %v602, %v598
    %v935 = vpack.c.b16 %v603, %v599
    %v936 = vpack.c.b16 %v608, %v604
    %v937 = vpack.c.b16 %v609, %v605
    %v938 = vpack.c.b16 %v610, %v606
    %v939 = vpack.c.b16 %v611, %v607
    %v940 = vpack.c.b16 %v616, %v612
    %v941 = vpack.c.b16 %v617, %v613
    %v942 = vpack.c.b16 %v618, %v614
    %v943 = vpack.c.b16 %v619, %v615
    %v944 = vpack.c.b16 %v624, %v620
    %v945 = vpack.c.b16 %v625, %v621
    %v946 = vpack.c.b16 %v626, %v622
    %v947 = vpack.c.b16 %v627, %v623
    %v948 = vpack.c.b16 %v632, %v628
    %v949 = vpack.c.b16 %v633, %v629
    %v950 = vpack.c.b16 %v634, %v630
    %v951 = vpack.c.b16 %v635, %v631
    %v952 = vpack.c.b16 %v640, %v636
    %v953 = vpack.c.b16 %v641, %v637
    %v954 = vpack.c.b16 %v642, %v638
    %v955 = vpack.c.b16 %v643, %v639
    %v956 = vpack.c.b16 %v648, %v644
    %v957 = vpack.c.b16 %v649, %v645
    %v958 = vpack.c.b16 %v650, %v646
    %v959 = vpack.c.b16 %v651, %v647
    %v960 = vpack.c.b16 %v656, %v652
    %v961 = vpack.c.b16 %v657, %v653
    %v962 = vpack.c.b16 %v658, %v654
    %v963 = vpack.c.b16 %v659, %v655
    %v964 = vpack.c.b16 %v664, %v660
    %v965 = vpack.c.b16 %v665, %v661
    %v966 = vpack.c.b16 %v666, %v662
    %v967 = vpack.c.b16 %v667, %v663
    %v968 = vpack.c.b16 %v672, %v668
    %v969 = vpack.c.b16 %v673, %v669
    %v970 = vpack.c.b16 %v674, %v670
    %v971 = vpack.c.b16 %v675, %v671
    %v972 = vpack.c.b16 %v680, %v676
    %v973 = vpack.c.b16 %v681, %v677
    %v974 = vpack.c.b16 %v682, %v678
    %v975 = vpack.c.b16 %v683, %v679
    %v976 = vpack.c.b16 %v688, %v684
    %v977 = vpack.c.b16 %v689, %v685
    %v978 = vpack.c.b16 %v690, %v686
    %v979 = vpack.c.b16 %v691, %v687
    %v980 = vpack.c.b16 %v696, %v692
    %v981 = vpack.c.b16 %v697, %v693
    %v982 = vpack.c.b16 %v698, %v694
    %v983 = vpack.c.b16 %v699, %v695
    %v984 = vpack.c.b16 %v704, %v700
    %v985 = vpack.c.b16 %v705, %v701
    %v986 = vpack.c.b16 %v706, %v702
    %v987 = vpack.c.b16 %v707, %v703
    %v988 = vpack.c.b16 %v712, %v708
    %v989 = vpack.c.b16 %v713, %v709
    %v990 = vpack.c.b16 %v714, %v710
    %v991 = vpack.c.b16 %v715, %v711
    %v992 = vpack.c.b16 %v720, %v716
    %v993 = vpack.c.b16 %v721, %v717
    %v994 = vpack.c.b16 %v722, %v718
    %v995 = vpack.c.b16 %v723, %v719
    %v996 = vpack.c.b16 %v728, %v724
    %v997 = vpack.c.b16 %v729, %v725
    %v998 = vpack.c.b16 %v730, %v726
    %v999 = vpack.c.b16 %v731, %v727
    %v1000 = vpack.c.b16 %v736, %v732
    %v1001 = vpack.c.b16 %v737, %v733
    %v1002 = vpack.c.b16 %v738, %v734
    %v1003 = vpack.c.b16 %v739, %v735
    %v1004 = vpack.c.b16 %v744, %v740
    %v1005 = vpack.c.b16 %v745, %v741
    %v1006 = vpack.c.b16 %v746, %v742
    %v1007 = vpack.c.b16 %v747, %v743
    %v1008 = vpack.c.b16 %v752, %v748
    %v1009 = vpack.c.b16 %v753, %v749
    %v1010 = vpack.c.b16 %v754, %v750
    %v1011 = vpack.c.b16 %v755, %v751
    %v1012 = vpack.c.b16 %v760, %v756
    %v1013 = vpack.c.b16 %v761, %v757
    %v1014 = vpack.c.b16 %v762, %v758
    %v1015 = vpack.c.b16 %v763, %v759
    %v1016 = vpack.c.b16 %v768, %v764
    %v1017 = vpack.c.b16 %v769, %v765
    %v1018 = vpack.c.b16 %v770, %v766
    %v1019 = vpack.c.b16 %v771, %v767
    %v1020 = vpack.c.b16 %v776, %v772
    %v1021 = vpack.c.b16 %v777, %v773
    %v1022 = vpack.c.b16 %v778, %v774
    %v1023 = vpack.c.b16 %v779, %v775
    %v1024 = vpack.c.b16 %v784, %v780
    %v1025 = vpack.c.b16 %v785, %v781
    %v1026 = vpack.c.b16 %v786, %v782
    %v1027 = vpack.c.b16 %v787, %v783
    %v1028 = vpack.c.b16 %v792, %v788
    %v1029 = vpack.c.b16 %v793, %v789
    %v1030 = vpack.c.b16 %v794, %v790
    %v1031 = vpack.c.b16 %v795, %v791
    %v1032 = vpack.c.b16 %v800, %v796
    %v1033 = vpack.c.b16 %v801, %v797
    %v1034 = vpack.c.b16 %v802, %v798
    %v1035 = vpack.c.b16 %v803, %v799
    %v1036 = vpack.c.b16 %v808, %v804
    %v1037 = vpack.c.b16 %v809, %v805
    %v1038 = vpack.c.b16 %v810, %v806
    %v1039 = vpack.c.b16 %v811, %v807
    %v1040 = vpack.c.b16 %v816, %v812
    %v1041 = vpack.c.b16 %v817, %v813
    %v1042 = vpack.c.b16 %v818, %v814
    %v1043 = vpack.c.b16 %v819, %v815
    %v1044 = vpack.c.b16 %v824, %v820
    %v1045 = vpack.c.b16 %v825, %v821
    %v1046 = vpack.c.b16 %v826, %v822
    %v1047 = vpack.c.b16 %v827, %v823
    %v1048 = vpack.c.b16 %v832, %v828
    %v1049 = vpack.c.b16 %v833, %v829
    %v1050 = vpack.c.b16 %v834, %v830
    %v1051 = vpack.c.b16 %v835, %v831
    %v1052 = vpack.c.b16 %v840, %v836
    %v1053 = vpack.c.b16 %v841, %v837
    %v1054 = vpack.c.b16 %v842, %v838
    %v1055 = vpack.c.b16 %v843, %v839
    %v1056 = vpack.c.b16 %v848, %v844
    %v1057 = vpack.c.b16 %v849, %v845
    %v1058 = vpack.c.b16 %v850, %v846
    %v1059 = vpack.c.b16 %v851, %v847
    %v1060 = vpack.c.b16 %v856, %v852
    %v1061 = vpack.c.b16 %v857, %v853
    %v1062 = vpack.c.b16 %v858, %v854
    %v1063 = vpack.c.b16 %v859, %v855
    %v1064 = vpack.c.b16 %v864, %v860
    %v1065 = vpack.c.b16 %v865, %v861
    %v1066 = vpack.c.b16 %v866, %v862
    %v1067 = vpack.c.b16 %v867, %v863
    %v1068 = vpack.c.b16 %v872, %v868
    %v1069 = vpack.c.b16 %v873, %v869
    %v1070 = vpack.c.b16 %v874, %v870
    %v1071 = vpack.c.b16 %v875, %v871
    %vm1268 = vcmask 130048
    %v1270 = vsel %vm1268, %v69, 0
    %1272 = vmatprep.subr.bf16.mxu0 %v877
    %1273 = vmatpush1.bf16.msra.mxu0 %v876
    %1274 = vmatprep.subr.bf16.mxu0 %v881
    %1275 = vmatpush1.bf16.msra.mxu0 %v880
    %1276 = vmatprep.subr.bf16.mxu0 %v885
    %1277 = vmatpush1.bf16.msra.mxu0 %v884
    %1278 = vmatprep.subr.bf16.mxu0 %v889
    %1279 = vmatpush1.bf16.msra.mxu0 %v888
    %1280 = vmatprep.subr.bf16.mxu0 %v893
    %1281 = vmatpush1.bf16.msra.mxu0 %v892
    %1282 = vmatprep.subr.bf16.mxu0 %v897
    %1283 = vmatpush1.bf16.msra.mxu0 %v896
    %1284 = vmatprep.subr.bf16.mxu0 %v901
    %1285 = vmatpush1.bf16.msra.mxu0 %v900
    %1286 = vmatprep.subr.bf16.mxu0 %v905
    %1287 = vmatpush1.bf16.msra.mxu0 %v904
    %1288 = vmatprep.subr.bf16.mxu0 %v909
    %1289 = vmatpush1.bf16.msra.mxu0 %v908
    %1290 = vmatprep.subr.bf16.mxu0 %v913
    %1291 = vmatpush1.bf16.msra.mxu0 %v912
    %1292 = vmatprep.subr.bf16.mxu0 %v917
    %1293 = vmatpush1.bf16.msra.mxu0 %v916
    %1294 = vmatprep.subr.bf16.mxu0 %v921
    %1295 = vmatpush1.bf16.msra.mxu0 %v920
    %1296 = vmatprep.subr.bf16.mxu0 %v925
    %1297 = vmatpush1.bf16.msra.mxu0 %v924
    %1298 = vmatprep.subr.bf16.mxu0 %v929
    %1299 = vmatpush1.bf16.msra.mxu0 %v928
    %1300 = vmatprep.subr.bf16.mxu0 %v933
    %1301 = vmatpush1.bf16.msra.mxu0 %v932
    %1302 = vmatprep.subr.bf16.mxu0 %v937
    %1303 = vmatpush1.bf16.msra.mxu0 %v936
    %1304 = vmatprep.mubr.bf16.mxu0 %v64
    %1305 = vmatmul.mubr.bf16.gmra.mrb[0].mxu0 %v63
    %v1306 = vpop.f32.mrb[0].mxu0
    %v1307 = vadd.f32 %v271, %v1306
    %v1308 = vpop.f32.mrb[0].mxu0
    %v1309 = vadd.f32 %v275, %v1308
    %v1310 = vpop.f32.mrb[0].mxu0
    %v1311 = vpop.f32.mrb[0].mxu0
    %1312 = vdwg.mxu0
    %1313 = vmatprep.subr.bf16.mxu0 %v941
    %1314 = vmatpush1.bf16.msra.mxu0 %v940
    %1315 = vmatprep.subr.bf16.mxu0 %v945
    %1316 = vmatpush1.bf16.msra.mxu0 %v944
    %1317 = vmatprep.subr.bf16.mxu0 %v949
    %1318 = vmatpush1.bf16.msra.mxu0 %v948
    %1319 = vmatprep.subr.bf16.mxu0 %v953
    %1320 = vmatpush1.bf16.msra.mxu0 %v952
    %1321 = vmatprep.subr.bf16.mxu0 %v957
    %1322 = vmatpush1.bf16.msra.mxu0 %v956
    %1323 = vmatprep.subr.bf16.mxu0 %v961
    %1324 = vmatpush1.bf16.msra.mxu0 %v960
    %1325 = vmatprep.subr.bf16.mxu0 %v965
    %1326 = vmatpush1.bf16.msra.mxu0 %v964
    %1327 = vmatprep.subr.bf16.mxu0 %v969
    %1328 = vmatpush1.bf16.msra.mxu0 %v968
    %1329 = vmatprep.subr.bf16.mxu0 %v973
    %1330 = vmatpush1.bf16.msra.mxu0 %v972
    %1331 = vmatprep.subr.bf16.mxu0 %v977
    %1332 = vmatpush1.bf16.msra.mxu0 %v976
    %1333 = vmatprep.subr.bf16.mxu0 %v981
    %1334 = vmatpush1.bf16.msra.mxu0 %v980
    %1335 = vmatprep.subr.bf16.mxu0 %v985
    %1336 = vmatpush1.bf16.msra.mxu0 %v984
    %1337 = vmatprep.subr.bf16.mxu0 %v989
    %1338 = vmatpush1.bf16.msra.mxu0 %v988
    %1339 = vmatprep.subr.bf16.mxu0 %v993
    %1340 = vmatpush1.bf16.msra.mxu0 %v992
    %1341 = vmatprep.subr.bf16.mxu0 %v997
    %1342 = vmatpush1.bf16.msra.mxu0 %v996
    %1343 = vmatprep.subr.bf16.mxu0 %v1001
    %1344 = vmatpush1.bf16.msra.mxu0 %v1000
    %1345 = vmatprep.mubr.bf16.mxu0 %v66
    %1346 = vmatmul.mubr.bf16.gmra.mrb[0].mxu0 %v65
    %v1347 = vpop.f32.mrb[0].mxu0
    %v1348 = vadd.f32 %v1307, %v1347
    %v1349 = vpop.f32.mrb[0].mxu0
    %v1350 = vadd.f32 %v1309, %v1349
    %v1351 = vpop.f32.mrb[0].mxu0
    %v1352 = vpop.f32.mrb[0].mxu0
    %1353 = vdwg.mxu0
    %1354 = vmatprep.subr.bf16.mxu0 %v1005
    %1355 = vmatpush1.bf16.msra.mxu0 %v1004
    %1356 = vmatprep.subr.bf16.mxu0 %v1009
    %1357 = vmatpush1.bf16.msra.mxu0 %v1008
    %1358 = vmatprep.subr.bf16.mxu0 %v1013
    %1359 = vmatpush1.bf16.msra.mxu0 %v1012
    %1360 = vmatprep.subr.bf16.mxu0 %v1017
    %1361 = vmatpush1.bf16.msra.mxu0 %v1016
    %1362 = vmatprep.subr.bf16.mxu0 %v1021
    %1363 = vmatpush1.bf16.msra.mxu0 %v1020
    %1364 = vmatprep.subr.bf16.mxu0 %v1025
    %1365 = vmatpush1.bf16.msra.mxu0 %v1024
    %1366 = vmatprep.subr.bf16.mxu0 %v1029
    %1367 = vmatpush1.bf16.msra.mxu0 %v1028
    %1368 = vmatprep.subr.bf16.mxu0 %v1033
    %1369 = vmatpush1.bf16.msra.mxu0 %v1032
    %1370 = vmatprep.subr.bf16.mxu0 %v1037
    %1371 = vmatpush1.bf16.msra.mxu0 %v1036
    %1372 = vmatprep.subr.bf16.mxu0 %v1041
    %1373 = vmatpush1.bf16.msra.mxu0 %v1040
    %1374 = vmatprep.subr.bf16.mxu0 %v1045
    %1375 = vmatpush1.bf16.msra.mxu0 %v1044
    %1376 = vmatprep.subr.bf16.mxu0 %v1049
    %1377 = vmatpush1.bf16.msra.mxu0 %v1048
    %1378 = vmatprep.subr.bf16.mxu0 %v1053
    %1379 = vmatpush1.bf16.msra.mxu0 %v1052
    %1380 = vmatprep.subr.bf16.mxu0 %v1057
    %1381 = vmatpush1.bf16.msra.mxu0 %v1056
    %1382 = vmatprep.subr.bf16.mxu0 %v1061
    %1383 = vmatpush1.bf16.msra.mxu0 %v1060
    %1384 = vmatprep.subr.bf16.mxu0 %v1065
    %1385 = vmatpush1.bf16.msra.mxu0 %v1064
    %1386 = vmatprep.mubr.bf16.mxu0 %v68
    %1387 = vmatmul.mubr.bf16.gmra.mrb[0].mxu0 %v67
    %v1388 = vpop.f32.mrb[0].mxu0
    %v1389 = vadd.f32 %v1348, %v1388
    %v1390 = vpop.f32.mrb[0].mxu0
    %v1391 = vadd.f32 %v1350, %v1390
    %v1392 = vpop.f32.mrb[0].mxu0
    %v1393 = vpop.f32.mrb[0].mxu0
    %1394 = vdwg.mxu0
    %1395 = vmatprep.subr.bf16.mxu0 %v1069
    %1396 = vmatpush1.bf16.msra.mxu0 %v1068
    %1397 = vmatprep.subr.bf16.mxu0 0
    %1398 = vmatpush1.bf16.msra.mxu0 0
    %1399 = vmatprep.subr.bf16.mxu0 0
    %1400 = vmatpush1.bf16.msra.mxu0 0
    %1401 = vmatprep.subr.bf16.mxu0 0
    %1402 = vmatpush1.bf16.msra.mxu0 0
    %1403 = vmatprep.subr.bf16.mxu0 0
    %1404 = vmatpush1.bf16.msra.mxu0 0
    %1405 = vmatprep.subr.bf16.mxu0 0
    %1406 = vmatpush1.bf16.msra.mxu0 0
    %1407 = vmatprep.subr.bf16.mxu0 0
    %1408 = vmatpush1.bf16.msra.mxu0 0
    %1409 = vmatprep.subr.bf16.mxu0 0
    %1410 = vmatpush1.bf16.msra.mxu0 0
    %1411 = vmatprep.subr.bf16.mxu0 0
    %1412 = vmatpush1.bf16.msra.mxu0 0
    %1413 = vmatprep.subr.bf16.mxu0 0
    %1414 = vmatpush1.bf16.msra.mxu0 0
    %1415 = vmatprep.subr.bf16.mxu0 0
    %1416 = vmatpush1.bf16.msra.mxu0 0
    %1417 = vmatprep.subr.bf16.mxu0 0
    %1418 = vmatpush1.bf16.msra.mxu0 0
    %1419 = vmatprep.subr.bf16.mxu0 0
    %1420 = vmatpush1.bf16.msra.mxu0 0
    %1421 = vmatprep.subr.bf16.mxu0 0
    %1422 = vmatpush1.bf16.msra.mxu0 0
    %1423 = vmatprep.subr.bf16.mxu0 0
    %1424 = vmatpush1.bf16.msra.mxu0 0
    %1425 = vmatprep.subr.bf16.mxu0 0
    %1426 = vmatpush1.bf16.msra.mxu0 0
    %1427 = vmatprep.mubr.bf16.mxu0 0
    %1428 = vmatmul.mubr.bf16.gmra.mrb[0].mxu0 %v1270
    %v1429 = vpop.f32.mrb[0].mxu0
    %v1430 = vadd.f32 %v1389, %v1429
    %v1431 = vpop.f32.mrb[0].mxu0
    %v1432 = vadd.f32 %v1391, %v1431
    %v1433 = vpop.f32.mrb[0].mxu0
    %v1434 = vpop.f32.mrb[0].mxu0
    %1435 = vdwg.mxu0
    %1436 = vmatprep.subr.bf16.mxu0 %v879
    %1437 = vmatpush1.bf16.msra.mxu0 %v878
    %1438 = vmatprep.subr.bf16.mxu0 %v883
    %1439 = vmatpush1.bf16.msra.mxu0 %v882
    %1440 = vmatprep.subr.bf16.mxu0 %v887
    %1441 = vmatpush1.bf16.msra.mxu0 %v886
    %1442 = vmatprep.subr.bf16.mxu0 %v891
    %1443 = vmatpush1.bf16.msra.mxu0 %v890
    %1444 = vmatprep.subr.bf16.mxu0 %v895
    %1445 = vmatpush1.bf16.msra.mxu0 %v894
    %1446 = vmatprep.subr.bf16.mxu0 %v899
    %1447 = vmatpush1.bf16.msra.mxu0 %v898
    %1448 = vmatprep.subr.bf16.mxu0 %v903
    %1449 = vmatpush1.bf16.msra.mxu0 %v902
    %1450 = vmatprep.subr.bf16.mxu0 %v907
    %1451 = vmatpush1.bf16.msra.mxu0 %v906
    %1452 = vmatprep.subr.bf16.mxu0 %v911
    %1453 = vmatpush1.bf16.msra.mxu0 %v910
    %1454 = vmatprep.subr.bf16.mxu0 %v915
    %1455 = vmatpush1.bf16.msra.mxu0 %v914
    %1456 = vmatprep.subr.bf16.mxu0 %v919
    %1457 = vmatpush1.bf16.msra.mxu0 %v918
    %1458 = vmatprep.subr.bf16.mxu0 %v923
    %1459 = vmatpush1.bf16.msra.mxu0 %v922
    %1460 = vmatprep.subr.bf16.mxu0 %v927
    %1461 = vmatpush1.bf16.msra.mxu0 %v926
    %1462 = vmatprep.subr.bf16.mxu0 %v931
    %1463 = vmatpush1.bf16.msra.mxu0 %v930
    %1464 = vmatprep.subr.bf16.mxu0 %v935
    %1465 = vmatpush1.bf16.msra.mxu0 %v934
    %1466 = vmatprep.subr.bf16.mxu0 %v939
    %1467 = vmatpush1.bf16.msra.mxu0 %v938
    %1468 = vmatprep.mubr.bf16.mxu0 %v64
    %1469 = vmatmul.mubr.bf16.gmra.mrb[0].mxu0 %v63
    %v1470 = vpop.f32.mrb[0].mxu0
    %v1471 = vadd.f32 %v279, %v1470
    %v1472 = vpop.f32.mrb[0].mxu0
    %v1473 = vadd.f32 %v283, %v1472
    %v1474 = vpop.f32.mrb[0].mxu0
    %v1475 = vpop.f32.mrb[0].mxu0
    %1476 = vdwg.mxu0
    %1477 = vmatprep.subr.bf16.mxu0 %v943
    %1478 = vmatpush1.bf16.msra.mxu0 %v942
    %1479 = vmatprep.subr.bf16.mxu0 %v947
    %1480 = vmatpush1.bf16.msra.mxu0 %v946
    %1481 = vmatprep.subr.bf16.mxu0 %v951
    %1482 = vmatpush1.bf16.msra.mxu0 %v950
    %1483 = vmatprep.subr.bf16.mxu0 %v955
    %1484 = vmatpush1.bf16.msra.mxu0 %v954
    %1485 = vmatprep.subr.bf16.mxu0 %v959
    %1486 = vmatpush1.bf16.msra.mxu0 %v958
    %1487 = vmatprep.subr.bf16.mxu0 %v963
    %1488 = vmatpush1.bf16.msra.mxu0 %v962
    %1489 = vmatprep.subr.bf16.mxu0 %v967
    %1490 = vmatpush1.bf16.msra.mxu0 %v966
    %1491 = vmatprep.subr.bf16.mxu0 %v971
    %1492 = vmatpush1.bf16.msra.mxu0 %v970
    %1493 = vmatprep.subr.bf16.mxu0 %v975
    %1494 = vmatpush1.bf16.msra.mxu0 %v974
    %1495 = vmatprep.subr.bf16.mxu0 %v979
    %1496 = vmatpush1.bf16.msra.mxu0 %v978
    %1497 = vmatprep.subr.bf16.mxu0 %v983
    %1498 = vmatpush1.bf16.msra.mxu0 %v982
    %1499 = vmatprep.subr.bf16.mxu0 %v987
    %1500 = vmatpush1.bf16.msra.mxu0 %v986
    %1501 = vmatprep.subr.bf16.mxu0 %v991
    %1502 = vmatpush1.bf16.msra.mxu0 %v990
    %1503 = vmatprep.subr.bf16.mxu0 %v995
    %1504 = vmatpush1.bf16.msra.mxu0 %v994
    %1505 = vmatprep.subr.bf16.mxu0 %v999
    %1506 = vmatpush1.bf16.msra.mxu0 %v998
    %1507 = vmatprep.subr.bf16.mxu0 %v1003
    %1508 = vmatpush1.bf16.msra.mxu0 %v1002
    %1509 = vmatprep.mubr.bf16.mxu0 %v66
    %1510 = vmatmul.mubr.bf16.gmra.mrb[0].mxu0 %v65
    %v1511 = vpop.f32.mrb[0].mxu0
    %v1512 = vadd.f32 %v1471, %v1511
    %v1513 = vpop.f32.mrb[0].mxu0
    %v1514 = vadd.f32 %v1473, %v1513
    %v1515 = vpop.f32.mrb[0].mxu0
    %v1516 = vpop.f32.mrb[0].mxu0
    %1517 = vdwg.mxu0
    %1518 = vmatprep.subr.bf16.mxu0 %v1007
    %1519 = vmatpush1.bf16.msra.mxu0 %v1006
    %1520 = vmatprep.subr.bf16.mxu0 %v1011
    %1521 = vmatpush1.bf16.msra.mxu0 %v1010
    %1522 = vmatprep.subr.bf16.mxu0 %v1015
    %1523 = vmatpush1.bf16.msra.mxu0 %v1014
    %1524 = vmatprep.subr.bf16.mxu0 %v1019
    %1525 = vmatpush1.bf16.msra.mxu0 %v1018
    %1526 = vmatprep.subr.bf16.mxu0 %v1023
    %1527 = vmatpush1.bf16.msra.mxu0 %v1022
    %1528 = vmatprep.subr.bf16.mxu0 %v1027
    %1529 = vmatpush1.bf16.msra.mxu0 %v1026
    %1530 = vmatprep.subr.bf16.mxu0 %v1031
    %1531 = vmatpush1.bf16.msra.mxu0 %v1030
    %1532 = vmatprep.subr.bf16.mxu0 %v1035
    %1533 = vmatpush1.bf16.msra.mxu0 %v1034
    %1534 = vmatprep.subr.bf16.mxu0 %v1039
    %1535 = vmatpush1.bf16.msra.mxu0 %v1038
    %1536 = vmatprep.subr.bf16.mxu0 %v1043
    %1537 = vmatpush1.bf16.msra.mxu0 %v1042
    %1538 = vmatprep.subr.bf16.mxu0 %v1047
    %1539 = vmatpush1.bf16.msra.mxu0 %v1046
    %1540 = vmatprep.subr.bf16.mxu0 %v1051
    %1541 = vmatpush1.bf16.msra.mxu0 %v1050
    %1542 = vmatprep.subr.bf16.mxu0 %v1055
    %1543 = vmatpush1.bf16.msra.mxu0 %v1054
    %1544 = vmatprep.subr.bf16.mxu0 %v1059
    %1545 = vmatpush1.bf16.msra.mxu0 %v1058
    %1546 = vmatprep.subr.bf16.mxu0 %v1063
    %1547 = vmatpush1.bf16.msra.mxu0 %v1062
    %1548 = vmatprep.subr.bf16.mxu0 %v1067
    %1549 = vmatpush1.bf16.msra.mxu0 %v1066
    %1550 = vmatprep.mubr.bf16.mxu0 %v68
    %1551 = vmatmul.mubr.bf16.gmra.mrb[0].mxu0 %v67
    %v1552 = vpop.f32.mrb[0].mxu0
    %v1553 = vadd.f32 %v1512, %v1552
    %v1554 = vpop.f32.mrb[0].mxu0
    %v1555 = vadd.f32 %v1514, %v1554
    %v1556 = vpop.f32.mrb[0].mxu0
    %v1557 = vpop.f32.mrb[0].mxu0
    %1558 = vdwg.mxu0
    %1559 = vmatprep.subr.bf16.mxu0 %v1071
    %1560 = vmatpush1.bf16.msra.mxu0 %v1070
    %1561 = vmatprep.subr.bf16.mxu0 0
    %1562 = vmatpush1.bf16.msra.mxu0 0
    %1563 = vmatprep.subr.bf16.mxu0 0
    %1564 = vmatpush1.bf16.msra.mxu0 0
    %1565 = vmatprep.subr.bf16.mxu0 0
    %1566 = vmatpush1.bf16.msra.mxu0 0
    %1567 = vmatprep.subr.bf16.mxu0 0
    %1568 = vmatpush1.bf16.msra.mxu0 0
    %1569 = vmatprep.subr.bf16.mxu0 0
    %1570 = vmatpush1.bf16.msra.mxu0 0
    %1571 = vmatprep.subr.bf16.mxu0 0
    %1572 = vmatpush1.bf16.msra.mxu0 0
    %1573 = vmatprep.subr.bf16.mxu0 0
    %1574 = vmatpush1.bf16.msra.mxu0 0
    %1575 = vmatprep.subr.bf16.mxu0 0
    %1576 = vmatpush1.bf16.msra.mxu0 0
    %1577 = vmatprep.subr.bf16.mxu0 0
    %1578 = vmatpush1.bf16.msra.mxu0 0
    %1579 = vmatprep.subr.bf16.mxu0 0
    %1580 = vmatpush1.bf16.msra.mxu0 0
    %1581 = vmatprep.subr.bf16.mxu0 0
    %1582 = vmatpush1.bf16.msra.mxu0 0
    %1583 = vmatprep.subr.bf16.mxu0 0
    %1584 = vmatpush1.bf16.msra.mxu0 0
    %1585 = vmatprep.subr.bf16.mxu0 0
    %1586 = vmatpush1.bf16.msra.mxu0 0
    %1587 = vmatprep.subr.bf16.mxu0 0
    %1588 = vmatpush1.bf16.msra.mxu0 0
    %1589 = vmatprep.subr.bf16.mxu0 0
    %1590 = vmatpush1.bf16.msra.mxu0 0
    %1591 = vmatprep.mubr.bf16.mxu0 0
    %1592 = vmatmul.mubr.bf16.gmra.mrb[0].mxu0 %v1270
    %v1593 = vpop.f32.mrb[0].mxu0
    %v1594 = vadd.f32 %v1553, %v1593
    %v1595 = vpop.f32.mrb[0].mxu0
    %v1596 = vadd.f32 %v1555, %v1595
    %v1597 = vpop.f32.mrb[0].mxu0
    %v1598 = vpop.f32.mrb[0].mxu0
    %1599 = vdwg.mxu0
    %v1600 = vmax.f32 %v1430, 0.0
    %v1601 = vmax.f32 %v1432, 0.0
    %v1602 = vmax.f32 %v1594, 0.0
    %v1603 = vmax.f32 %v1596, 0.0
    %v1604 = vpack.c.bf16 %v1600, %v1600
    %v1605 = vpack.c.bf16 %v1601, %v1601
    %v1606 = vpack.c.bf16 %v1602, %v1602
    %v1607 = vpack.c.bf16 %v1603, %v1603
    %v1608 = vld [vmem:[%s3] sm:$0xf]
    %v1609 = vld [vmem:[%s3 + $0x4] sm:$0xf]
    %v1610 = vld [vmem:[%s3 + $0x8] sm:$0xf]
    %v1611 = vld [vmem:[%s3 + $0xc] sm:$0xf]
    %v1612 = vld [vmem:[%s3 + $0x10] sm:$0xf]
    %v1613 = vld [vmem:[%s3 + $0x14] sm:$0xf]
    %v1614 = vld [vmem:[%s3 + $0x18] sm:$0xf]
    %v1615 = vld [vmem:[%s3 + $0x1c] sm:$0xf]
    %v1616 = vld [vmem:[%s3 + $0x20] sm:$0xf]
    %v1617 = vld [vmem:[%s3 + $0x24] sm:$0xf]
    %v1618 = vld [vmem:[%s3 + $0x28] sm:$0xf]
    %v1619 = vld [vmem:[%s3 + $0x2c] sm:$0xf]
    %v1620 = vld [vmem:[%s3 + $0x30] sm:$0xf]
    %v1621 = vld [vmem:[%s3 + $0x34] sm:$0xf]
    %v1622 = vld [vmem:[%s3 + $0x38] sm:$0xf]
    %v1623 = vld [vmem:[%s3 + $0x3c] sm:$0xf]
    %v1624 = vld [vmem:[%s3 + $0x40] sm:$0xf]
    %v1625 = vld [vmem:[%s3 + $0x44] sm:$0xf]
    %v1626 = vld [vmem:[%s3 + $0x48] sm:$0xf]
    %v1627 = vld [vmem:[%s3 + $0x4c] sm:$0xf]
    %v1628 = vld [vmem:[%s3 + $0x50] sm:$0xf]
    %v1629 = vld [vmem:[%s3 + $0x54] sm:$0xf]
    %v1630 = vld [vmem:[%s3 + $0x58] sm:$0xf]
    %v1631 = vld [vmem:[%s3 + $0x5c] sm:$0xf]
    %v1632 = vld [vmem:[%s3 + $0x60] sm:$0xf]
    %v1633 = vld [vmem:[%s3 + $0x64] sm:$0xf]
    %v1634 = vld [vmem:[%s3 + $0x68] sm:$0xf]
    %v1635 = vld [vmem:[%s3 + $0x6c] sm:$0xf]
    %v1636 = vld [vmem:[%s3 + $0x70] sm:$0xf]
    %v1637 = vld [vmem:[%s3 + $0x74] sm:$0xf]
    %v1638 = vld [vmem:[%s3 + $0x78] sm:$0xf]
    %v1639 = vld [vmem:[%s3 + $0x7c] sm:$0xf]
    %v1640 = vld [vmem:[%s3 + $0x80] sm:$0xf]
    %v1641 = vld [vmem:[%s3 + $0x84] sm:$0xf]
    %v1642 = vld [vmem:[%s3 + $0x88] sm:$0xf]
    %v1643 = vld [vmem:[%s3 + $0x8c] sm:$0xf]
    %v1644 = vld [vmem:[%s3 + $0x90] sm:$0xf]
    %v1645 = vld [vmem:[%s3 + $0x94] sm:$0xf]
    %v1646 = vld [vmem:[%s3 + $0x98] sm:$0xf]
    %v1647 = vld [vmem:[%s3 + $0x9c] sm:$0xf]
    %v1648 = vld [vmem:[%s3 + $0xa0] sm:$0xf]
    %v1649 = vld [vmem:[%s3 + $0xa4] sm:$0xf]
    %v1650 = vld [vmem:[%s3 + $0xa8] sm:$0xf]
    %v1651 = vld [vmem:[%s3 + $0xac] sm:$0xf]
    %v1652 = vld [vmem:[%s3 + $0xb0] sm:$0xf]
    %v1653 = vld [vmem:[%s3 + $0xb4] sm:$0xf]
    %v1654 = vld [vmem:[%s3 + $0xb8] sm:$0xf]
    %v1655 = vld [vmem:[%s3 + $0xbc] sm:$0xf]
    %v1656 = vld [vmem:[%s3 + $0xc0] sm:$0xf]
    %v1657 = vld [vmem:[%s3 + $0xc4] sm:$0xf]
    %v1658 = vld [vmem:[%s3 + $0xc8] sm:$0xf]
    %v1659 = vld [vmem:[%s3 + $0xcc] sm:$0xf]
    %v1660 = vld [vmem:[%s3 + $0xd0] sm:$0xf]
    %v1661 = vld [vmem:[%s3 + $0xd4] sm:$0xf]
    %v1662 = vld [vmem:[%s3 + $0xd8] sm:$0xf]
    %v1663 = vld [vmem:[%s3 + $0xdc] sm:$0xf]
    %v1664 = vld [vmem:[%s3 + $0xe0] sm:$0xf]
    %v1665 = vld [vmem:[%s3 + $0xe4] sm:$0xf]
    %v1666 = vld [vmem:[%s3 + $0xe8] sm:$0xf]
    %v1667 = vld [vmem:[%s3 + $0xec] sm:$0xf]
    %v1668 = vld [vmem:[%s3 + $0xf0] sm:$0xf]
    %v1669 = vld [vmem:[%s3 + $0xf4] sm:$0xf]
    %v1670 = vld [vmem:[%s3 + $0xf8] sm:$0xf]
    %v1671 = vld [vmem:[%s3 + $0xfc] sm:$0xf]
    %v1672 = vld [vmem:[%s4] sm:$0x1]
    %v1674 = vlaneseq
    %v1675 = vshrl.u32 %v1674, 7
    %v1676 = vsub.s32 0, %v1675
    %v1677 = vrot.slane %v1672, %v1676
    %v1743 = vunpack.c.l.b16 %v1608
    %v1744 = vunpack.c.l.b16 %v1609
    %v1745 = vunpack.c.l.b16 %v1610
    %v1746 = vunpack.c.l.b16 %v1611
    %v1747 = vunpack.c.l.b16 %v1612
    %v1748 = vunpack.c.l.b16 %v1613
    %v1749 = vunpack.c.l.b16 %v1614
    %v1750 = vunpack.c.l.b16 %v1615
    %v1751 = vunpack.c.l.b16 %v1616
    %v1752 = vunpack.c.l.b16 %v1617
    %v1753 = vunpack.c.l.b16 %v1618
    %v1754 = vunpack.c.l.b16 %v1619
    %v1755 = vunpack.c.l.b16 %v1620
    %v1756 = vunpack.c.l.b16 %v1621
    %v1757 = vunpack.c.l.b16 %v1622
    %v1758 = vunpack.c.l.b16 %v1623
    %v1759 = vunpack.c.l.b16 %v1624
    %v1760 = vunpack.c.l.b16 %v1625
    %v1761 = vunpack.c.l.b16 %v1626
    %v1762 = vunpack.c.l.b16 %v1627
    %v1763 = vunpack.c.l.b16 %v1628
    %v1764 = vunpack.c.l.b16 %v1629
    %v1765 = vunpack.c.l.b16 %v1630
    %v1766 = vunpack.c.l.b16 %v1631
    %v1767 = vunpack.c.l.b16 %v1632
    %v1768 = vunpack.c.l.b16 %v1633
    %v1769 = vunpack.c.l.b16 %v1634
    %v1770 = vunpack.c.l.b16 %v1635
    %v1771 = vunpack.c.l.b16 %v1636
    %v1772 = vunpack.c.l.b16 %v1637
    %v1773 = vunpack.c.l.b16 %v1638
    %v1774 = vunpack.c.l.b16 %v1639
    %v1775 = vunpack.c.l.b16 %v1640
    %v1776 = vunpack.c.l.b16 %v1641
    %v1777 = vunpack.c.l.b16 %v1642
    %v1778 = vunpack.c.l.b16 %v1643
    %v1779 = vunpack.c.l.b16 %v1644
    %v1780 = vunpack.c.l.b16 %v1645
    %v1781 = vunpack.c.l.b16 %v1646
    %v1782 = vunpack.c.l.b16 %v1647
    %v1783 = vunpack.c.l.b16 %v1648
    %v1784 = vunpack.c.l.b16 %v1649
    %v1785 = vunpack.c.l.b16 %v1650
    %v1786 = vunpack.c.l.b16 %v1651
    %v1787 = vunpack.c.l.b16 %v1652
    %v1788 = vunpack.c.l.b16 %v1653
    %v1789 = vunpack.c.l.b16 %v1654
    %v1790 = vunpack.c.l.b16 %v1655
    %v1791 = vunpack.c.l.b16 %v1656
    %v1792 = vunpack.c.l.b16 %v1657
    %v1793 = vunpack.c.l.b16 %v1658
    %v1794 = vunpack.c.l.b16 %v1659
    %v1795 = vunpack.c.l.b16 %v1660
    %v1796 = vunpack.c.l.b16 %v1661
    %v1797 = vunpack.c.l.b16 %v1662
    %v1798 = vunpack.c.l.b16 %v1663
    %v1799 = vunpack.c.l.b16 %v1664
    %v1800 = vunpack.c.l.b16 %v1665
    %v1801 = vunpack.c.l.b16 %v1666
    %v1802 = vunpack.c.l.b16 %v1667
    %v1803 = vunpack.c.l.b16 %v1668
    %v1804 = vunpack.c.l.b16 %v1669
    %v1805 = vunpack.c.l.b16 %v1670
    %v1806 = vunpack.c.l.b16 %v1671
    %v1807 = vpack.c.b16 %v1744, %v1743
    %v1808 = vpack.c.b16 %v1746, %v1745
    %v1809 = vpack.c.b16 %v1748, %v1747
    %v1810 = vpack.c.b16 %v1750, %v1749
    %v1811 = vpack.c.b16 %v1752, %v1751
    %v1812 = vpack.c.b16 %v1754, %v1753
    %v1813 = vpack.c.b16 %v1756, %v1755
    %v1814 = vpack.c.b16 %v1758, %v1757
    %v1815 = vpack.c.b16 %v1760, %v1759
    %v1816 = vpack.c.b16 %v1762, %v1761
    %v1817 = vpack.c.b16 %v1764, %v1763
    %v1818 = vpack.c.b16 %v1766, %v1765
    %v1819 = vpack.c.b16 %v1768, %v1767
    %v1820 = vpack.c.b16 %v1770, %v1769
    %v1821 = vpack.c.b16 %v1772, %v1771
    %v1822 = vpack.c.b16 %v1774, %v1773
    %v1823 = vpack.c.b16 %v1776, %v1775
    %v1824 = vpack.c.b16 %v1778, %v1777
    %v1825 = vpack.c.b16 %v1780, %v1779
    %v1826 = vpack.c.b16 %v1782, %v1781
    %v1827 = vpack.c.b16 %v1784, %v1783
    %v1828 = vpack.c.b16 %v1786, %v1785
    %v1829 = vpack.c.b16 %v1788, %v1787
    %v1830 = vpack.c.b16 %v1790, %v1789
    %v1831 = vpack.c.b16 %v1792, %v1791
    %v1832 = vpack.c.b16 %v1794, %v1793
    %v1833 = vpack.c.b16 %v1796, %v1795
    %v1834 = vpack.c.b16 %v1798, %v1797
    %v1835 = vpack.c.b16 %v1800, %v1799
    %v1836 = vpack.c.b16 %v1802, %v1801
    %v1837 = vpack.c.b16 %v1804, %v1803
    %v1838 = vpack.c.b16 %v1806, %v1805
    %1871 = vmatprep.subr.bf16.mxu0 0
    %1872 = vmatpush1.bf16.msra.mxu0 %v1807
    %1873 = vmatprep.subr.bf16.mxu0 0
    %1874 = vmatpush1.bf16.msra.mxu0 %v1808
    %1875 = vmatprep.subr.bf16.mxu0 0
    %1876 = vmatpush1.bf16.msra.mxu0 %v1809
    %1877 = vmatprep.subr.bf16.mxu0 0
    %1878 = vmatpush1.bf16.msra.mxu0 %v1810
    %1879 = vmatprep.subr.bf16.mxu0 0
    %1880 = vmatpush1.bf16.msra.mxu0 %v1811
    %1881 = vmatprep.subr.bf16.mxu0 0
    %1882 = vmatpush1.bf16.msra.mxu0 %v1812
    %1883 = vmatprep.subr.bf16.mxu0 0
    %1884 = vmatpush1.bf16.msra.mxu0 %v1813
    %1885 = vmatprep.subr.bf16.mxu0 0
    %1886 = vmatpush1.bf16.msra.mxu0 %v1814
    %1887 = vmatprep.subr.bf16.mxu0 0
    %1888 = vmatpush1.bf16.msra.mxu0 %v1815
    %1889 = vmatprep.subr.bf16.mxu0 0
    %1890 = vmatpush1.bf16.msra.mxu0 %v1816
    %1891 = vmatprep.subr.bf16.mxu0 0
    %1892 = vmatpush1.bf16.msra.mxu0 %v1817
    %1893 = vmatprep.subr.bf16.mxu0 0
    %1894 = vmatpush1.bf16.msra.mxu0 %v1818
    %1895 = vmatprep.subr.bf16.mxu0 0
    %1896 = vmatpush1.bf16.msra.mxu0 %v1819
    %1897 = vmatprep.subr.bf16.mxu0 0
    %1898 = vmatpush1.bf16.msra.mxu0 %v1820
    %1899 = vmatprep.subr.bf16.mxu0 0
    %1900 = vmatpush1.bf16.msra.mxu0 %v1821
    %1901 = vmatprep.subr.bf16.mxu0 0
    %1902 = vmatpush1.bf16.msra.mxu0 %v1822
    %1903 = vmatprep.mubr.bf16.mxu0 %v1605
    %1904 = vmatmul.mubr.bf16.gmra.mrb[0].mxu0 %v1604
    %v1905 = vpop.f32.mrb[0].mxu0
    %v1906 = vadd.f32 %v1677, %v1905
    %v1907 = vpop.f32.mrb[0].mxu0
    %v1908 = vpop.f32.mrb[0].mxu0
    %v1909 = vpop.f32.mrb[0].mxu0
    %1910 = vdwg.mxu0
    %1911 = vmatprep.subr.bf16.mxu0 0
    %1912 = vmatpush1.bf16.msra.mxu0 %v1823
    %1913 = vmatprep.subr.bf16.mxu0 0
    %1914 = vmatpush1.bf16.msra.mxu0 %v1824
    %1915 = vmatprep.subr.bf16.mxu0 0
    %1916 = vmatpush1.bf16.msra.mxu0 %v1825
    %1917 = vmatprep.subr.bf16.mxu0 0
    %1918 = vmatpush1.bf16.msra.mxu0 %v1826
    %1919 = vmatprep.subr.bf16.mxu0 0
    %1920 = vmatpush1.bf16.msra.mxu0 %v1827
    %1921 = vmatprep.subr.bf16.mxu0 0
    %1922 = vmatpush1.bf16.msra.mxu0 %v1828
    %1923 = vmatprep.subr.bf16.mxu0 0
    %1924 = vmatpush1.bf16.msra.mxu0 %v1829
    %1925 = vmatprep.subr.bf16.mxu0 0
    %1926 = vmatpush1.bf16.msra.mxu0 %v1830
    %1927 = vmatprep.subr.bf16.mxu0 0
    %1928 = vmatpush1.bf16.msra.mxu0 %v1831
    %1929 = vmatprep.subr.bf16.mxu0 0
    %1930 = vmatpush1.bf16.msra.mxu0 %v1832
    %1931 = vmatprep.subr.bf16.mxu0 0
    %1932 = vmatpush1.bf16.msra.mxu0 %v1833
    %1933 = vmatprep.subr.bf16.mxu0 0
    %1934 = vmatpush1.bf16.msra.mxu0 %v1834
    %1935 = vmatprep.subr.bf16.mxu0 0
    %1936 = vmatpush1.bf16.msra.mxu0 %v1835
    %1937 = vmatprep.subr.bf16.mxu0 0
    %1938 = vmatpush1.bf16.msra.mxu0 %v1836
    %1939 = vmatprep.subr.bf16.mxu0 0
    %1940 = vmatpush1.bf16.msra.mxu0 %v1837
    %1941 = vmatprep.subr.bf16.mxu0 0
    %1942 = vmatpush1.bf16.msra.mxu0 %v1838
    %1943 = vmatprep.mubr.bf16.mxu0 %v1607
    %1944 = vmatmul.mubr.bf16.gmra.mrb[0].mxu0 %v1606
    %v1945 = vpop.f32.mrb[0].mxu0
    %v1946 = vadd.f32 %v1906, %v1945
    %v1947 = vpop.f32.mrb[0].mxu0
    %v1948 = vpop.f32.mrb[0].mxu0
    %v1949 = vpop.f32.mrb[0].mxu0
    %1950 = vdwg.mxu0
    %v1951 = vld [vmem:[%s5] ss:$2 sm:$0xf]
    %1953 = vset.pattern.permute.xlu0 0
    %1954 = vperm.xlu0 %1953, %v1946
    %v1955 = vpop.permute.xlu0 %1954
    %v1958 = vlaneseq
    %v1959 = vshrl.u32 %v1958, 7
    %v1960 = vsub.s32 0, %v1959
    %v1961 = vrot.slane %v1951, %v1960
    %v1962 = vlaneseq
    %v1963 = vshrl.u32 %v1962, 7
    %v1964 = vsub.s32 1, %v1963
    %v1965 = vrot.slane %v1951, %v1964
    %v1966 = vlaneseq
    %v1967 = vshrl.u32 %v1966, 7
    %v1968 = vsub.s32 2, %v1967
    %v1969 = vrot.slane %v1951, %v1968
    %v1970 = vlaneseq
    %v1971 = vshrl.u32 %v1970, 7
    %v1972 = vsub.s32 3, %v1971
    %v1973 = vrot.slane %v1951, %v1972
    %v1978 = vmul.f32 %v1955, %v1961
    %v1979 = vmul.f32 %v1955, %v1965
    %v1980 = vmul.f32 %v1955, %v1969
    %v1981 = vmul.f32 %v1955, %v1973
    %s1982 = scalar_lea.vmem %s5, 1
    %v1983 = vld [vmem:[%s1982] ss:$2 sm:$0xf]
    %1984 = vset.pattern.permute.xlu0 1
    %1985 = vperm.xlu0 %1984, %v1946
    %v1986 = vpop.permute.xlu0 %1985
    %v1989 = vlaneseq
    %v1990 = vshrl.u32 %v1989, 7
    %v1991 = vsub.s32 0, %v1990
    %v1992 = vrot.slane %v1983, %v1991
    %v1993 = vlaneseq
    %v1994 = vshrl.u32 %v1993, 7
    %v1995 = vsub.s32 1, %v1994
    %v1996 = vrot.slane %v1983, %v1995
    %v1997 = vlaneseq
    %v1998 = vshrl.u32 %v1997, 7
    %v1999 = vsub.s32 2, %v1998
    %v2000 = vrot.slane %v1983, %v1999
    %v2001 = vlaneseq
    %v2002 = vshrl.u32 %v2001, 7
    %v2003 = vsub.s32 3, %v2002
    %v2004 = vrot.slane %v1983, %v2003
    %v2009 = vmul.f32 %v1986, %v1992
    %v2010 = vmul.f32 %v1986, %v1996
    %v2011 = vmul.f32 %v1986, %v2000
    %v2012 = vmul.f32 %v1986, %v2004
    %v2013 = vadd.f32 %v1978, %v2009
    %v2014 = vadd.f32 %v1979, %v2010
    %v2015 = vadd.f32 %v1980, %v2011
    %v2016 = vadd.f32 %v1981, %v2012
    %v2017 = vld [vmem:[%s6] sm:$0xf]
    %v2019 = vlaneseq
    %v2020 = vshrl.u32 %v2019, 7
    %v2021 = vsub.s32 0, %v2020
    %v2022 = vrot.slane %v2017, %v2021
    %v2023 = vlaneseq
    %v2024 = vshrl.u32 %v2023, 7
    %v2025 = vsub.s32 1, %v2024
    %v2026 = vrot.slane %v2017, %v2025
    %v2027 = vlaneseq
    %v2028 = vshrl.u32 %v2027, 7
    %v2029 = vsub.s32 2, %v2028
    %v2030 = vrot.slane %v2017, %v2029
    %v2031 = vlaneseq
    %v2032 = vshrl.u32 %v2031, 7
    %v2033 = vsub.s32 3, %v2032
    %v2034 = vrot.slane %v2017, %v2033
    %v2039 = vadd.f32 %v2013, %v2022
    %v2040 = vadd.f32 %v2014, %v2026
    %v2041 = vadd.f32 %v2015, %v2030
    %v2042 = vadd.f32 %v2016, %v2034
    %v2043 = vmax.f32 %v2039, 0.0
    %v2044 = vmax.f32 %v2040, 0.0
    %v2045 = vmax.f32 %v2041, 0.0
    %v2046 = vmax.f32 %v2042, 0.0
    %v2047 = vpack.c.bf16 %v2043, %v2043
    %v2048 = vpack.c.bf16 %v2044, %v2044
    %v2049 = vpack.c.bf16 %v2045, %v2045
    %v2050 = vpack.c.bf16 %v2046, %v2046
    %v2051 = vld [vmem:[%s7] sm:$0xff]
    %v2052 = vld [vmem:[%s7 + $0x8] sm:$0xff]
    %v2053 = vld [vmem:[%s7 + $0x10] sm:$0xff]
    %v2054 = vld [vmem:[%s7 + $0x18] sm:$0xf]
    %v2055 = vld [vmem:[%s7 + $0x1c] sm:$0xff]
    %v2056 = vld [vmem:[%s7 + $0x24] sm:$0xff]
    %v2057 = vld [vmem:[%s7 + $0x2c] sm:$0xff]
    %v2058 = vld [vmem:[%s7 + $0x34] sm:$0xf]
    %v2059 = vld [vmem:[%s7 + $0x38] sm:$0xff]
    %v2060 = vld [vmem:[%s7 + $0x40] sm:$0xff]
    %v2061 = vld [vmem:[%s7 + $0x48] sm:$0xff]
    %v2062 = vld [vmem:[%s7 + $0x50] sm:$0xf]
    %v2063 = vld [vmem:[%s7 + $0x54] sm:$0xff]
    %v2064 = vld [vmem:[%s7 + $0x5c] sm:$0xff]
    %v2065 = vld [vmem:[%s7 + $0x64] sm:$0xff]
    %v2066 = vld [vmem:[%s7 + $0x6c] sm:$0xf]
    %v2067 = vld [vmem:[%s7 + $0x70] sm:$0xff]
    %v2068 = vld [vmem:[%s7 + $0x78] sm:$0xff]
    %v2069 = vld [vmem:[%s7 + $0x80] sm:$0xff]
    %v2070 = vld [vmem:[%s7 + $0x88] sm:$0xf]
    %v2071 = vld [vmem:[%s7 + $0x8c] sm:$0xff]
    %v2072 = vld [vmem:[%s7 + $0x94] sm:$0xff]
    %v2073 = vld [vmem:[%s7 + $0x9c] sm:$0xff]
    %v2074 = vld [vmem:[%s7 + $0xa4] sm:$0xf]
    %v2075 = vld [vmem:[%s7 + $0xa8] sm:$0xff]
    %v2076 = vld [vmem:[%s7 + $0xb0] sm:$0xff]
    %v2077 = vld [vmem:[%s7 + $0xb8] sm:$0xff]
    %v2078 = vld [vmem:[%s7 + $0xc0] sm:$0xf]
    %v2079 = vld [vmem:[%s7 + $0xc4] sm:$0xff]
    %v2080 = vld [vmem:[%s7 + $0xcc] sm:$0xff]
    %v2081 = vld [vmem:[%s7 + $0xd4] sm:$0xff]
    %v2082 = vld [vmem:[%s7 + $0xdc] sm:$0xf]
    %v2083 = vld [vmem:[%s7 + $0xe0] sm:$0xff]
    %v2084 = vld [vmem:[%s7 + $0xe8] sm:$0xff]
    %v2085 = vld [vmem:[%s7 + $0xf0] sm:$0xff]
    %v2086 = vld [vmem:[%s7 + $0xf8] sm:$0xf]
    %v2087 = vld [vmem:[%s7 + $0xfc] sm:$0xff]
    %v2088 = vld [vmem:[%s7 + $0x104] sm:$0xff]
    %v2089 = vld [vmem:[%s7 + $0x10c] sm:$0xff]
    %v2090 = vld [vmem:[%s7 + $0x114] sm:$0xf]
    %v2091 = vld [vmem:[%s7 + $0x118] sm:$0xff]
    %v2092 = vld [vmem:[%s7 + $0x120] sm:$0xff]
    %v2093 = vld [vmem:[%s7 + $0x128] sm:$0xff]
    %v2094 = vld [vmem:[%s7 + $0x130] sm:$0xf]
    %v2095 = vld [vmem:[%s7 + $0x134] sm:$0xff]
    %v2096 = vld [vmem:[%s7 + $0x13c] sm:$0xff]
    %v2097 = vld [vmem:[%s7 + $0x144] sm:$0xff]
    %v2098 = vld [vmem:[%s7 + $0x14c] sm:$0xf]
    %v2099 = vld [vmem:[%s7 + $0x150] sm:$0xff]
    %v2100 = vld [vmem:[%s7 + $0x158] sm:$0xff]
    %v2101 = vld [vmem:[%s7 + $0x160] sm:$0xff]
    %v2102 = vld [vmem:[%s7 + $0x168] sm:$0xf]
    %v2103 = vld [vmem:[%s7 + $0x16c] sm:$0xff]
    %v2104 = vld [vmem:[%s7 + $0x174] sm:$0xff]
    %v2105 = vld [vmem:[%s7 + $0x17c] sm:$0xff]
    %v2106 = vld [vmem:[%s7 + $0x184] sm:$0xf]
    %v2107 = vld [vmem:[%s7 + $0x188] sm:$0xff]
    %v2108 = vld [vmem:[%s7 + $0x190] sm:$0xff]
    %v2109 = vld [vmem:[%s7 + $0x198] sm:$0xff]
    %v2110 = vld [vmem:[%s7 + $0x1a0] sm:$0xf]
    %v2111 = vld [vmem:[%s7 + $0x1a4] sm:$0xff]
    %v2112 = vld [vmem:[%s7 + $0x1ac] sm:$0xff]
    %v2113 = vld [vmem:[%s7 + $0x1b4] sm:$0xff]
    %v2114 = vld [vmem:[%s7 + $0x1bc] sm:$0xf]
    %v2115 = vld [vmem:[%s7 + $0x1c0] sm:$0xff]
    %v2116 = vld [vmem:[%s7 + $0x1c8] sm:$0xff]
    %v2117 = vld [vmem:[%s7 + $0x1d0] sm:$0xff]
    %v2118 = vld [vmem:[%s7 + $0x1d8] sm:$0xf]
    %v2119 = vld [vmem:[%s7 + $0x1dc] sm:$0xff]
    %v2120 = vld [vmem:[%s7 + $0x1e4] sm:$0xff]
    %v2121 = vld [vmem:[%s7 + $0x1ec] sm:$0xff]
    %v2122 = vld [vmem:[%s7 + $0x1f4] sm:$0xf]
    %v2123 = vld [vmem:[%s7 + $0x1f8] sm:$0xff]
    %v2124 = vld [vmem:[%s7 + $0x200] sm:$0xff]
    %v2125 = vld [vmem:[%s7 + $0x208] sm:$0xff]
    %v2126 = vld [vmem:[%s7 + $0x210] sm:$0xf]
    %v2127 = vld [vmem:[%s7 + $0x214] sm:$0xff]
    %v2128 = vld [vmem:[%s7 + $0x21c] sm:$0xff]
    %v2129 = vld [vmem:[%s7 + $0x224] sm:$0xff]
    %v2130 = vld [vmem:[%s7 + $0x22c] sm:$0xf]
    %v2131 = vld [vmem:[%s7 + $0x230] sm:$0xff]
    %v2132 = vld [vmem:[%s7 + $0x238] sm:$0xff]
    %v2133 = vld [vmem:[%s7 + $0x240] sm:$0xff]
    %v2134 = vld [vmem:[%s7 + $0x248] sm:$0xf]
    %v2135 = vld [vmem:[%s7 + $0x24c] sm:$0xff]
    %v2136 = vld [vmem:[%s7 + $0x254] sm:$0xff]
    %v2137 = vld [vmem:[%s7 + $0x25c] sm:$0xff]
    %v2138 = vld [vmem:[%s7 + $0x264] sm:$0xf]
    %v2139 = vld [vmem:[%s7 + $0x268] sm:$0xff]
    %v2140 = vld [vmem:[%s7 + $0x270] sm:$0xff]
    %v2141 = vld [vmem:[%s7 + $0x278] sm:$0xff]
    %v2142 = vld [vmem:[%s7 + $0x280] sm:$0xf]
    %v2143 = vld [vmem:[%s7 + $0x284] sm:$0xff]
    %v2144 = vld [vmem:[%s7 + $0x28c] sm:$0xff]
    %v2145 = vld [vmem:[%s7 + $0x294] sm:$0xff]
    %v2146 = vld [vmem:[%s7 + $0x29c] sm:$0xf]
    %v2147 = vld [vmem:[%s7 + $0x2a0] sm:$0xff]
    %v2148 = vld [vmem:[%s7 + $0x2a8] sm:$0xff]
    %v2149 = vld [vmem:[%s7 + $0x2b0] sm:$0xff]
    %v2150 = vld [vmem:[%s7 + $0x2b8] sm:$0xf]
    %v2151 = vld [vmem:[%s7 + $0x2bc] sm:$0xff]
    %v2152 = vld [vmem:[%s7 + $0x2c4] sm:$0xff]
    %v2153 = vld [vmem:[%s7 + $0x2cc] sm:$0xff]
    %v2154 = vld [vmem:[%s7 + $0x2d4] sm:$0xf]
    %v2155 = vld [vmem:[%s7 + $0x2d8] sm:$0xff]
    %v2156 = vld [vmem:[%s7 + $0x2e0] sm:$0xff]
    %v2157 = vld [vmem:[%s7 + $0x2e8] sm:$0xff]
    %v2158 = vld [vmem:[%s7 + $0x2f0] sm:$0xf]
    %v2159 = vld [vmem:[%s7 + $0x2f4] sm:$0xff]
    %v2160 = vld [vmem:[%s7 + $0x2fc] sm:$0xff]
    %v2161 = vld [vmem:[%s7 + $0x304] sm:$0xff]
    %v2162 = vld [vmem:[%s7 + $0x30c] sm:$0xf]
    %v2163 = vld [vmem:[%s7 + $0x310] sm:$0xff]
    %v2164 = vld [vmem:[%s7 + $0x318] sm:$0xff]
    %v2165 = vld [vmem:[%s7 + $0x320] sm:$0xff]
    %v2166 = vld [vmem:[%s7 + $0x328] sm:$0xf]
    %v2167 = vld [vmem:[%s7 + $0x32c] sm:$0xff]
    %v2168 = vld [vmem:[%s7 + $0x334] sm:$0xff]
    %v2169 = vld [vmem:[%s7 + $0x33c] sm:$0xff]
    %v2170 = vld [vmem:[%s7 + $0x344] sm:$0xf]
    %v2171 = vld [vmem:[%s7 + $0x348] sm:$0xff]
    %v2172 = vld [vmem:[%s7 + $0x350] sm:$0xff]
    %v2173 = vld [vmem:[%s7 + $0x358] sm:$0xff]
    %v2174 = vld [vmem:[%s7 + $0x360] sm:$0xf]
    %v2175 = vld [vmem:[%s7 + $0x364] sm:$0xff]
    %v2176 = vld [vmem:[%s7 + $0x36c] sm:$0xff]
    %v2177 = vld [vmem:[%s7 + $0x374] sm:$0xff]
    %v2178 = vld [vmem:[%s7 + $0x37c] sm:$0xf]
    %v2179 = vld [vmem:[%s7 + $0x380] sm:$0xff]
    %v2180 = vld [vmem:[%s7 + $0x388] sm:$0xff]
    %v2181 = vld [vmem:[%s7 + $0x390] sm:$0xff]
    %v2182 = vld [vmem:[%s7 + $0x398] sm:$0xf]
    %v2183 = vld [vmem:[%s7 + $0x39c] sm:$0xff]
    %v2184 = vld [vmem:[%s7 + $0x3a4] sm:$0xff]
    %v2185 = vld [vmem:[%s7 + $0x3ac] sm:$0xff]
    %v2186 = vld [vmem:[%s7 + $0x3b4] sm:$0xf]
    %v2187 = vld [vmem:[%s7 + $0x3b8] sm:$0xff]
    %v2188 = vld [vmem:[%s7 + $0x3c0] sm:$0xff]
    %v2189 = vld [vmem:[%s7 + $0x3c8] sm:$0xff]
    %v2190 = vld [vmem:[%s7 + $0x3d0] sm:$0xf]
    %v2191 = vld [vmem:[%s7 + $0x3d4] sm:$0xff]
    %v2192 = vld [vmem:[%s7 + $0x3dc] sm:$0xff]
    %v2193 = vld [vmem:[%s7 + $0x3e4] sm:$0xff]
    %v2194 = vld [vmem:[%s7 + $0x3ec] sm:$0xf]
    %v2195 = vld [vmem:[%s7 + $0x3f0] sm:$0xff]
    %v2196 = vld [vmem:[%s7 + $0x3f8] sm:$0xff]
    %v2197 = vld [vmem:[%s7 + $0x400] sm:$0xff]
    %v2198 = vld [vmem:[%s7 + $0x408] sm:$0xf]
    %v2199 = vld [vmem:[%s7 + $0x40c] sm:$0xff]
    %v2200 = vld [vmem:[%s7 + $0x414] sm:$0xff]
    %v2201 = vld [vmem:[%s7 + $0x41c] sm:$0xff]
    %v2202 = vld [vmem:[%s7 + $0x424] sm:$0xf]
    %v2203 = vld [vmem:[%s7 + $0x428] sm:$0xff]
    %v2204 = vld [vmem:[%s7 + $0x430] sm:$0xff]
    %v2205 = vld [vmem:[%s7 + $0x438] sm:$0xff]
    %v2206 = vld [vmem:[%s7 + $0x440] sm:$0xf]
    %v2207 = vld [vmem:[%s7 + $0x444] sm:$0xff]
    %v2208 = vld [vmem:[%s7 + $0x44c] sm:$0xff]
    %v2209 = vld [vmem:[%s7 + $0x454] sm:$0xff]
    %v2210 = vld [vmem:[%s7 + $0x45c] sm:$0xf]
    %v2211 = vld [vmem:[%s7 + $0x460] sm:$0xff]
    %v2212 = vld [vmem:[%s7 + $0x468] sm:$0xff]
    %v2213 = vld [vmem:[%s7 + $0x470] sm:$0xff]
    %v2214 = vld [vmem:[%s7 + $0x478] sm:$0xf]
    %v2215 = vld [vmem:[%s7 + $0x47c] sm:$0xff]
    %v2216 = vld [vmem:[%s7 + $0x484] sm:$0xff]
    %v2217 = vld [vmem:[%s7 + $0x48c] sm:$0xff]
    %v2218 = vld [vmem:[%s7 + $0x494] sm:$0xf]
    %v2219 = vld [vmem:[%s7 + $0x498] sm:$0xff]
    %v2220 = vld [vmem:[%s7 + $0x4a0] sm:$0xff]
    %v2221 = vld [vmem:[%s7 + $0x4a8] sm:$0xff]
    %v2222 = vld [vmem:[%s7 + $0x4b0] sm:$0xf]
    %v2223 = vld [vmem:[%s7 + $0x4b4] sm:$0xff]
    %v2224 = vld [vmem:[%s7 + $0x4bc] sm:$0xff]
    %v2225 = vld [vmem:[%s7 + $0x4c4] sm:$0xff]
    %v2226 = vld [vmem:[%s7 + $0x4cc] sm:$0xf]
    %v2227 = vld [vmem:[%s7 + $0x4d0] sm:$0xff]
    %v2228 = vld [vmem:[%s7 + $0x4d8] sm:$0xff]
    %v2229 = vld [vmem:[%s7 + $0x4e0] sm:$0xff]
    %v2230 = vld [vmem:[%s7 + $0x4e8] sm:$0xf]
    %v2231 = vld [vmem:[%s7 + $0x4ec] sm:$0xff]
    %v2232 = vld [vmem:[%s7 + $0x4f4] sm:$0xff]
    %v2233 = vld [vmem:[%s7 + $0x4fc] sm:$0xff]
    %v2234 = vld [vmem:[%s7 + $0x504] sm:$0xf]
    %v2235 = vld [vmem:[%s7 + $0x508] sm:$0xff]
    %v2236 = vld [vmem:[%s7 + $0x510] sm:$0xff]
    %v2237 = vld [vmem:[%s7 + $0x518] sm:$0xff]
    %v2238 = vld [vmem:[%s7 + $0x520] sm:$0xf]
    %v2239 = vld [vmem:[%s7 + $0x524] sm:$0xff]
    %v2240 = vld [vmem:[%s7 + $0x52c] sm:$0xff]
    %v2241 = vld [vmem:[%s7 + $0x534] sm:$0xff]
    %v2242 = vld [vmem:[%s7 + $0x53c] sm:$0xf]
    %v2243 = vld [vmem:[%s7 + $0x540] sm:$0xff]
    %v2244 = vld [vmem:[%s7 + $0x548] sm:$0xff]
    %v2245 = vld [vmem:[%s7 + $0x550] sm:$0xff]
    %v2246 = vld [vmem:[%s7 + $0x558] sm:$0xf]
    %v2247 = vld [vmem:[%s7 + $0x55c] sm:$0xff]
    %v2248 = vld [vmem:[%s7 + $0x564] sm:$0xff]
    %v2249 = vld [vmem:[%s7 + $0x56c] sm:$0xff]
    %v2250 = vld [vmem:[%s7 + $0x574] sm:$0xf]
    %v2251 = vld [vmem:[%s7 + $0x578] sm:$0xff]
    %v2252 = vld [vmem:[%s7 + $0x580] sm:$0xff]
    %v2253 = vld [vmem:[%s7 + $0x588] sm:$0xff]
    %v2254 = vld [vmem:[%s7 + $0x590] sm:$0xf]
    %v2255 = vld [vmem:[%s7 + $0x594] sm:$0xff]
    %v2256 = vld [vmem:[%s7 + $0x59c] sm:$0xff]
    %v2257 = vld [vmem:[%s7 + $0x5a4] sm:$0xff]
    %v2258 = vld [vmem:[%s7 + $0x5ac] sm:$0xf]
    %v2259 = vld [vmem:[%s7 + $0x5b0] sm:$0xff]
    %v2260 = vld [vmem:[%s7 + $0x5b8] sm:$0xff]
    %v2261 = vld [vmem:[%s7 + $0x5c0] sm:$0xff]
    %v2262 = vld [vmem:[%s7 + $0x5c8] sm:$0xf]
    %v2263 = vld [vmem:[%s7 + $0x5cc] sm:$0xff]
    %v2264 = vld [vmem:[%s7 + $0x5d4] sm:$0xff]
    %v2265 = vld [vmem:[%s7 + $0x5dc] sm:$0xff]
    %v2266 = vld [vmem:[%s7 + $0x5e4] sm:$0xf]
    %v2267 = vld [vmem:[%s7 + $0x5e8] sm:$0xff]
    %v2268 = vld [vmem:[%s7 + $0x5f0] sm:$0xff]
    %v2269 = vld [vmem:[%s7 + $0x5f8] sm:$0xff]
    %v2270 = vld [vmem:[%s7 + $0x600] sm:$0xf]
    %v2271 = vld [vmem:[%s7 + $0x604] sm:$0xff]
    %v2272 = vld [vmem:[%s7 + $0x60c] sm:$0xff]
    %v2273 = vld [vmem:[%s7 + $0x614] sm:$0xff]
    %v2274 = vld [vmem:[%s7 + $0x61c] sm:$0xf]
    %v2275 = vld [vmem:[%s7 + $0x620] sm:$0xff]
    %v2276 = vld [vmem:[%s7 + $0x628] sm:$0xff]
    %v2277 = vld [vmem:[%s7 + $0x630] sm:$0xff]
    %v2278 = vld [vmem:[%s7 + $0x638] sm:$0xf]
    %v2279 = vld [vmem:[%s7 + $0x63c] sm:$0xff]
    %v2280 = vld [vmem:[%s7 + $0x644] sm:$0xff]
    %v2281 = vld [vmem:[%s7 + $0x64c] sm:$0xff]
    %v2282 = vld [vmem:[%s7 + $0x654] sm:$0xf]
    %v2283 = vld [vmem:[%s7 + $0x658] sm:$0xff]
    %v2284 = vld [vmem:[%s7 + $0x660] sm:$0xff]
    %v2285 = vld [vmem:[%s7 + $0x668] sm:$0xff]
    %v2286 = vld [vmem:[%s7 + $0x670] sm:$0xf]
    %v2287 = vld [vmem:[%s7 + $0x674] sm:$0xff]
    %v2288 = vld [vmem:[%s7 + $0x67c] sm:$0xff]
    %v2289 = vld [vmem:[%s7 + $0x684] sm:$0xff]
    %v2290 = vld [vmem:[%s7 + $0x68c] sm:$0xf]
    %v2291 = vld [vmem:[%s7 + $0x690] sm:$0xff]
    %v2292 = vld [vmem:[%s7 + $0x698] sm:$0xff]
    %v2293 = vld [vmem:[%s7 + $0x6a0] sm:$0xff]
    %v2294 = vld [vmem:[%s7 + $0x6a8] sm:$0xf]
    %v2295 = vld [vmem:[%s7 + $0x6ac] sm:$0xff]
    %v2296 = vld [vmem:[%s7 + $0x6b4] sm:$0xff]
    %v2297 = vld [vmem:[%s7 + $0x6bc] sm:$0xff]
    %v2298 = vld [vmem:[%s7 + $0x6c4] sm:$0xf]
    %v2299 = vld [vmem:[%s7 + $0x6c8] sm:$0xff]
    %v2300 = vld [vmem:[%s7 + $0x6d0] sm:$0xff]
    %v2301 = vld [vmem:[%s7 + $0x6d8] sm:$0xff]
    %v2302 = vld [vmem:[%s7 + $0x6e0] sm:$0xf]
    %v2303 = vld [vmem:[%s7 + $0x6e4] sm:$0xff]
    %v2304 = vld [vmem:[%s7 + $0x6ec] sm:$0xff]
    %v2305 = vld [vmem:[%s7 + $0x6f4] sm:$0xff]
    %v2306 = vld [vmem:[%s7 + $0x6fc] sm:$0xf]
    %v2307 = vld [vmem:[%s8] sm:$0x7f]
    %v2309 = vlaneseq
    %v2310 = vshrl.u32 %v2309, 7
    %v2311 = vsub.s32 0, %v2310
    %v2312 = vrot.slane %v2307, %v2311
    %v2313 = vlaneseq
    %v2314 = vshrl.u32 %v2313, 7
    %v2315 = vsub.s32 1, %v2314
    %v2316 = vrot.slane %v2307, %v2315
    %v2317 = vlaneseq
    %v2318 = vshrl.u32 %v2317, 7
    %v2319 = vsub.s32 2, %v2318
    %v2320 = vrot.slane %v2307, %v2319
    %v2321 = vlaneseq
    %v2322 = vshrl.u32 %v2321, 7
    %v2323 = vsub.s32 3, %v2322
    %v2324 = vrot.slane %v2307, %v2323
    %v2325 = vlaneseq
    %v2326 = vshrl.u32 %v2325, 7
    %v2327 = vsub.s32 4, %v2326
    %v2328 = vrot.slane %v2307, %v2327
    %v2329 = vlaneseq
    %v2330 = vshrl.u32 %v2329, 7
    %v2331 = vsub.s32 5, %v2330
    %v2332 = vrot.slane %v2307, %v2331
    %v2333 = vlaneseq
    %v2334 = vshrl.u32 %v2333, 7
    %v2335 = vsub.s32 6, %v2334
    %v2336 = vrot.slane %v2307, %v2335
    %v2600 = vunpack.c.l.b16 %v2051
    %v2601 = vunpack.c.h.b16 %v2051
    %v2602 = vunpack.c.l.b16 %v2052
    %v2603 = vunpack.c.h.b16 %v2052
    %v2604 = vunpack.c.l.b16 %v2053
    %v2605 = vunpack.c.h.b16 %v2053
    %v2606 = vunpack.c.l.b16 %v2054
    %v2607 = vunpack.c.l.b16 %v2055
    %v2608 = vunpack.c.h.b16 %v2055
    %v2609 = vunpack.c.l.b16 %v2056
    %v2610 = vunpack.c.h.b16 %v2056
    %v2611 = vunpack.c.l.b16 %v2057
    %v2612 = vunpack.c.h.b16 %v2057
    %v2613 = vunpack.c.l.b16 %v2058
    %v2614 = vunpack.c.l.b16 %v2059
    %v2615 = vunpack.c.h.b16 %v2059
    %v2616 = vunpack.c.l.b16 %v2060
    %v2617 = vunpack.c.h.b16 %v2060
    %v2618 = vunpack.c.l.b16 %v2061
    %v2619 = vunpack.c.h.b16 %v2061
    %v2620 = vunpack.c.l.b16 %v2062
    %v2621 = vunpack.c.l.b16 %v2063
    %v2622 = vunpack.c.h.b16 %v2063
    %v2623 = vunpack.c.l.b16 %v2064
    %v2624 = vunpack.c.h.b16 %v2064
    %v2625 = vunpack.c.l.b16 %v2065
    %v2626 = vunpack.c.h.b16 %v2065
    %v2627 = vunpack.c.l.b16 %v2066
    %v2628 = vunpack.c.l.b16 %v2067
    %v2629 = vunpack.c.h.b16 %v2067
    %v2630 = vunpack.c.l.b16 %v2068
    %v2631 = vunpack.c.h.b16 %v2068
    %v2632 = vunpack.c.l.b16 %v2069
    %v2633 = vunpack.c.h.b16 %v2069
    %v2634 = vunpack.c.l.b16 %v2070
    %v2635 = vunpack.c.l.b16 %v2071
    %v2636 = vunpack.c.h.b16 %v2071
    %v2637 = vunpack.c.l.b16 %v2072
    %v2638 = vunpack.c.h.b16 %v2072
    %v2639 = vunpack.c.l.b16 %v2073
    %v2640 = vunpack.c.h.b16 %v2073
    %v2641 = vunpack.c.l.b16 %v2074
    %v2642 = vunpack.c.l.b16 %v2075
    %v2643 = vunpack.c.h.b16 %v2075
    %v2644 = vunpack.c.l.b16 %v2076
    %v2645 = vunpack.c.h.b16 %v2076
    %v2646 = vunpack.c.l.b16 %v2077
    %v2647 = vunpack.c.h.b16 %v2077
    %v2648 = vunpack.c.l.b16 %v2078
    %v2649 = vunpack.c.l.b16 %v2079
    %v2650 = vunpack.c.h.b16 %v2079
    %v2651 = vunpack.c.l.b16 %v2080
    %v2652 = vunpack.c.h.b16 %v2080
    %v2653 = vunpack.c.l.b16 %v2081
    %v2654 = vunpack.c.h.b16 %v2081
    %v2655 = vunpack.c.l.b16 %v2082
    %v2656 = vunpack.c.l.b16 %v2083
    %v2657 = vunpack.c.h.b16 %v2083
    %v2658 = vunpack.c.l.b16 %v2084
    %v2659 = vunpack.c.h.b16 %v2084
    %v2660 = vunpack.c.l.b16 %v2085
    %v2661 = vunpack.c.h.b16 %v2085
    %v2662 = vunpack.c.l.b16 %v2086
    %v2663 = vunpack.c.l.b16 %v2087
    %v2664 = vunpack.c.h.b16 %v2087
    %v2665 = vunpack.c.l.b16 %v2088
    %v2666 = vunpack.c.h.b16 %v2088
    %v2667 = vunpack.c.l.b16 %v2089
    %v2668 = vunpack.c.h.b16 %v2089
    %v2669 = vunpack.c.l.b16 %v2090
    %v2670 = vunpack.c.l.b16 %v2091
    %v2671 = vunpack.c.h.b16 %v2091
    %v2672 = vunpack.c.l.b16 %v2092
    %v2673 = vunpack.c.h.b16 %v2092
    %v2674 = vunpack.c.l.b16 %v2093
    %v2675 = vunpack.c.h.b16 %v2093
    %v2676 = vunpack.c.l.b16 %v2094
    %v2677 = vunpack.c.l.b16 %v2095
    %v2678 = vunpack.c.h.b16 %v2095
    %v2679 = vunpack.c.l.b16 %v2096
    %v2680 = vunpack.c.h.b16 %v2096
    %v2681 = vunpack.c.l.b16 %v2097
    %v2682 = vunpack.c.h.b16 %v2097
    %v2683 = vunpack.c.l.b16 %v2098
    %v2684 = vunpack.c.l.b16 %v2099
    %v2685 = vunpack.c.h.b16 %v2099
    %v2686 = vunpack.c.l.b16 %v2100
    %v2687 = vunpack.c.h.b16 %v2100
    %v2688 = vunpack.c.l.b16 %v2101
    %v2689 = vunpack.c.h.b16 %v2101
    %v2690 = vunpack.c.l.b16 %v2102
    %v2691 = vunpack.c.l.b16 %v2103
    %v2692 = vunpack.c.h.b16 %v2103
    %v2693 = vunpack.c.l.b16 %v2104
    %v2694 = vunpack.c.h.b16 %v2104
    %v2695 = vunpack.c.l.b16 %v2105
    %v2696 = vunpack.c.h.b16 %v2105
    %v2697 = vunpack.c.l.b16 %v2106
    %v2698 = vunpack.c.l.b16 %v2107
    %v2699 = vunpack.c.h.b16 %v2107
    %v2700 = vunpack.c.l.b16 %v2108
    %v2701 = vunpack.c.h.b16 %v2108
    %v2702 = vunpack.c.l.b16 %v2109
    %v2703 = vunpack.c.h.b16 %v2109
    %v2704 = vunpack.c.l.b16 %v2110
    %v2705 = vunpack.c.l.b16 %v2111
    %v2706 = vunpack.c.h.b16 %v2111
    %v2707 = vunpack.c.l.b16 %v2112
    %v2708 = vunpack.c.h.b16 %v2112
    %v2709 = vunpack.c.l.b16 %v2113
    %v2710 = vunpack.c.h.b16 %v2113
    %v2711 = vunpack.c.l.b16 %v2114
    %v2712 = vunpack.c.l.b16 %v2115
    %v2713 = vunpack.c.h.b16 %v2115
    %v2714 = vunpack.c.l.b16 %v2116
    %v2715 = vunpack.c.h.b16 %v2116
    %v2716 = vunpack.c.l.b16 %v2117
    %v2717 = vunpack.c.h.b16 %v2117
    %v2718 = vunpack.c.l.b16 %v2118
    %v2719 = vunpack.c.l.b16 %v2119
    %v2720 = vunpack.c.h.b16 %v2119
    %v2721 = vunpack.c.l.b16 %v2120
    %v2722 = vunpack.c.h.b16 %v2120
    %v2723 = vunpack.c.l.b16 %v2121
    %v2724 = vunpack.c.h.b16 %v2121
    %v2725 = vunpack.c.l.b16 %v2122
    %v2726 = vunpack.c.l.b16 %v2123
    %v2727 = vunpack.c.h.b16 %v2123
    %v2728 = vunpack.c.l.b16 %v2124
    %v2729 = vunpack.c.h.b16 %v2124
    %v2730 = vunpack.c.l.b16 %v2125
    %v2731 = vunpack.c.h.b16 %v2125
    %v2732 = vunpack.c.l.b16 %v2126
    %v2733 = vunpack.c.l.b16 %v2127
    %v2734 = vunpack.c.h.b16 %v2127
    %v2735 = vunpack.c.l.b16 %v2128
    %v2736 = vunpack.c.h.b16 %v2128
    %v2737 = vunpack.c.l.b16 %v2129
    %v2738 = vunpack.c.h.b16 %v2129
    %v2739 = vunpack.c.l.b16 %v2130
    %v2740 = vunpack.c.l.b16 %v2131
    %v2741 = vunpack.c.h.b16 %v2131
    %v2742 = vunpack.c.l.b16 %v2132
    %v2743 = vunpack.c.h.b16 %v2132
    %v2744 = vunpack.c.l.b16 %v2133
    %v2745 = vunpack.c.h.b16 %v2133
    %v2746 = vunpack.c.l.b16 %v2134
    %v2747 = vunpack.c.l.b16 %v2135
    %v2748 = vunpack.c.h.b16 %v2135
    %v2749 = vunpack.c.l.b16 %v2136
    %v2750 = vunpack.c.h.b16 %v2136
    %v2751 = vunpack.c.l.b16 %v2137
    %v2752 = vunpack.c.h.b16 %v2137
    %v2753 = vunpack.c.l.b16 %v2138
    %v2754 = vunpack.c.l.b16 %v2139
    %v2755 = vunpack.c.h.b16 %v2139
    %v2756 = vunpack.c.l.b16 %v2140
    %v2757 = vunpack.c.h.b16 %v2140
    %v2758 = vunpack.c.l.b16 %v2141
    %v2759 = vunpack.c.h.b16 %v2141
    %v2760 = vunpack.c.l.b16 %v2142
    %v2761 = vunpack.c.l.b16 %v2143
    %v2762 = vunpack.c.h.b16 %v2143
    %v2763 = vunpack.c.l.b16 %v2144
    %v2764 = vunpack.c.h.b16 %v2144
    %v2765 = vunpack.c.l.b16 %v2145
    %v2766 = vunpack.c.h.b16 %v2145
    %v2767 = vunpack.c.l.b16 %v2146
    %v2768 = vunpack.c.l.b16 %v2147
    %v2769 = vunpack.c.h.b16 %v2147
    %v2770 = vunpack.c.l.b16 %v2148
    %v2771 = vunpack.c.h.b16 %v2148
    %v2772 = vunpack.c.l.b16 %v2149
    %v2773 = vunpack.c.h.b16 %v2149
    %v2774 = vunpack.c.l.b16 %v2150
    %v2775 = vunpack.c.l.b16 %v2151
    %v2776 = vunpack.c.h.b16 %v2151
    %v2777 = vunpack.c.l.b16 %v2152
    %v2778 = vunpack.c.h.b16 %v2152
    %v2779 = vunpack.c.l.b16 %v2153
    %v2780 = vunpack.c.h.b16 %v2153
    %v2781 = vunpack.c.l.b16 %v2154
    %v2782 = vunpack.c.l.b16 %v2155
    %v2783 = vunpack.c.h.b16 %v2155
    %v2784 = vunpack.c.l.b16 %v2156
    %v2785 = vunpack.c.h.b16 %v2156
    %v2786 = vunpack.c.l.b16 %v2157
    %v2787 = vunpack.c.h.b16 %v2157
    %v2788 = vunpack.c.l.b16 %v2158
    %v2789 = vunpack.c.l.b16 %v2159
    %v2790 = vunpack.c.h.b16 %v2159
    %v2791 = vunpack.c.l.b16 %v2160
    %v2792 = vunpack.c.h.b16 %v2160
    %v2793 = vunpack.c.l.b16 %v2161
    %v2794 = vunpack.c.h.b16 %v2161
    %v2795 = vunpack.c.l.b16 %v2162
    %v2796 = vunpack.c.l.b16 %v2163
    %v2797 = vunpack.c.h.b16 %v2163
    %v2798 = vunpack.c.l.b16 %v2164
    %v2799 = vunpack.c.h.b16 %v2164
    %v2800 = vunpack.c.l.b16 %v2165
    %v2801 = vunpack.c.h.b16 %v2165
    %v2802 = vunpack.c.l.b16 %v2166
    %v2803 = vunpack.c.l.b16 %v2167
    %v2804 = vunpack.c.h.b16 %v2167
    %v2805 = vunpack.c.l.b16 %v2168
    %v2806 = vunpack.c.h.b16 %v2168
    %v2807 = vunpack.c.l.b16 %v2169
    %v2808 = vunpack.c.h.b16 %v2169
    %v2809 = vunpack.c.l.b16 %v2170
    %v2810 = vunpack.c.l.b16 %v2171
    %v2811 = vunpack.c.h.b16 %v2171
    %v2812 = vunpack.c.l.b16 %v2172
    %v2813 = vunpack.c.h.b16 %v2172
    %v2814 = vunpack.c.l.b16 %v2173
    %v2815 = vunpack.c.h.b16 %v2173
    %v2816 = vunpack.c.l.b16 %v2174
    %v2817 = vunpack.c.l.b16 %v2175
    %v2818 = vunpack.c.h.b16 %v2175
    %v2819 = vunpack.c.l.b16 %v2176
    %v2820 = vunpack.c.h.b16 %v2176
    %v2821 = vunpack.c.l.b16 %v2177
    %v2822 = vunpack.c.h.b16 %v2177
    %v2823 = vunpack.c.l.b16 %v2178
    %v2824 = vunpack.c.l.b16 %v2179
    %v2825 = vunpack.c.h.b16 %v2179
    %v2826 = vunpack.c.l.b16 %v2180
    %v2827 = vunpack.c.h.b16 %v2180
    %v2828 = vunpack.c.l.b16 %v2181
    %v2829 = vunpack.c.h.b16 %v2181
    %v2830 = vunpack.c.l.b16 %v2182
    %v2831 = vunpack.c.l.b16 %v2183
    %v2832 = vunpack.c.h.b16 %v2183
    %v2833 = vunpack.c.l.b16 %v2184
    %v2834 = vunpack.c.h.b16 %v2184
    %v2835 = vunpack.c.l.b16 %v2185
    %v2836 = vunpack.c.h.b16 %v2185
    %v2837 = vunpack.c.l.b16 %v2186
    %v2838 = vunpack.c.l.b16 %v2187
    %v2839 = vunpack.c.h.b16 %v2187
    %v2840 = vunpack.c.l.b16 %v2188
    %v2841 = vunpack.c.h.b16 %v2188
    %v2842 = vunpack.c.l.b16 %v2189
    %v2843 = vunpack.c.h.b16 %v2189
    %v2844 = vunpack.c.l.b16 %v2190
    %v2845 = vunpack.c.l.b16 %v2191
    %v2846 = vunpack.c.h.b16 %v2191
    %v2847 = vunpack.c.l.b16 %v2192
    %v2848 = vunpack.c.h.b16 %v2192
    %v2849 = vunpack.c.l.b16 %v2193
    %v2850 = vunpack.c.h.b16 %v2193
    %v2851 = vunpack.c.l.b16 %v2194
    %v2852 = vunpack.c.l.b16 %v2195
    %v2853 = vunpack.c.h.b16 %v2195
    %v2854 = vunpack.c.l.b16 %v2196
    %v2855 = vunpack.c.h.b16 %v2196
    %v2856 = vunpack.c.l.b16 %v2197
    %v2857 = vunpack.c.h.b16 %v2197
    %v2858 = vunpack.c.l.b16 %v2198
    %v2859 = vunpack.c.l.b16 %v2199
    %v2860 = vunpack.c.h.b16 %v2199
    %v2861 = vunpack.c.l.b16 %v2200
    %v2862 = vunpack.c.h.b16 %v2200
    %v2863 = vunpack.c.l.b16 %v2201
    %v2864 = vunpack.c.h.b16 %v2201
    %v2865 = vunpack.c.l.b16 %v2202
    %v2866 = vunpack.c.l.b16 %v2203
    %v2867 = vunpack.c.h.b16 %v2203
    %v2868 = vunpack.c.l.b16 %v2204
    %v2869 = vunpack.c.h.b16 %v2204
    %v2870 = vunpack.c.l.b16 %v2205
    %v2871 = vunpack.c.h.b16 %v2205
    %v2872 = vunpack.c.l.b16 %v2206
    %v2873 = vunpack.c.l.b16 %v2207
    %v2874 = vunpack.c.h.b16 %v2207
    %v2875 = vunpack.c.l.b16 %v2208
    %v2876 = vunpack.c.h.b16 %v2208
    %v2877 = vunpack.c.l.b16 %v2209
    %v2878 = vunpack.c.h.b16 %v2209
    %v2879 = vunpack.c.l.b16 %v2210
    %v2880 = vunpack.c.l.b16 %v2211
    %v2881 = vunpack.c.h.b16 %v2211
    %v2882 = vunpack.c.l.b16 %v2212
    %v2883 = vunpack.c.h.b16 %v2212
    %v2884 = vunpack.c.l.b16 %v2213
    %v2885 = vunpack.c.h.b16 %v2213
    %v2886 = vunpack.c.l.b16 %v2214
    %v2887 = vunpack.c.l.b16 %v2215
    %v2888 = vunpack.c.h.b16 %v2215
    %v2889 = vunpack.c.l.b16 %v2216
    %v2890 = vunpack.c.h.b16 %v2216
    %v2891 = vunpack.c.l.b16 %v2217
    %v2892 = vunpack.c.h.b16 %v2217
    %v2893 = vunpack.c.l.b16 %v2218
    %v2894 = vunpack.c.l.b16 %v2219
    %v2895 = vunpack.c.h.b16 %v2219
    %v2896 = vunpack.c.l.b16 %v2220
    %v2897 = vunpack.c.h.b16 %v2220
    %v2898 = vunpack.c.l.b16 %v2221
    %v2899 = vunpack.c.h.b16 %v2221
    %v2900 = vunpack.c.l.b16 %v2222
    %v2901 = vunpack.c.l.b16 %v2223
    %v2902 = vunpack.c.h.b16 %v2223
    %v2903 = vunpack.c.l.b16 %v2224
    %v2904 = vunpack.c.h.b16 %v2224
    %v2905 = vunpack.c.l.b16 %v2225
    %v2906 = vunpack.c.h.b16 %v2225
    %v2907 = vunpack.c.l.b16 %v2226
    %v2908 = vunpack.c.l.b16 %v2227
    %v2909 = vunpack.c.h.b16 %v2227
    %v2910 = vunpack.c.l.b16 %v2228
    %v2911 = vunpack.c.h.b16 %v2228
    %v2912 = vunpack.c.l.b16 %v2229
    %v2913 = vunpack.c.h.b16 %v2229
    %v2914 = vunpack.c.l.b16 %v2230
    %v2915 = vunpack.c.l.b16 %v2231
    %v2916 = vunpack.c.h.b16 %v2231
    %v2917 = vunpack.c.l.b16 %v2232
    %v2918 = vunpack.c.h.b16 %v2232
    %v2919 = vunpack.c.l.b16 %v2233
    %v2920 = vunpack.c.h.b16 %v2233
    %v2921 = vunpack.c.l.b16 %v2234
    %v2922 = vunpack.c.l.b16 %v2235
    %v2923 = vunpack.c.h.b16 %v2235
    %v2924 = vunpack.c.l.b16 %v2236
    %v2925 = vunpack.c.h.b16 %v2236
    %v2926 = vunpack.c.l.b16 %v2237
    %v2927 = vunpack.c.h.b16 %v2237
    %v2928 = vunpack.c.l.b16 %v2238
    %v2929 = vunpack.c.l.b16 %v2239
    %v2930 = vunpack.c.h.b16 %v2239
    %v2931 = vunpack.c.l.b16 %v2240
    %v2932 = vunpack.c.h.b16 %v2240
    %v2933 = vunpack.c.l.b16 %v2241
    %v2934 = vunpack.c.h.b16 %v2241
    %v2935 = vunpack.c.l.b16 %v2242
    %v2936 = vunpack.c.l.b16 %v2243
    %v2937 = vunpack.c.h.b16 %v2243
    %v2938 = vunpack.c.l.b16 %v2244
    %v2939 = vunpack.c.h.b16 %v2244
    %v2940 = vunpack.c.l.b16 %v2245
    %v2941 = vunpack.c.h.b16 %v2245
    %v2942 = vunpack.c.l.b16 %v2246
    %v2943 = vunpack.c.l.b16 %v2247
    %v2944 = vunpack.c.h.b16 %v2247
    %v2945 = vunpack.c.l.b16 %v2248
    %v2946 = vunpack.c.h.b16 %v2248
    %v2947 = vunpack.c.l.b16 %v2249
    %v2948 = vunpack.c.h.b16 %v2249
    %v2949 = vunpack.c.l.b16 %v2250
    %v2950 = vunpack.c.l.b16 %v2251
    %v2951 = vunpack.c.h.b16 %v2251
    %v2952 = vunpack.c.l.b16 %v2252
    %v2953 = vunpack.c.h.b16 %v2252
    %v2954 = vunpack.c.l.b16 %v2253
    %v2955 = vunpack.c.h.b16 %v2253
    %v2956 = vunpack.c.l.b16 %v2254
    %v2957 = vunpack.c.l.b16 %v2255
    %v2958 = vunpack.c.h.b16 %v2255
    %v2959 = vunpack.c.l.b16 %v2256
    %v2960 = vunpack.c.h.b16 %v2256
    %v2961 = vunpack.c.l.b16 %v2257
    %v2962 = vunpack.c.h.b16 %v2257
    %v2963 = vunpack.c.l.b16 %v2258
    %v2964 = vunpack.c.l.b16 %v2259
    %v2965 = vunpack.c.h.b16 %v2259
    %v2966 = vunpack.c.l.b16 %v2260
    %v2967 = vunpack.c.h.b16 %v2260
    %v2968 = vunpack.c.l.b16 %v2261
    %v2969 = vunpack.c.h.b16 %v2261
    %v2970 = vunpack.c.l.b16 %v2262
    %v2971 = vunpack.c.l.b16 %v2263
    %v2972 = vunpack.c.h.b16 %v2263
    %v2973 = vunpack.c.l.b16 %v2264
    %v2974 = vunpack.c.h.b16 %v2264
    %v2975 = vunpack.c.l.b16 %v2265
    %v2976 = vunpack.c.h.b16 %v2265
    %v2977 = vunpack.c.l.b16 %v2266
    %v2978 = vunpack.c.l.b16 %v2267
    %v2979 = vunpack.c.h.b16 %v2267
    %v2980 = vunpack.c.l.b16 %v2268
    %v2981 = vunpack.c.h.b16 %v2268
    %v2982 = vunpack.c.l.b16 %v2269
    %v2983 = vunpack.c.h.b16 %v2269
    %v2984 = vunpack.c.l.b16 %v2270
    %v2985 = vunpack.c.l.b16 %v2271
    %v2986 = vunpack.c.h.b16 %v2271
    %v2987 = vunpack.c.l.b16 %v2272
    %v2988 = vunpack.c.h.b16 %v2272
    %v2989 = vunpack.c.l.b16 %v2273
    %v2990 = vunpack.c.h.b16 %v2273
    %v2991 = vunpack.c.l.b16 %v2274
    %v2992 = vunpack.c.l.b16 %v2275
    %v2993 = vunpack.c.h.b16 %v2275
    %v2994 = vunpack.c.l.b16 %v2276
    %v2995 = vunpack.c.h.b16 %v2276
    %v2996 = vunpack.c.l.b16 %v2277
    %v2997 = vunpack.c.h.b16 %v2277
    %v2998 = vunpack.c.l.b16 %v2278
    %v2999 = vunpack.c.l.b16 %v2279
    %v3000 = vunpack.c.h.b16 %v2279
    %v3001 = vunpack.c.l.b16 %v2280
    %v3002 = vunpack.c.h.b16 %v2280
    %v3003 = vunpack.c.l.b16 %v2281
    %v3004 = vunpack.c.h.b16 %v2281
    %v3005 = vunpack.c.l.b16 %v2282
    %v3006 = vunpack.c.l.b16 %v2283
    %v3007 = vunpack.c.h.b16 %v2283
    %v3008 = vunpack.c.l.b16 %v2284
    %v3009 = vunpack.c.h.b16 %v2284
    %v3010 = vunpack.c.l.b16 %v2285
    %v3011 = vunpack.c.h.b16 %v2285
    %v3012 = vunpack.c.l.b16 %v2286
    %v3013 = vunpack.c.l.b16 %v2287
    %v3014 = vunpack.c.h.b16 %v2287
    %v3015 = vunpack.c.l.b16 %v2288
    %v3016 = vunpack.c.h.b16 %v2288
    %v3017 = vunpack.c.l.b16 %v2289
    %v3018 = vunpack.c.h.b16 %v2289
    %v3019 = vunpack.c.l.b16 %v2290
    %v3020 = vunpack.c.l.b16 %v2291
    %v3021 = vunpack.c.h.b16 %v2291
    %v3022 = vunpack.c.l.b16 %v2292
    %v3023 = vunpack.c.h.b16 %v2292
    %v3024 = vunpack.c.l.b16 %v2293
    %v3025 = vunpack.c.h.b16 %v2293
    %v3026 = vunpack.c.l.b16 %v2294
    %v3027 = vunpack.c.l.b16 %v2295
    %v3028 = vunpack.c.h.b16 %v2295
    %v3029 = vunpack.c.l.b16 %v2296
    %v3030 = vunpack.c.h.b16 %v2296
    %v3031 = vunpack.c.l.b16 %v2297
    %v3032 = vunpack.c.h.b16 %v2297
    %v3033 = vunpack.c.l.b16 %v2298
    %v3034 = vunpack.c.l.b16 %v2299
    %v3035 = vunpack.c.h.b16 %v2299
    %v3036 = vunpack.c.l.b16 %v2300
    %v3037 = vunpack.c.h.b16 %v2300
    %v3038 = vunpack.c.l.b16 %v2301
    %v3039 = vunpack.c.h.b16 %v2301
    %v3040 = vunpack.c.l.b16 %v2302
    %v3041 = vunpack.c.l.b16 %v2303
    %v3042 = vunpack.c.h.b16 %v2303
    %v3043 = vunpack.c.l.b16 %v2304
    %v3044 = vunpack.c.h.b16 %v2304
    %v3045 = vunpack.c.l.b16 %v2305
    %v3046 = vunpack.c.h.b16 %v2305
    %v3047 = vunpack.c.l.b16 %v2306
    %v3048 = vpack.c.b16 %v2607, %v2600
    %v3049 = vpack.c.b16 %v2608, %v2601
    %v3050 = vpack.c.b16 %v2609, %v2602
    %v3051 = vpack.c.b16 %v2610, %v2603
    %v3052 = vpack.c.b16 %v2611, %v2604
    %v3053 = vpack.c.b16 %v2612, %v2605
    %v3054 = vpack.c.b16 %v2613, %v2606
    %v3055 = vpack.c.b16 %v2621, %v2614
    %v3056 = vpack.c.b16 %v2622, %v2615
    %v3057 = vpack.c.b16 %v2623, %v2616
    %v3058 = vpack.c.b16 %v2624, %v2617
    %v3059 = vpack.c.b16 %v2625, %v2618
    %v3060 = vpack.c.b16 %v2626, %v2619
    %v3061 = vpack.c.b16 %v2627, %v2620
    %v3062 = vpack.c.b16 %v2635, %v2628
    %v3063 = vpack.c.b16 %v2636, %v2629
    %v3064 = vpack.c.b16 %v2637, %v2630
    %v3065 = vpack.c.b16 %v2638, %v2631
    %v3066 = vpack.c.b16 %v2639, %v2632
    %v3067 = vpack.c.b16 %v2640, %v2633
    %v3068 = vpack.c.b16 %v2641, %v2634
    %v3069 = vpack.c.b16 %v2649, %v2642
    %v3070 = vpack.c.b16 %v2650, %v2643
    %v3071 = vpack.c.b16 %v2651, %v2644
    %v3072 = vpack.c.b16 %v2652, %v2645
    %v3073 = vpack.c.b16 %v2653, %v2646
    %v3074 = vpack.c.b16 %v2654, %v2647
    %v3075 = vpack.c.b16 %v2655, %v2648
    %v3076 = vpack.c.b16 %v2663, %v2656
    %v3077 = vpack.c.b16 %v2664, %v2657
    %v3078 = vpack.c.b16 %v2665, %v2658
    %v3079 = vpack.c.b16 %v2666, %v2659
    %v3080 = vpack.c.b16 %v2667, %v2660
    %v3081 = vpack.c.b16 %v2668, %v2661
    %v3082 = vpack.c.b16 %v2669, %v2662
    %v3083 = vpack.c.b16 %v2677, %v2670
    %v3084 = vpack.c.b16 %v2678, %v2671
    %v3085 = vpack.c.b16 %v2679, %v2672
    %v3086 = vpack.c.b16 %v2680, %v2673
    %v3087 = vpack.c.b16 %v2681, %v2674
    %v3088 = vpack.c.b16 %v2682, %v2675
    %v3089 = vpack.c.b16 %v2683, %v2676
    %v3090 = vpack.c.b16 %v2691, %v2684
    %v3091 = vpack.c.b16 %v2692, %v2685
    %v3092 = vpack.c.b16 %v2693, %v2686
    %v3093 = vpack.c.b16 %v2694, %v2687
    %v3094 = vpack.c.b16 %v2695, %v2688
    %v3095 = vpack.c.b16 %v2696, %v2689
    %v3096 = vpack.c.b16 %v2697, %v2690
    %v3097 = vpack.c.b16 %v2705, %v2698
    %v3098 = vpack.c.b16 %v2706, %v2699
    %v3099 = vpack.c.b16 %v2707, %v2700
    %v3100 = vpack.c.b16 %v2708, %v2701
    %v3101 = vpack.c.b16 %v2709, %v2702
    %v3102 = vpack.c.b16 %v2710, %v2703
    %v3103 = vpack.c.b16 %v2711, %v2704
    %v3104 = vpack.c.b16 %v2719, %v2712
    %v3105 = vpack.c.b16 %v2720, %v2713
    %v3106 = vpack.c.b16 %v2721, %v2714
    %v3107 = vpack.c.b16 %v2722, %v2715
    %v3108 = vpack.c.b16 %v2723, %v2716
    %v3109 = vpack.c.b16 %v2724, %v2717
    %v3110 = vpack.c.b16 %v2725, %v2718
    %v3111 = vpack.c.b16 %v2733, %v2726
    %v3112 = vpack.c.b16 %v2734, %v2727
    %v3113 = vpack.c.b16 %v2735, %v2728
    %v3114 = vpack.c.b16 %v2736, %v2729
    %v3115 = vpack.c.b16 %v2737, %v2730
    %v3116 = vpack.c.b16 %v2738, %v2731
    %v3117 = vpack.c.b16 %v2739, %v2732
    %v3118 = vpack.c.b16 %v2747, %v2740
    %v3119 = vpack.c.b16 %v2748, %v2741
    %v3120 = vpack.c.b16 %v2749, %v2742
    %v3121 = vpack.c.b16 %v2750, %v2743
    %v3122 = vpack.c.b16 %v2751, %v2744
    %v3123 = vpack.c.b16 %v2752, %v2745
    %v3124 = vpack.c.b16 %v2753, %v2746
    %v3125 = vpack.c.b16 %v2761, %v2754
    %v3126 = vpack.c.b16 %v2762, %v2755
    %v3127 = vpack.c.b16 %v2763, %v2756
    %v3128 = vpack.c.b16 %v2764, %v2757
    %v3129 = vpack.c.b16 %v2765, %v2758
    %v3130 = vpack.c.b16 %v2766, %v2759
    %v3131 = vpack.c.b16 %v2767, %v2760
    %v3132 = vpack.c.b16 %v2775, %v2768
    %v3133 = vpack.c.b16 %v2776, %v2769
    %v3134 = vpack.c.b16 %v2777, %v2770
    %v3135 = vpack.c.b16 %v2778, %v2771
    %v3136 = vpack.c.b16 %v2779, %v2772
    %v3137 = vpack.c.b16 %v2780, %v2773
    %v3138 = vpack.c.b16 %v2781, %v2774
    %v3139 = vpack.c.b16 %v2789, %v2782
    %v3140 = vpack.c.b16 %v2790, %v2783
    %v3141 = vpack.c.b16 %v2791, %v2784
    %v3142 = vpack.c.b16 %v2792, %v2785
    %v3143 = vpack.c.b16 %v2793, %v2786
    %v3144 = vpack.c.b16 %v2794, %v2787
    %v3145 = vpack.c.b16 %v2795, %v2788
    %v3146 = vpack.c.b16 %v2803, %v2796
    %v3147 = vpack.c.b16 %v2804, %v2797
    %v3148 = vpack.c.b16 %v2805, %v2798
    %v3149 = vpack.c.b16 %v2806, %v2799
    %v3150 = vpack.c.b16 %v2807, %v2800
    %v3151 = vpack.c.b16 %v2808, %v2801
    %v3152 = vpack.c.b16 %v2809, %v2802
    %v3153 = vpack.c.b16 %v2817, %v2810
    %v3154 = vpack.c.b16 %v2818, %v2811
    %v3155 = vpack.c.b16 %v2819, %v2812
    %v3156 = vpack.c.b16 %v2820, %v2813
    %v3157 = vpack.c.b16 %v2821, %v2814
    %v3158 = vpack.c.b16 %v2822, %v2815
    %v3159 = vpack.c.b16 %v2823, %v2816
    %v3160 = vpack.c.b16 %v2831, %v2824
    %v3161 = vpack.c.b16 %v2832, %v2825
    %v3162 = vpack.c.b16 %v2833, %v2826
    %v3163 = vpack.c.b16 %v2834, %v2827
    %v3164 = vpack.c.b16 %v2835, %v2828
    %v3165 = vpack.c.b16 %v2836, %v2829
    %v3166 = vpack.c.b16 %v2837, %v2830
    %v3167 = vpack.c.b16 %v2845, %v2838
    %v3168 = vpack.c.b16 %v2846, %v2839
    %v3169 = vpack.c.b16 %v2847, %v2840
    %v3170 = vpack.c.b16 %v2848, %v2841
    %v3171 = vpack.c.b16 %v2849, %v2842
    %v3172 = vpack.c.b16 %v2850, %v2843
    %v3173 = vpack.c.b16 %v2851, %v2844
    %v3174 = vpack.c.b16 %v2859, %v2852
    %v3175 = vpack.c.b16 %v2860, %v2853
    %v3176 = vpack.c.b16 %v2861, %v2854
    %v3177 = vpack.c.b16 %v2862, %v2855
    %v3178 = vpack.c.b16 %v2863, %v2856
    %v3179 = vpack.c.b16 %v2864, %v2857
    %v3180 = vpack.c.b16 %v2865, %v2858
    %v3181 = vpack.c.b16 %v2873, %v2866
    %v3182 = vpack.c.b16 %v2874, %v2867
    %v3183 = vpack.c.b16 %v2875, %v2868
    %v3184 = vpack.c.b16 %v2876, %v2869
    %v3185 = vpack.c.b16 %v2877, %v2870
    %v3186 = vpack.c.b16 %v2878, %v2871
    %v3187 = vpack.c.b16 %v2879, %v2872
    %v3188 = vpack.c.b16 %v2887, %v2880
    %v3189 = vpack.c.b16 %v2888, %v2881
    %v3190 = vpack.c.b16 %v2889, %v2882
    %v3191 = vpack.c.b16 %v2890, %v2883
    %v3192 = vpack.c.b16 %v2891, %v2884
    %v3193 = vpack.c.b16 %v2892, %v2885
    %v3194 = vpack.c.b16 %v2893, %v2886
    %v3195 = vpack.c.b16 %v2901, %v2894
    %v3196 = vpack.c.b16 %v2902, %v2895
    %v3197 = vpack.c.b16 %v2903, %v2896
    %v3198 = vpack.c.b16 %v2904, %v2897
    %v3199 = vpack.c.b16 %v2905, %v2898
    %v3200 = vpack.c.b16 %v2906, %v2899
    %v3201 = vpack.c.b16 %v2907, %v2900
    %v3202 = vpack.c.b16 %v2915, %v2908
    %v3203 = vpack.c.b16 %v2916, %v2909
    %v3204 = vpack.c.b16 %v2917, %v2910
    %v3205 = vpack.c.b16 %v2918, %v2911
    %v3206 = vpack.c.b16 %v2919, %v2912
    %v3207 = vpack.c.b16 %v2920, %v2913
    %v3208 = vpack.c.b16 %v2921, %v2914
    %v3209 = vpack.c.b16 %v2929, %v2922
    %v3210 = vpack.c.b16 %v2930, %v2923
    %v3211 = vpack.c.b16 %v2931, %v2924
    %v3212 = vpack.c.b16 %v2932, %v2925
    %v3213 = vpack.c.b16 %v2933, %v2926
    %v3214 = vpack.c.b16 %v2934, %v2927
    %v3215 = vpack.c.b16 %v2935, %v2928
    %v3216 = vpack.c.b16 %v2943, %v2936
    %v3217 = vpack.c.b16 %v2944, %v2937
    %v3218 = vpack.c.b16 %v2945, %v2938
    %v3219 = vpack.c.b16 %v2946, %v2939
    %v3220 = vpack.c.b16 %v2947, %v2940
    %v3221 = vpack.c.b16 %v2948, %v2941
    %v3222 = vpack.c.b16 %v2949, %v2942
    %v3223 = vpack.c.b16 %v2957, %v2950
    %v3224 = vpack.c.b16 %v2958, %v2951
    %v3225 = vpack.c.b16 %v2959, %v2952
    %v3226 = vpack.c.b16 %v2960, %v2953
    %v3227 = vpack.c.b16 %v2961, %v2954
    %v3228 = vpack.c.b16 %v2962, %v2955
    %v3229 = vpack.c.b16 %v2963, %v2956
    %v3230 = vpack.c.b16 %v2971, %v2964
    %v3231 = vpack.c.b16 %v2972, %v2965
    %v3232 = vpack.c.b16 %v2973, %v2966
    %v3233 = vpack.c.b16 %v2974, %v2967
    %v3234 = vpack.c.b16 %v2975, %v2968
    %v3235 = vpack.c.b16 %v2976, %v2969
    %v3236 = vpack.c.b16 %v2977, %v2970
    %v3237 = vpack.c.b16 %v2985, %v2978
    %v3238 = vpack.c.b16 %v2986, %v2979
    %v3239 = vpack.c.b16 %v2987, %v2980
    %v3240 = vpack.c.b16 %v2988, %v2981
    %v3241 = vpack.c.b16 %v2989, %v2982
    %v3242 = vpack.c.b16 %v2990, %v2983
    %v3243 = vpack.c.b16 %v2991, %v2984
    %v3244 = vpack.c.b16 %v2999, %v2992
    %v3245 = vpack.c.b16 %v3000, %v2993
    %v3246 = vpack.c.b16 %v3001, %v2994
    %v3247 = vpack.c.b16 %v3002, %v2995
    %v3248 = vpack.c.b16 %v3003, %v2996
    %v3249 = vpack.c.b16 %v3004, %v2997
    %v3250 = vpack.c.b16 %v3005, %v2998
    %v3251 = vpack.c.b16 %v3013, %v3006
    %v3252 = vpack.c.b16 %v3014, %v3007
    %v3253 = vpack.c.b16 %v3015, %v3008
    %v3254 = vpack.c.b16 %v3016, %v3009
    %v3255 = vpack.c.b16 %v3017, %v3010
    %v3256 = vpack.c.b16 %v3018, %v3011
    %v3257 = vpack.c.b16 %v3019, %v3012
    %v3258 = vpack.c.b16 %v3027, %v3020
    %v3259 = vpack.c.b16 %v3028, %v3021
    %v3260 = vpack.c.b16 %v3029, %v3022
    %v3261 = vpack.c.b16 %v3030, %v3023
    %v3262 = vpack.c.b16 %v3031, %v3024
    %v3263 = vpack.c.b16 %v3032, %v3025
    %v3264 = vpack.c.b16 %v3033, %v3026
    %v3265 = vpack.c.b16 %v3041, %v3034
    %v3266 = vpack.c.b16 %v3042, %v3035
    %v3267 = vpack.c.b16 %v3043, %v3036
    %v3268 = vpack.c.b16 %v3044, %v3037
    %v3269 = vpack.c.b16 %v3045, %v3038
    %v3270 = vpack.c.b16 %v3046, %v3039
    %v3271 = vpack.c.b16 %v3047, %v3040
    %3496 = vmatprep.subr.bf16.mxu0 %v3049
    %3497 = vmatpush1.bf16.msra.mxu0 %v3048
    %3498 = vmatprep.subr.bf16.mxu0 %v3056
    %3499 = vmatpush1.bf16.msra.mxu0 %v3055
    %3500 = vmatprep.subr.bf16.mxu0 %v3063
    %3501 = vmatpush1.bf16.msra.mxu0 %v3062
    %3502 = vmatprep.subr.bf16.mxu0 %v3070
    %3503 = vmatpush1.bf16.msra.mxu0 %v3069
    %3504 = vmatprep.subr.bf16.mxu0 %v3077
    %3505 = vmatpush1.bf16.msra.mxu0 %v3076
    %3506 = vmatprep.subr.bf16.mxu0 %v3084
    %3507 = vmatpush1.bf16.msra.mxu0 %v3083
    %3508 = vmatprep.subr.bf16.mxu0 %v3091
    %3509 = vmatpush1.bf16.msra.mxu0 %v3090
    %3510 = vmatprep.subr.bf16.mxu0 %v3098
    %3511 = vmatpush1.bf16.msra.mxu0 %v3097
    %3512 = vmatprep.subr.bf16.mxu0 %v3105
    %3513 = vmatpush1.bf16.msra.mxu0 %v3104
    %3514 = vmatprep.subr.bf16.mxu0 %v3112
    %3515 = vmatpush1.bf16.msra.mxu0 %v3111
    %3516 = vmatprep.subr.bf16.mxu0 %v3119
    %3517 = vmatpush1.bf16.msra.mxu0 %v3118
    %3518 = vmatprep.subr.bf16.mxu0 %v3126
    %3519 = vmatpush1.bf16.msra.mxu0 %v3125
    %3520 = vmatprep.subr.bf16.mxu0 %v3133
    %3521 = vmatpush1.bf16.msra.mxu0 %v3132
    %3522 = vmatprep.subr.bf16.mxu0 %v3140
    %3523 = vmatpush1.bf16.msra.mxu0 %v3139
    %3524 = vmatprep.subr.bf16.mxu0 %v3147
    %3525 = vmatpush1.bf16.msra.mxu0 %v3146
    %3526 = vmatprep.subr.bf16.mxu0 %v3154
    %3527 = vmatpush1.bf16.msra.mxu0 %v3153
    %3528 = vmatprep.mubr.bf16.mxu0 %v2048
    %3529 = vmatmul.mubr.bf16.gmra.mrb[0].mxu0 %v2047
    %v3530 = vpop.f32.mrb[0].mxu0
    %v3531 = vadd.f32 %v2312, %v3530
    %v3532 = vpop.f32.mrb[0].mxu0
    %v3533 = vadd.f32 %v2316, %v3532
    %v3534 = vpop.f32.mrb[0].mxu0
    %v3535 = vpop.f32.mrb[0].mxu0
    %3536 = vdwg.mxu0
    %3537 = vmatprep.subr.bf16.mxu0 %v3161
    %3538 = vmatpush1.bf16.msra.mxu0 %v3160
    %3539 = vmatprep.subr.bf16.mxu0 %v3168
    %3540 = vmatpush1.bf16.msra.mxu0 %v3167
    %3541 = vmatprep.subr.bf16.mxu0 %v3175
    %3542 = vmatpush1.bf16.msra.mxu0 %v3174
    %3543 = vmatprep.subr.bf16.mxu0 %v3182
    %3544 = vmatpush1.bf16.msra.mxu0 %v3181
    %3545 = vmatprep.subr.bf16.mxu0 %v3189
    %3546 = vmatpush1.bf16.msra.mxu0 %v3188
    %3547 = vmatprep.subr.bf16.mxu0 %v3196
    %3548 = vmatpush1.bf16.msra.mxu0 %v3195
    %3549 = vmatprep.subr.bf16.mxu0 %v3203
    %3550 = vmatpush1.bf16.msra.mxu0 %v3202
    %3551 = vmatprep.subr.bf16.mxu0 %v3210
    %3552 = vmatpush1.bf16.msra.mxu0 %v3209
    %3553 = vmatprep.subr.bf16.mxu0 %v3217
    %3554 = vmatpush1.bf16.msra.mxu0 %v3216
    %3555 = vmatprep.subr.bf16.mxu0 %v3224
    %3556 = vmatpush1.bf16.msra.mxu0 %v3223
    %3557 = vmatprep.subr.bf16.mxu0 %v3231
    %3558 = vmatpush1.bf16.msra.mxu0 %v3230
    %3559 = vmatprep.subr.bf16.mxu0 %v3238
    %3560 = vmatpush1.bf16.msra.mxu0 %v3237
    %3561 = vmatprep.subr.bf16.mxu0 %v3245
    %3562 = vmatpush1.bf16.msra.mxu0 %v3244
    %3563 = vmatprep.subr.bf16.mxu0 %v3252
    %3564 = vmatpush1.bf16.msra.mxu0 %v3251
    %3565 = vmatprep.subr.bf16.mxu0 %v3259
    %3566 = vmatpush1.bf16.msra.mxu0 %v3258
    %3567 = vmatprep.subr.bf16.mxu0 %v3266
    %3568 = vmatpush1.bf16.msra.mxu0 %v3265
    %3569 = vmatprep.mubr.bf16.mxu0 %v2050
    %3570 = vmatmul.mubr.bf16.gmra.mrb[0].mxu0 %v2049
    %v3571 = vpop.f32.mrb[0].mxu0
    %v3572 = vadd.f32 %v3531, %v3571
    %v3573 = vpop.f32.mrb[0].mxu0
    %v3574 = vadd.f32 %v3533, %v3573
    %v3575 = vpop.f32.mrb[0].mxu0
    %v3576 = vpop.f32.mrb[0].mxu0
    %3577 = vdwg.mxu0
    %3578 = vmatprep.subr.bf16.mxu0 %v3051
    %3579 = vmatpush1.bf16.msra.mxu0 %v3050
    %3580 = vmatprep.subr.bf16.mxu0 %v3058
    %3581 = vmatpush1.bf16.msra.mxu0 %v3057
    %3582 = vmatprep.subr.bf16.mxu0 %v3065
    %3583 = vmatpush1.bf16.msra.mxu0 %v3064
    %3584 = vmatprep.subr.bf16.mxu0 %v3072
    %3585 = vmatpush1.bf16.msra.mxu0 %v3071
    %3586 = vmatprep.subr.bf16.mxu0 %v3079
    %3587 = vmatpush1.bf16.msra.mxu0 %v3078
    %3588 = vmatprep.subr.bf16.mxu0 %v3086
    %3589 = vmatpush1.bf16.msra.mxu0 %v3085
    %3590 = vmatprep.subr.bf16.mxu0 %v3093
    %3591 = vmatpush1.bf16.msra.mxu0 %v3092
    %3592 = vmatprep.subr.bf16.mxu0 %v3100
    %3593 = vmatpush1.bf16.msra.mxu0 %v3099
    %3594 = vmatprep.subr.bf16.mxu0 %v3107
    %3595 = vmatpush1.bf16.msra.mxu0 %v3106
    %3596 = vmatprep.subr.bf16.mxu0 %v3114
    %3597 = vmatpush1.bf16.msra.mxu0 %v3113
    %3598 = vmatprep.subr.bf16.mxu0 %v3121
    %3599 = vmatpush1.bf16.msra.mxu0 %v3120
    %3600 = vmatprep.subr.bf16.mxu0 %v3128
    %3601 = vmatpush1.bf16.msra.mxu0 %v3127
    %3602 = vmatprep.subr.bf16.mxu0 %v3135
    %3603 = vmatpush1.bf16.msra.mxu0 %v3134
    %3604 = vmatprep.subr.bf16.mxu0 %v3142
    %3605 = vmatpush1.bf16.msra.mxu0 %v3141
    %3606 = vmatprep.subr.bf16.mxu0 %v3149
    %3607 = vmatpush1.bf16.msra.mxu0 %v3148
    %3608 = vmatprep.subr.bf16.mxu0 %v3156
    %3609 = vmatpush1.bf16.msra.mxu0 %v3155
    %3610 = vmatprep.mubr.bf16.mxu0 %v2048
    %3611 = vmatmul.mubr.bf16.gmra.mrb[0].mxu0 %v2047
    %v3612 = vpop.f32.mrb[0].mxu0
    %v3613 = vadd.f32 %v2320, %v3612
    %v3614 = vpop.f32.mrb[0].mxu0
    %v3615 = vadd.f32 %v2324, %v3614
    %v3616 = vpop.f32.mrb[0].mxu0
    %v3617 = vpop.f32.mrb[0].mxu0
    %3618 = vdwg.mxu0
    %3619 = vmatprep.subr.bf16.mxu0 %v3163
    %3620 = vmatpush1.bf16.msra.mxu0 %v3162
    %3621 = vmatprep.subr.bf16.mxu0 %v3170
    %3622 = vmatpush1.bf16.msra.mxu0 %v3169
    %3623 = vmatprep.subr.bf16.mxu0 %v3177
    %3624 = vmatpush1.bf16.msra.mxu0 %v3176
    %3625 = vmatprep.subr.bf16.mxu0 %v3184
    %3626 = vmatpush1.bf16.msra.mxu0 %v3183
    %3627 = vmatprep.subr.bf16.mxu0 %v3191
    %3628 = vmatpush1.bf16.msra.mxu0 %v3190
    %3629 = vmatprep.subr.bf16.mxu0 %v3198
    %3630 = vmatpush1.bf16.msra.mxu0 %v3197
    %3631 = vmatprep.subr.bf16.mxu0 %v3205
    %3632 = vmatpush1.bf16.msra.mxu0 %v3204
    %3633 = vmatprep.subr.bf16.mxu0 %v3212
    %3634 = vmatpush1.bf16.msra.mxu0 %v3211
    %3635 = vmatprep.subr.bf16.mxu0 %v3219
    %3636 = vmatpush1.bf16.msra.mxu0 %v3218
    %3637 = vmatprep.subr.bf16.mxu0 %v3226
    %3638 = vmatpush1.bf16.msra.mxu0 %v3225
    %3639 = vmatprep.subr.bf16.mxu0 %v3233
    %3640 = vmatpush1.bf16.msra.mxu0 %v3232
    %3641 = vmatprep.subr.bf16.mxu0 %v3240
    %3642 = vmatpush1.bf16.msra.mxu0 %v3239
    %3643 = vmatprep.subr.bf16.mxu0 %v3247
    %3644 = vmatpush1.bf16.msra.mxu0 %v3246
    %3645 = vmatprep.subr.bf16.mxu0 %v3254
    %3646 = vmatpush1.bf16.msra.mxu0 %v3253
    %3647 = vmatprep.subr.bf16.mxu0 %v3261
    %3648 = vmatpush1.bf16.msra.mxu0 %v3260
    %3649 = vmatprep.subr.bf16.mxu0 %v3268
    %3650 = vmatpush1.bf16.msra.mxu0 %v3267
    %3651 = vmatprep.mubr.bf16.mxu0 %v2050
    %3652 = vmatmul.mubr.bf16.gmra.mrb[0].mxu0 %v2049
    %v3653 = vpop.f32.mrb[0].mxu0
    %v3654 = vadd.f32 %v3613, %v3653
    %v3655 = vpop.f32.mrb[0].mxu0
    %v3656 = vadd.f32 %v3615, %v3655
    %v3657 = vpop.f32.mrb[0].mxu0
    %v3658 = vpop.f32.mrb[0].mxu0
    %3659 = vdwg.mxu0
    %3660 = vmatprep.subr.bf16.mxu0 %v3053
    %3661 = vmatpush1.bf16.msra.mxu0 %v3052
    %3662 = vmatprep.subr.bf16.mxu0 %v3060
    %3663 = vmatpush1.bf16.msra.mxu0 %v3059
    %3664 = vmatprep.subr.bf16.mxu0 %v3067
    %3665 = vmatpush1.bf16.msra.mxu0 %v3066
    %3666 = vmatprep.subr.bf16.mxu0 %v3074
    %3667 = vmatpush1.bf16.msra.mxu0 %v3073
    %3668 = vmatprep.subr.bf16.mxu0 %v3081
    %3669 = vmatpush1.bf16.msra.mxu0 %v3080
    %3670 = vmatprep.subr.bf16.mxu0 %v3088
    %3671 = vmatpush1.bf16.msra.mxu0 %v3087
    %3672 = vmatprep.subr.bf16.mxu0 %v3095
    %3673 = vmatpush1.bf16.msra.mxu0 %v3094
    %3674 = vmatprep.subr.bf16.mxu0 %v3102
    %3675 = vmatpush1.bf16.msra.mxu0 %v3101
    %3676 = vmatprep.subr.bf16.mxu0 %v3109
    %3677 = vmatpush1.bf16.msra.mxu0 %v3108
    %3678 = vmatprep.subr.bf16.mxu0 %v3116
    %3679 = vmatpush1.bf16.msra.mxu0 %v3115
    %3680 = vmatprep.subr.bf16.mxu0 %v3123
    %3681 = vmatpush1.bf16.msra.mxu0 %v3122
    %3682 = vmatprep.subr.bf16.mxu0 %v3130
    %3683 = vmatpush1.bf16.msra.mxu0 %v3129
    %3684 = vmatprep.subr.bf16.mxu0 %v3137
    %3685 = vmatpush1.bf16.msra.mxu0 %v3136
    %3686 = vmatprep.subr.bf16.mxu0 %v3144
    %3687 = vmatpush1.bf16.msra.mxu0 %v3143
    %3688 = vmatprep.subr.bf16.mxu0 %v3151
    %3689 = vmatpush1.bf16.msra.mxu0 %v3150
    %3690 = vmatprep.subr.bf16.mxu0 %v3158
    %3691 = vmatpush1.bf16.msra.mxu0 %v3157
    %3692 = vmatprep.mubr.bf16.mxu0 %v2048
    %3693 = vmatmul.mubr.bf16.gmra.mrb[0].mxu0 %v2047
    %v3694 = vpop.f32.mrb[0].mxu0
    %v3695 = vadd.f32 %v2328, %v3694
    %v3696 = vpop.f32.mrb[0].mxu0
    %v3697 = vadd.f32 %v2332, %v3696
    %v3698 = vpop.f32.mrb[0].mxu0
    %v3699 = vpop.f32.mrb[0].mxu0
    %3700 = vdwg.mxu0
    %3701 = vmatprep.subr.bf16.mxu0 %v3165
    %3702 = vmatpush1.bf16.msra.mxu0 %v3164
    %3703 = vmatprep.subr.bf16.mxu0 %v3172
    %3704 = vmatpush1.bf16.msra.mxu0 %v3171
    %3705 = vmatprep.subr.bf16.mxu0 %v3179
    %3706 = vmatpush1.bf16.msra.mxu0 %v3178
    %3707 = vmatprep.subr.bf16.mxu0 %v3186
    %3708 = vmatpush1.bf16.msra.mxu0 %v3185
    %3709 = vmatprep.subr.bf16.mxu0 %v3193
    %3710 = vmatpush1.bf16.msra.mxu0 %v3192
    %3711 = vmatprep.subr.bf16.mxu0 %v3200
    %3712 = vmatpush1.bf16.msra.mxu0 %v3199
    %3713 = vmatprep.subr.bf16.mxu0 %v3207
    %3714 = vmatpush1.bf16.msra.mxu0 %v3206
    %3715 = vmatprep.subr.bf16.mxu0 %v3214
    %3716 = vmatpush1.bf16.msra.mxu0 %v3213
    %3717 = vmatprep.subr.bf16.mxu0 %v3221
    %3718 = vmatpush1.bf16.msra.mxu0 %v3220
    %3719 = vmatprep.subr.bf16.mxu0 %v3228
    %3720 = vmatpush1.bf16.msra.mxu0 %v3227
    %3721 = vmatprep.subr.bf16.mxu0 %v3235
    %3722 = vmatpush1.bf16.msra.mxu0 %v3234
    %3723 = vmatprep.subr.bf16.mxu0 %v3242
    %3724 = vmatpush1.bf16.msra.mxu0 %v3241
    %3725 = vmatprep.subr.bf16.mxu0 %v3249
    %3726 = vmatpush1.bf16.msra.mxu0 %v3248
    %3727 = vmatprep.subr.bf16.mxu0 %v3256
    %3728 = vmatpush1.bf16.msra.mxu0 %v3255
    %3729 = vmatprep.subr.bf16.mxu0 %v3263
    %3730 = vmatpush1.bf16.msra.mxu0 %v3262
    %3731 = vmatprep.subr.bf16.mxu0 %v3270
    %3732 = vmatpush1.bf16.msra.mxu0 %v3269
    %3733 = vmatprep.mubr.bf16.mxu0 %v2050
    %3734 = vmatmul.mubr.bf16.gmra.mrb[0].mxu0 %v2049
    %v3735 = vpop.f32.mrb[0].mxu0
    %v3736 = vadd.f32 %v3695, %v3735
    %v3737 = vpop.f32.mrb[0].mxu0
    %v3738 = vadd.f32 %v3697, %v3737
    %v3739 = vpop.f32.mrb[0].mxu0
    %v3740 = vpop.f32.mrb[0].mxu0
    %3741 = vdwg.mxu0
    %3742 = vmatprep.subr.bf16.mxu0 0
    %3743 = vmatpush1.bf16.msra.mxu0 %v3054
    %3744 = vmatprep.subr.bf16.mxu0 0
    %3745 = vmatpush1.bf16.msra.mxu0 %v3061
    %3746 = vmatprep.subr.bf16.mxu0 0
    %3747 = vmatpush1.bf16.msra.mxu0 %v3068
    %3748 = vmatprep.subr.bf16.mxu0 0
    %3749 = vmatpush1.bf16.msra.mxu0 %v3075
    %3750 = vmatprep.subr.bf16.mxu0 0
    %3751 = vmatpush1.bf16.msra.mxu0 %v3082
    %3752 = vmatprep.subr.bf16.mxu0 0
    %3753 = vmatpush1.bf16.msra.mxu0 %v3089
    %3754 = vmatprep.subr.bf16.mxu0 0
    %3755 = vmatpush1.bf16.msra.mxu0 %v3096
    %3756 = vmatprep.subr.bf16.mxu0 0
    %3757 = vmatpush1.bf16.msra.mxu0 %v3103
    %3758 = vmatprep.subr.bf16.mxu0 0
    %3759 = vmatpush1.bf16.msra.mxu0 %v3110
    %3760 = vmatprep.subr.bf16.mxu0 0
    %3761 = vmatpush1.bf16.msra.mxu0 %v3117
    %3762 = vmatprep.subr.bf16.mxu0 0
    %3763 = vmatpush1.bf16.msra.mxu0 %v3124
    %3764 = vmatprep.subr.bf16.mxu0 0
    %3765 = vmatpush1.bf16.msra.mxu0 %v3131
    %3766 = vmatprep.subr.bf16.mxu0 0
    %3767 = vmatpush1.bf16.msra.mxu0 %v3138
    %3768 = vmatprep.subr.bf16.mxu0 0
    %3769 = vmatpush1.bf16.msra.mxu0 %v3145
    %3770 = vmatprep.subr.bf16.mxu0 0
    %3771 = vmatpush1.bf16.msra.mxu0 %v3152
    %3772 = vmatprep.subr.bf16.mxu0 0
    %3773 = vmatpush1.bf16.msra.mxu0 %v3159
    %3774 = vmatprep.mubr.bf16.mxu0 %v2048
    %3775 = vmatmul.mubr.bf16.gmra.mrb[0].mxu0 %v2047
    %v3776 = vpop.f32.mrb[0].mxu0
    %v3777 = vadd.f32 %v2336, %v3776
    %v3778 = vpop.f32.mrb[0].mxu0
    %v3779 = vpop.f32.mrb[0].mxu0
    %v3780 = vpop.f32.mrb[0].mxu0
    %3781 = vdwg.mxu0
    %3782 = vmatprep.subr.bf16.mxu0 0
    %3783 = vmatpush1.bf16.msra.mxu0 %v3166
    %3784 = vmatprep.subr.bf16.mxu0 0
    %3785 = vmatpush1.bf16.msra.mxu0 %v3173
    %3786 = vmatprep.subr.bf16.mxu0 0
    %3787 = vmatpush1.bf16.msra.mxu0 %v3180
    %3788 = vmatprep.subr.bf16.mxu0 0
    %3789 = vmatpush1.bf16.msra.mxu0 %v3187
    %3790 = vmatprep.subr.bf16.mxu0 0
    %3791 = vmatpush1.bf16.msra.mxu0 %v3194
    %3792 = vmatprep.subr.bf16.mxu0 0
    %3793 = vmatpush1.bf16.msra.mxu0 %v3201
    %3794 = vmatprep.subr.bf16.mxu0 0
    %3795 = vmatpush1.bf16.msra.mxu0 %v3208
    %3796 = vmatprep.subr.bf16.mxu0 0
    %3797 = vmatpush1.bf16.msra.mxu0 %v3215
    %3798 = vmatprep.subr.bf16.mxu0 0
    %3799 = vmatpush1.bf16.msra.mxu0 %v3222
    %3800 = vmatprep.subr.bf16.mxu0 0
    %3801 = vmatpush1.bf16.msra.mxu0 %v3229
    %3802 = vmatprep.subr.bf16.mxu0 0
    %3803 = vmatpush1.bf16.msra.mxu0 %v3236
    %3804 = vmatprep.subr.bf16.mxu0 0
    %3805 = vmatpush1.bf16.msra.mxu0 %v3243
    %3806 = vmatprep.subr.bf16.mxu0 0
    %3807 = vmatpush1.bf16.msra.mxu0 %v3250
    %3808 = vmatprep.subr.bf16.mxu0 0
    %3809 = vmatpush1.bf16.msra.mxu0 %v3257
    %3810 = vmatprep.subr.bf16.mxu0 0
    %3811 = vmatpush1.bf16.msra.mxu0 %v3264
    %3812 = vmatprep.subr.bf16.mxu0 0
    %3813 = vmatpush1.bf16.msra.mxu0 %v3271
    %3814 = vmatprep.mubr.bf16.mxu0 %v2050
    %3815 = vmatmul.mubr.bf16.gmra.mrb[0].mxu0 %v2049
    %v3816 = vpop.f32.mrb[0].mxu0
    %v3817 = vadd.f32 %v3777, %v3816
    %v3818 = vpop.f32.mrb[0].mxu0
    %v3819 = vpop.f32.mrb[0].mxu0
    %v3820 = vpop.f32.mrb[0].mxu0
    %3821 = vdwg.mxu0
    %v3822 = vmul.f32 %v3572, 0.5
    %v3823 = vmul.f32 %v3574, 0.5
    %v3824 = vmul.f32 %v3654, 0.5
    %v3825 = vmul.f32 %v3656, 0.5
    %v3826 = vmul.f32 %v3736, 0.5
    %v3827 = vmul.f32 %v3738, 0.5
    %v3828 = vmul.f32 %v3817, 0.5
    %v3829 = vtanh.pop %v3822
    %v3830 = vtanh.pop %v3823
    %v3831 = vtanh.pop %v3824
    %v3832 = vtanh.pop %v3825
    %v3833 = vtanh.pop %v3826
    %v3834 = vtanh.pop %v3827
    %v3835 = vtanh.pop %v3828
    %v3836 = vadd.f32 %v3829, 1.0
    %v3837 = vadd.f32 %v3830, 1.0
    %v3838 = vadd.f32 %v3831, 1.0
    %v3839 = vadd.f32 %v3832, 1.0
    %v3840 = vadd.f32 %v3833, 1.0
    %v3841 = vadd.f32 %v3834, 1.0
    %v3842 = vadd.f32 %v3835, 1.0
    %v3843 = vmul.f32 %v3836, 0.5
    %v3844 = vmul.f32 %v3837, 0.5
    %v3845 = vmul.f32 %v3838, 0.5
    %v3846 = vmul.f32 %v3839, 0.5
    %v3847 = vmul.f32 %v3840, 0.5
    %v3848 = vmul.f32 %v3841, 0.5
    %v3849 = vmul.f32 %v3842, 0.5
    %v3857 = vcombine.low %v3843, %v3844
    %v3858 = vcombine.high %v3843, %v3844
    %v3859 = vcombine.low %v3845, %v3846
    %v3860 = vcombine.high %v3845, %v3846
    %v3861 = vcombine.low %v3847, %v3848
    %v3862 = vcombine.high %v3847, %v3848
    %v3863 = vcombine.high %v3849, %v3849
    %3871 = vst [vmem:[#allocation2] sm:$0xff] %v3857
    %3872 = vst [vmem:[#allocation2 + $0x8] sm:$0xff] %v3859
    %3873 = vst [vmem:[#allocation2 + $0x10] sm:$0xff] %v3861
    %vm3874 = vcmask 125952
    %3875 = vst.msk [vmem:[#allocation2 + $0x18] sm:$0xf] %vm3874, %v3849
    %3876 = vst [vmem:[#allocation2 + $0x1c] sm:$0xff] %v3858
    %3877 = vst [vmem:[#allocation2 + $0x24] sm:$0xff] %v3860
    %3878 = vst [vmem:[#allocation2 + $0x2c] sm:$0xff] %v3862
    %3879 = vst.msk [vmem:[#allocation2 + $0x34] sm:$0xf] %vm3874, %v3863
    // Predicated region
    $region38: #{autoencoder_forward.1} parent=1 // pred_check
      _
    $region39: #{autoencoder_forward.1} parent=1 // pred_check_branch
      %3881 = sbr.rel (0) target = $region41
    $region40: #{autoencoder_forward.1} parent=1 // pred_region
      // Predicated region
      $region42: #{autoencoder_forward.1} parent=40 // pred_check
        _
      $region43: #{autoencoder_forward.1} parent=40 // pred_check_branch
        %3883 = sbr.rel (0) target = $region45
      $region44: #{autoencoder_forward.1} parent=40 // pred_region
        // Predicated region
        $region46: #{autoencoder_forward.1} parent=44 // pred_check
          _
        $region47: #{autoencoder_forward.1} parent=44 // pred_check_branch
          %3885 = sbr.rel (0) target = $region49
        $region48: #{autoencoder_forward.1} parent=44 // pred_region
          %s3886 = scalar_lea.vmem [#allocation2], 24
          %s3887 = scalar_lea.vmem %s9, 24
          loop: start=0, step=1, limit=1
          $region50: #{autoencoder_forward.1} parent=48 // loop_pre_header
            _
          $region51: #{autoencoder_forward.1} parent=48 // loop_header
            %s3889 = sphi 0, %s3893
            %p3890 = scmp.ge.s32.totalorder %s3889, 1
            %s3894 = sphi [#allocation2], [#allocation2]
            %s3895 = sphi %s9, %s9
          $region52: #{autoencoder_forward.1} parent=48 // loop_header_branch
            %3892 = sbr.rel (%p3890) target = $region56
          $region53: #{autoencoder_forward.1} parent=48 // loop_body
            %v3896 = vld [vmem:[%s3894] sm:$0xff]
            %3897 = vst [vmem:[%s3895] sm:$0xff] %v3896
            %v3898 = vld [vmem:[%s3894 + $0x8] sm:$0xff]
            %3899 = vst [vmem:[%s3895 + $0x8] sm:$0xff] %v3898
            %v3900 = vld [vmem:[%s3894 + $0x10] sm:$0xff]
            %3901 = vst [vmem:[%s3895 + $0x10] sm:$0xff] %v3900
          $region54: #{autoencoder_forward.1} parent=48 // loop_footer
            %s3893 = sadd.s32 1, %s3889
          $region55: #{autoencoder_forward.1} parent=48 // loop_footer_branch
            %3888 = sbr.rel target = $region51
          $region56: #{autoencoder_forward.1} parent=48 // loop_exit
            _
          loop: start=0, step=1, limit=1
          $region57: #{autoencoder_forward.1} parent=48 // loop_pre_header
            _
          $region58: #{autoencoder_forward.1} parent=48 // loop_header
            %s3904 = sphi 0, %s3908
            %p3905 = scmp.ge.s32.totalorder %s3904, 1
            %s3909 = sphi %s3886, %s3886
            %s3910 = sphi %s3887, %s3887
          $region59: #{autoencoder_forward.1} parent=48 // loop_header_branch
            %3907 = sbr.rel (%p3905) target = $region63
          $region60: #{autoencoder_forward.1} parent=48 // loop_body
            %v3911 = vld [vmem:[%s3909] sm:$0xf]
            %3912 = vst [vmem:[%s3910] sm:$0xf] %v3911
          $region61: #{autoencoder_forward.1} parent=48 // loop_footer
            %s3908 = sadd.s32 1, %s3904
          $region62: #{autoencoder_forward.1} parent=48 // loop_footer_branch
            %3903 = sbr.rel target = $region58
          $region63: #{autoencoder_forward.1} parent=48 // loop_exit
            _
        $region49: #{autoencoder_forward.1} parent=44 // pred_fallthru
          _
      $region45: #{autoencoder_forward.1} parent=40 // pred_fallthru
        _
      %3913 = vnop
    $region41: #{autoencoder_forward.1} parent=1 // pred_fallthru
      _
    // Predicated region
    $region64: #{autoencoder_forward.1} parent=1 // pred_check
      _
    $region65: #{autoencoder_forward.1} parent=1 // pred_check_branch
      %3915 = sbr.rel (0) target = $region67
    $region66: #{autoencoder_forward.1} parent=1 // pred_region
      _
    $region67: #{autoencoder_forward.1} parent=1 // pred_fallthru
      _

</llo_original>
